<compile_context>
chip_gen: v7x
topology: tpu7x:2x2x1
jax: 0.10.0
libtpu: 0.0.40
codegen_flags: <defaults>
</compile_context>

<pallas_src>
import functools

import jax
import jax.numpy as jnp
from jax.experimental import pallas as pl
from jax.experimental.pallas import tpu as pltpu


def _conv_bn_act_kernel(xp_ref, w_ref, b_ref, o_ref, *,
                        stride, kh, kw, cin, cout, tile_h, apply_act):
    """One (batch, row-strip) tile per grid step.

    xp_ref : (1, Cin, Hp, Wp)      zero-padded input image (VMEM, whole image)
    w_ref  : (Cout*Cin*KH*KW,)     BN-scale-folded weights (SMEM, fetched once)
    b_ref  : (Cout,)               folded BN bias          (SMEM, fetched once)
    o_ref  : (1, Cout, TILE_H, Wo) output row strip
    """
    strip = pl.program_id(1)
    wo = o_ref.shape[3]

    # Rows of the padded input needed by this output strip: static size,
    # 8-sublane-aligned dynamic start.
    rows = (tile_h - 1) * stride + kh
    row0 = pl.multiple_of(strip * (tile_h * stride), tile_h * stride)
    xs = xp_ref[0, :, pl.ds(row0, rows), :].astype(jnp.float32)  # (Cin, rows, Wp)

    # Pre-slice the KH*KW shifted patches once per input channel; they are
    # reused by every output channel.
    h_last = (tile_h - 1) * stride
    w_last = (wo - 1) * stride
    patches = []
    for ci in range(cin):
        xc = xs[ci]                                   # (rows, Wp)
        taps = []
        for i in range(kh):
            for j in range(kw):
                if stride == 1:
                    taps.append(xc[i:i + tile_h, j:j + wo])
                else:
                    taps.append(xc[i:i + h_last + 1:stride,
                                   j:j + w_last + 1:stride])
        patches.append(taps)

    for co in range(cout):
        acc = jnp.zeros((tile_h, wo), jnp.float32)
        for ci in range(cin):
            base = (co * cin + ci) * kh * kw
            for t in range(kh * kw):
                acc = acc + w_ref[base + t] * patches[ci][t]
        z = acc + b_ref[co]
        if apply_act:                                  # SiLU: z * sigmoid(z)
            z = z * (1.0 / (1.0 + jnp.exp(-z)))
        o_ref[0, co, :, :] = z.astype(o_ref.dtype)


def conv_bn_silu(x, weight, gamma, beta, running_mean, running_var, *,
                 stride=1, padding=None, eps=1e-5, act=True, tile_h=8):
    """Forward of ultralytics Conv (g=1, d=1): SiLU(BN(Conv2d(x))), eval-mode BN.

    x      : (N, Cin, H, W) float32
    weight : (Cout, Cin, KH, KW) float32   (Conv2d weight, bias=False)
    gamma/beta/running_mean/running_var : (Cout,) BatchNorm2d params.
    """
    N, Cin, H, W = x.shape
    Cout, Cin_w, KH, KW = weight.shape
    assert Cin_w == Cin, "grouped conv not supported"
    if padding is None:
        padding = KH // 2  # autopad (square kernel, dilation=1)

    Ho = (H + 2 * padding - KH) // stride + 1
    Wo = (W + 2 * padding - KW) // stride + 1

    # Fold eval-mode BN into the conv:  y = conv(x, w * scale) + bias.
    scale = (gamma / jnp.sqrt(running_var + eps)).astype(jnp.float32)
    bias = (beta - running_mean * scale).astype(jnp.float32)
    w_flat = (weight.astype(jnp.float32) * scale[:, None, None, None]).reshape(-1)

    # Zero padding of the activation (see TODO at top of file).
    xp = jnp.pad(x, ((0, 0), (0, 0), (padding, padding), (padding, padding)))
    Hp, Wp = H + 2 * padding, W + 2 * padding

    # Output row-strip size: multiple of 8 sublanes, dividing Ho (else whole Ho).
    if tile_h <= 0 or tile_h > Ho or (Ho % tile_h) != 0:
        tile_h = Ho
    n_strips = Ho // tile_h

    kernel = functools.partial(
        _conv_bn_act_kernel, stride=stride, kh=KH, kw=KW,
        cin=Cin, cout=Cout, tile_h=tile_h, apply_act=act)

    return pl.pallas_call(
        kernel,
        out_shape=jax.ShapeDtypeStruct((N, Cout, Ho, Wo), x.dtype),
        grid=(N, n_strips),
        in_specs=[
            # Padded image: indexed by batch only -> DMA'd once per image and
            # revisited across row strips.
            pl.BlockSpec((1, Cin, Hp, Wp), lambda n, s: (n, 0, 0, 0)),
            # Tiny folded weights / bias: scalar-indexed, live in SMEM, not
            # re-fetched per grid step.
            pl.BlockSpec(memory_space=pltpu.MemorySpace.SMEM),
            pl.BlockSpec(memory_space=pltpu.MemorySpace.SMEM),
        ],
        out_specs=pl.BlockSpec((1, Cout, tile_h, Wo), lambda n, s: (n, 0, s, 0)),
        compiler_params=pltpu.CompilerParams(
            dimension_semantics=("parallel", "parallel"),
            vmem_limit_bytes=32 * 1024 * 1024,
        ),
    )(xp, w_flat, bias)


def _reference(x, weight, gamma, beta, running_mean, running_var, *,
               stride, padding, eps=1e-5):
    """Pure-JAX reference: lax conv + eval-mode BN + SiLU."""
    y = jax.lax.conv_general_dilated(
        x, weight,
        window_strides=(stride, stride),
        padding=((padding, padding), (padding, padding)),
        dimension_numbers=("NCHW", "OIHW", "NCHW"),
    )
    scale = (gamma / jnp.sqrt(running_var + eps)).reshape(1, -1, 1, 1)
    bias = (beta - running_mean * gamma / jnp.sqrt(running_var + eps)).reshape(1, -1, 1, 1)
    return jax.nn.silu(y * scale + bias)


if __name__ == "__main__":
    # Conv(c1=4, c2=8, k=3, s=1) -> autopad=1, BN, SiLU.
    N, c1, c2, H, W = 2, 4, 8, 16, 16
    k, s = 3, 1

    key = jax.random.PRNGKey(0)
    kx, kw_, kg, kb, km, kv = jax.random.split(key, 6)

    x = jax.random.normal(kx, (N, c1, H, W), jnp.float32)
    weight = jax.random.normal(kw_, (c2, c1, k, k), jnp.float32) * 0.1
    gamma = 1.0 + 0.1 * jax.random.normal(kg, (c2,), jnp.float32)
    beta = 0.1 * jax.random.normal(kb, (c2,), jnp.float32)
    running_mean = 0.1 * jax.random.normal(km, (c2,), jnp.float32)
    running_var = 1.0 + 0.1 * jax.random.uniform(kv, (c2,), jnp.float32)

    out = conv_bn_silu(x, weight, gamma, beta, running_mean, running_var, stride=s)
    out = jax.block_until_ready(out)
    ref = _reference(x, weight, gamma, beta, running_mean, running_var,
                     stride=s, padding=k // 2)
    assert out.shape == ref.shape == (N, c2, H, W)
    assert jnp.allclose(out, ref, atol=1e-4, rtol=1e-4)

    # Pointwise variant: Conv(c1=4, c2=4, k=1, s=1) -> autopad=0.
    w1 = jax.random.normal(kw_, (4, c1, 1, 1), jnp.float32) * 0.1
    out1 = conv_bn_silu(x, w1, gamma[:4], beta[:4],
                        running_mean[:4], running_var[:4], stride=1)
    out1 = jax.block_until_ready(out1)
    ref1 = _reference(x, w1, gamma[:4], beta[:4],
                      running_mean[:4], running_var[:4], stride=1, padding=0)
    assert out1.shape == ref1.shape == (N, 4, H, W)
    assert jnp.allclose(out1, ref1, atol=1e-4, rtol=1e-4)

    print("KERNEL_OK")
</pallas_src>

<mosaic_0001>
module attributes {stable_mosaic.version = 11 : i64} {
  func.func @_conv_bn_act_kernel(%arg0: i32, %arg1: i32, %arg2: memref<1x4x18x18xf32, #tpu.memory_space<vmem>>, %arg3: memref<288xf32, #tpu.memory_space<smem>>, %arg4: memref<8xf32, #tpu.memory_space<smem>>, %arg5: memref<1x8x8x16xf32, #tpu.memory_space<vmem>>) attributes {dimension_semantics = [#tpu.dimension_semantics<parallel>, #tpu.dimension_semantics<parallel>], iteration_bounds = array<i64: 2, 2>, scalar_prefetch = 0 : i64, scratch_operands = 0 : i64, tpu.core_type = #tpu.core_type<tc>, window_params = [{transform_indices = @transform_0, window_bounds = array<i64: 1, 4, 18, 18>}, {transform_indices = @transform_1, window_bounds = array<i64: 288>}, {transform_indices = @transform_2, window_bounds = array<i64: 8>}, {transform_indices = @transform_3, window_bounds = array<i64: 1, 8, 8, 16>}]} {
    %c8_i32 = arith.constant 8 : i32
    %0 = arith.muli %arg1, %c8_i32 : i32
    %1 = tpu.assume_multiple %0, 8 : i32
    %c0 = arith.constant 0 : index
    %c0_0 = arith.constant 0 : index
    %2 = arith.index_cast %1 : i32 to index
    %c0_1 = arith.constant 0 : index
    %3 = vector.load %arg2[%c0, %c0_0, %2, %c0_1] : memref<1x4x18x18xf32, #tpu.memory_space<vmem>>, vector<1x4x10x18xf32>
    %4 = vector.shape_cast %3 : vector<1x4x10x18xf32> to vector<4x10x18xf32>
    %5 = vector.extract_strided_slice %4 {offsets = [0, 0, 0], sizes = [1, 10, 18], strides = [1, 1, 1]} : vector<4x10x18xf32> to vector<1x10x18xf32>
    %6 = vector.shape_cast %5 : vector<1x10x18xf32> to vector<10x18xf32>
    %7 = vector.extract_strided_slice %6 {offsets = [0, 0], sizes = [8, 16], strides = [1, 1]} : vector<10x18xf32> to vector<8x16xf32>
    %8 = vector.extract_strided_slice %6 {offsets = [0, 1], sizes = [8, 16], strides = [1, 1]} : vector<10x18xf32> to vector<8x16xf32>
    %9 = vector.extract_strided_slice %6 {offsets = [0, 2], sizes = [8, 16], strides = [1, 1]} : vector<10x18xf32> to vector<8x16xf32>
    %10 = vector.extract_strided_slice %6 {offsets = [1, 0], sizes = [8, 16], strides = [1, 1]} : vector<10x18xf32> to vector<8x16xf32>
    %11 = vector.extract_strided_slice %6 {offsets = [1, 1], sizes = [8, 16], strides = [1, 1]} : vector<10x18xf32> to vector<8x16xf32>
    %12 = vector.extract_strided_slice %6 {offsets = [1, 2], sizes = [8, 16], strides = [1, 1]} : vector<10x18xf32> to vector<8x16xf32>
    %13 = vector.extract_strided_slice %6 {offsets = [2, 0], sizes = [8, 16], strides = [1, 1]} : vector<10x18xf32> to vector<8x16xf32>
    %14 = vector.extract_strided_slice %6 {offsets = [2, 1], sizes = [8, 16], strides = [1, 1]} : vector<10x18xf32> to vector<8x16xf32>
    %15 = vector.extract_strided_slice %6 {offsets = [2, 2], sizes = [8, 16], strides = [1, 1]} : vector<10x18xf32> to vector<8x16xf32>
    %16 = vector.extract_strided_slice %4 {offsets = [1, 0, 0], sizes = [1, 10, 18], strides = [1, 1, 1]} : vector<4x10x18xf32> to vector<1x10x18xf32>
    %17 = vector.shape_cast %16 : vector<1x10x18xf32> to vector<10x18xf32>
    %18 = vector.extract_strided_slice %17 {offsets = [0, 0], sizes = [8, 16], strides = [1, 1]} : vector<10x18xf32> to vector<8x16xf32>
    %19 = vector.extract_strided_slice %17 {offsets = [0, 1], sizes = [8, 16], strides = [1, 1]} : vector<10x18xf32> to vector<8x16xf32>
    %20 = vector.extract_strided_slice %17 {offsets = [0, 2], sizes = [8, 16], strides = [1, 1]} : vector<10x18xf32> to vector<8x16xf32>
    %21 = vector.extract_strided_slice %17 {offsets = [1, 0], sizes = [8, 16], strides = [1, 1]} : vector<10x18xf32> to vector<8x16xf32>
    %22 = vector.extract_strided_slice %17 {offsets = [1, 1], sizes = [8, 16], strides = [1, 1]} : vector<10x18xf32> to vector<8x16xf32>
    %23 = vector.extract_strided_slice %17 {offsets = [1, 2], sizes = [8, 16], strides = [1, 1]} : vector<10x18xf32> to vector<8x16xf32>
    %24 = vector.extract_strided_slice %17 {offsets = [2, 0], sizes = [8, 16], strides = [1, 1]} : vector<10x18xf32> to vector<8x16xf32>
    %25 = vector.extract_strided_slice %17 {offsets = [2, 1], sizes = [8, 16], strides = [1, 1]} : vector<10x18xf32> to vector<8x16xf32>
    %26 = vector.extract_strided_slice %17 {offsets = [2, 2], sizes = [8, 16], strides = [1, 1]} : vector<10x18xf32> to vector<8x16xf32>
    %27 = vector.extract_strided_slice %4 {offsets = [2, 0, 0], sizes = [1, 10, 18], strides = [1, 1, 1]} : vector<4x10x18xf32> to vector<1x10x18xf32>
    %28 = vector.shape_cast %27 : vector<1x10x18xf32> to vector<10x18xf32>
    %29 = vector.extract_strided_slice %28 {offsets = [0, 0], sizes = [8, 16], strides = [1, 1]} : vector<10x18xf32> to vector<8x16xf32>
    %30 = vector.extract_strided_slice %28 {offsets = [0, 1], sizes = [8, 16], strides = [1, 1]} : vector<10x18xf32> to vector<8x16xf32>
    %31 = vector.extract_strided_slice %28 {offsets = [0, 2], sizes = [8, 16], strides = [1, 1]} : vector<10x18xf32> to vector<8x16xf32>
    %32 = vector.extract_strided_slice %28 {offsets = [1, 0], sizes = [8, 16], strides = [1, 1]} : vector<10x18xf32> to vector<8x16xf32>
    %33 = vector.extract_strided_slice %28 {offsets = [1, 1], sizes = [8, 16], strides = [1, 1]} : vector<10x18xf32> to vector<8x16xf32>
    %34 = vector.extract_strided_slice %28 {offsets = [1, 2], sizes = [8, 16], strides = [1, 1]} : vector<10x18xf32> to vector<8x16xf32>
    %35 = vector.extract_strided_slice %28 {offsets = [2, 0], sizes = [8, 16], strides = [1, 1]} : vector<10x18xf32> to vector<8x16xf32>
    %36 = vector.extract_strided_slice %28 {offsets = [2, 1], sizes = [8, 16], strides = [1, 1]} : vector<10x18xf32> to vector<8x16xf32>
    %37 = vector.extract_strided_slice %28 {offsets = [2, 2], sizes = [8, 16], strides = [1, 1]} : vector<10x18xf32> to vector<8x16xf32>
    %38 = vector.extract_strided_slice %4 {offsets = [3, 0, 0], sizes = [1, 10, 18], strides = [1, 1, 1]} : vector<4x10x18xf32> to vector<1x10x18xf32>
    %39 = vector.shape_cast %38 : vector<1x10x18xf32> to vector<10x18xf32>
    %40 = vector.extract_strided_slice %39 {offsets = [0, 0], sizes = [8, 16], strides = [1, 1]} : vector<10x18xf32> to vector<8x16xf32>
    %41 = vector.extract_strided_slice %39 {offsets = [0, 1], sizes = [8, 16], strides = [1, 1]} : vector<10x18xf32> to vector<8x16xf32>
    %42 = vector.extract_strided_slice %39 {offsets = [0, 2], sizes = [8, 16], strides = [1, 1]} : vector<10x18xf32> to vector<8x16xf32>
    %43 = vector.extract_strided_slice %39 {offsets = [1, 0], sizes = [8, 16], strides = [1, 1]} : vector<10x18xf32> to vector<8x16xf32>
    %44 = vector.extract_strided_slice %39 {offsets = [1, 1], sizes = [8, 16], strides = [1, 1]} : vector<10x18xf32> to vector<8x16xf32>
    %45 = vector.extract_strided_slice %39 {offsets = [1, 2], sizes = [8, 16], strides = [1, 1]} : vector<10x18xf32> to vector<8x16xf32>
    %46 = vector.extract_strided_slice %39 {offsets = [2, 0], sizes = [8, 16], strides = [1, 1]} : vector<10x18xf32> to vector<8x16xf32>
    %47 = vector.extract_strided_slice %39 {offsets = [2, 1], sizes = [8, 16], strides = [1, 1]} : vector<10x18xf32> to vector<8x16xf32>
    %48 = vector.extract_strided_slice %39 {offsets = [2, 2], sizes = [8, 16], strides = [1, 1]} : vector<10x18xf32> to vector<8x16xf32>
    %cst = arith.constant 0.000000e+00 : f32
    %49 = vector.broadcast %cst : f32 to vector<8x16xf32>
    %c0_2 = arith.constant 0 : index
    %50 = memref.load %arg3[%c0_2] : memref<288xf32, #tpu.memory_space<smem>>
    %51 = vector.broadcast %50 : f32 to vector<8x16xf32>
    %52 = arith.mulf %51, %7 : vector<8x16xf32>
    %53 = arith.addf %49, %52 : vector<8x16xf32>
    %c1 = arith.constant 1 : index
    %54 = memref.load %arg3[%c1] : memref<288xf32, #tpu.memory_space<smem>>
    %55 = vector.broadcast %54 : f32 to vector<8x16xf32>
    %56 = arith.mulf %55, %8 : vector<8x16xf32>
    %57 = arith.addf %53, %56 : vector<8x16xf32>
    %c2 = arith.constant 2 : index
    %58 = memref.load %arg3[%c2] : memref<288xf32, #tpu.memory_space<smem>>
    %59 = vector.broadcast %58 : f32 to vector<8x16xf32>
    %60 = arith.mulf %59, %9 : vector<8x16xf32>
    %61 = arith.addf %57, %60 : vector<8x16xf32>
    %c3 = arith.constant 3 : index
    %62 = memref.load %arg3[%c3] : memref<288xf32, #tpu.memory_space<smem>>
    %63 = vector.broadcast %62 : f32 to vector<8x16xf32>
    %64 = arith.mulf %63, %10 : vector<8x16xf32>
    %65 = arith.addf %61, %64 : vector<8x16xf32>
    %c4 = arith.constant 4 : index
    %66 = memref.load %arg3[%c4] : memref<288xf32, #tpu.memory_space<smem>>
    %67 = vector.broadcast %66 : f32 to vector<8x16xf32>
    %68 = arith.mulf %67, %11 : vector<8x16xf32>
    %69 = arith.addf %65, %68 : vector<8x16xf32>
    %c5 = arith.constant 5 : index
    %70 = memref.load %arg3[%c5] : memref<288xf32, #tpu.memory_space<smem>>
    %71 = vector.broadcast %70 : f32 to vector<8x16xf32>
    %72 = arith.mulf %71, %12 : vector<8x16xf32>
    %73 = arith.addf %69, %72 : vector<8x16xf32>
    %c6 = arith.constant 6 : index
    %74 = memref.load %arg3[%c6] : memref<288xf32, #tpu.memory_space<smem>>
    %75 = vector.broadcast %74 : f32 to vector<8x16xf32>
    %76 = arith.mulf %75, %13 : vector<8x16xf32>
    %77 = arith.addf %73, %76 : vector<8x16xf32>
    %c7 = arith.constant 7 : index
    %78 = memref.load %arg3[%c7] : memref<288xf32, #tpu.memory_space<smem>>
    %79 = vector.broadcast %78 : f32 to vector<8x16xf32>
    %80 = arith.mulf %79, %14 : vector<8x16xf32>
    %81 = arith.addf %77, %80 : vector<8x16xf32>
    %c8 = arith.constant 8 : index
    %82 = memref.load %arg3[%c8] : memref<288xf32, #tpu.memory_space<smem>>
    %83 = vector.broadcast %82 : f32 to vector<8x16xf32>
    %84 = arith.mulf %83, %15 : vector<8x16xf32>
    %85 = arith.addf %81, %84 : vector<8x16xf32>
    %c9 = arith.constant 9 : index
    %86 = memref.load %arg3[%c9] : memref<288xf32, #tpu.memory_space<smem>>
    %87 = vector.broadcast %86 : f32 to vector<8x16xf32>
    %88 = arith.mulf %87, %18 : vector<8x16xf32>
    %89 = arith.addf %85, %88 : vector<8x16xf32>
    %c10 = arith.constant 10 : index
    %90 = memref.load %arg3[%c10] : memref<288xf32, #tpu.memory_space<smem>>
    %91 = vector.broadcast %90 : f32 to vector<8x16xf32>
    %92 = arith.mulf %91, %19 : vector<8x16xf32>
    %93 = arith.addf %89, %92 : vector<8x16xf32>
    %c11 = arith.constant 11 : index
    %94 = memref.load %arg3[%c11] : memref<288xf32, #tpu.memory_space<smem>>
    %95 = vector.broadcast %94 : f32 to vector<8x16xf32>
    %96 = arith.mulf %95, %20 : vector<8x16xf32>
    %97 = arith.addf %93, %96 : vector<8x16xf32>
    %c12 = arith.constant 12 : index
    %98 = memref.load %arg3[%c12] : memref<288xf32, #tpu.memory_space<smem>>
    %99 = vector.broadcast %98 : f32 to vector<8x16xf32>
    %100 = arith.mulf %99, %21 : vector<8x16xf32>
    %101 = arith.addf %97, %100 : vector<8x16xf32>
    %c13 = arith.constant 13 : index
    %102 = memref.load %arg3[%c13] : memref<288xf32, #tpu.memory_space<smem>>
    %103 = vector.broadcast %102 : f32 to vector<8x16xf32>
    %104 = arith.mulf %103, %22 : vector<8x16xf32>
    %105 = arith.addf %101, %104 : vector<8x16xf32>
    %c14 = arith.constant 14 : index
    %106 = memref.load %arg3[%c14] : memref<288xf32, #tpu.memory_space<smem>>
    %107 = vector.broadcast %106 : f32 to vector<8x16xf32>
    %108 = arith.mulf %107, %23 : vector<8x16xf32>
    %109 = arith.addf %105, %108 : vector<8x16xf32>
    %c15 = arith.constant 15 : index
    %110 = memref.load %arg3[%c15] : memref<288xf32, #tpu.memory_space<smem>>
    %111 = vector.broadcast %110 : f32 to vector<8x16xf32>
    %112 = arith.mulf %111, %24 : vector<8x16xf32>
    %113 = arith.addf %109, %112 : vector<8x16xf32>
    %c16 = arith.constant 16 : index
    %114 = memref.load %arg3[%c16] : memref<288xf32, #tpu.memory_space<smem>>
    %115 = vector.broadcast %114 : f32 to vector<8x16xf32>
    %116 = arith.mulf %115, %25 : vector<8x16xf32>
    %117 = arith.addf %113, %116 : vector<8x16xf32>
    %c17 = arith.constant 17 : index
    %118 = memref.load %arg3[%c17] : memref<288xf32, #tpu.memory_space<smem>>
    %119 = vector.broadcast %118 : f32 to vector<8x16xf32>
    %120 = arith.mulf %119, %26 : vector<8x16xf32>
    %121 = arith.addf %117, %120 : vector<8x16xf32>
    %c18 = arith.constant 18 : index
    %122 = memref.load %arg3[%c18] : memref<288xf32, #tpu.memory_space<smem>>
    %123 = vector.broadcast %122 : f32 to vector<8x16xf32>
    %124 = arith.mulf %123, %29 : vector<8x16xf32>
    %125 = arith.addf %121, %124 : vector<8x16xf32>
    %c19 = arith.constant 19 : index
    %126 = memref.load %arg3[%c19] : memref<288xf32, #tpu.memory_space<smem>>
    %127 = vector.broadcast %126 : f32 to vector<8x16xf32>
    %128 = arith.mulf %127, %30 : vector<8x16xf32>
    %129 = arith.addf %125, %128 : vector<8x16xf32>
    %c20 = arith.constant 20 : index
    %130 = memref.load %arg3[%c20] : memref<288xf32, #tpu.memory_space<smem>>
    %131 = vector.broadcast %130 : f32 to vector<8x16xf32>
    %132 = arith.mulf %131, %31 : vector<8x16xf32>
    %133 = arith.addf %129, %132 : vector<8x16xf32>
    %c21 = arith.constant 21 : index
    %134 = memref.load %arg3[%c21] : memref<288xf32, #tpu.memory_space<smem>>
    %135 = vector.broadcast %134 : f32 to vector<8x16xf32>
    %136 = arith.mulf %135, %32 : vector<8x16xf32>
    %137 = arith.addf %133, %136 : vector<8x16xf32>
    %c22 = arith.constant 22 : index
    %138 = memref.load %arg3[%c22] : memref<288xf32, #tpu.memory_space<smem>>
    %139 = vector.broadcast %138 : f32 to vector<8x16xf32>
    %140 = arith.mulf %139, %33 : vector<8x16xf32>
    %141 = arith.addf %137, %140 : vector<8x16xf32>
    %c23 = arith.constant 23 : index
    %142 = memref.load %arg3[%c23] : memref<288xf32, #tpu.memory_space<smem>>
    %143 = vector.broadcast %142 : f32 to vector<8x16xf32>
    %144 = arith.mulf %143, %34 : vector<8x16xf32>
    %145 = arith.addf %141, %144 : vector<8x16xf32>
    %c24 = arith.constant 24 : index
    %146 = memref.load %arg3[%c24] : memref<288xf32, #tpu.memory_space<smem>>
    %147 = vector.broadcast %146 : f32 to vector<8x16xf32>
    %148 = arith.mulf %147, %35 : vector<8x16xf32>
    %149 = arith.addf %145, %148 : vector<8x16xf32>
    %c25 = arith.constant 25 : index
    %150 = memref.load %arg3[%c25] : memref<288xf32, #tpu.memory_space<smem>>
    %151 = vector.broadcast %150 : f32 to vector<8x16xf32>
    %152 = arith.mulf %151, %36 : vector<8x16xf32>
    %153 = arith.addf %149, %152 : vector<8x16xf32>
    %c26 = arith.constant 26 : index
    %154 = memref.load %arg3[%c26] : memref<288xf32, #tpu.memory_space<smem>>
    %155 = vector.broadcast %154 : f32 to vector<8x16xf32>
    %156 = arith.mulf %155, %37 : vector<8x16xf32>
    %157 = arith.addf %153, %156 : vector<8x16xf32>
    %c27 = arith.constant 27 : index
    %158 = memref.load %arg3[%c27] : memref<288xf32, #tpu.memory_space<smem>>
    %159 = vector.broadcast %158 : f32 to vector<8x16xf32>
    %160 = arith.mulf %159, %40 : vector<8x16xf32>
    %161 = arith.addf %157, %160 : vector<8x16xf32>
    %c28 = arith.constant 28 : index
    %162 = memref.load %arg3[%c28] : memref<288xf32, #tpu.memory_space<smem>>
    %163 = vector.broadcast %162 : f32 to vector<8x16xf32>
    %164 = arith.mulf %163, %41 : vector<8x16xf32>
    %165 = arith.addf %161, %164 : vector<8x16xf32>
    %c29 = arith.constant 29 : index
    %166 = memref.load %arg3[%c29] : memref<288xf32, #tpu.memory_space<smem>>
    %167 = vector.broadcast %166 : f32 to vector<8x16xf32>
    %168 = arith.mulf %167, %42 : vector<8x16xf32>
    %169 = arith.addf %165, %168 : vector<8x16xf32>
    %c30 = arith.constant 30 : index
    %170 = memref.load %arg3[%c30] : memref<288xf32, #tpu.memory_space<smem>>
    %171 = vector.broadcast %170 : f32 to vector<8x16xf32>
    %172 = arith.mulf %171, %43 : vector<8x16xf32>
    %173 = arith.addf %169, %172 : vector<8x16xf32>
    %c31 = arith.constant 31 : index
    %174 = memref.load %arg3[%c31] : memref<288xf32, #tpu.memory_space<smem>>
    %175 = vector.broadcast %174 : f32 to vector<8x16xf32>
    %176 = arith.mulf %175, %44 : vector<8x16xf32>
    %177 = arith.addf %173, %176 : vector<8x16xf32>
    %c32 = arith.constant 32 : index
    %178 = memref.load %arg3[%c32] : memref<288xf32, #tpu.memory_space<smem>>
    %179 = vector.broadcast %178 : f32 to vector<8x16xf32>
    %180 = arith.mulf %179, %45 : vector<8x16xf32>
    %181 = arith.addf %177, %180 : vector<8x16xf32>
    %c33 = arith.constant 33 : index
    %182 = memref.load %arg3[%c33] : memref<288xf32, #tpu.memory_space<smem>>
    %183 = vector.broadcast %182 : f32 to vector<8x16xf32>
    %184 = arith.mulf %183, %46 : vector<8x16xf32>
    %185 = arith.addf %181, %184 : vector<8x16xf32>
    %c34 = arith.constant 34 : index
    %186 = memref.load %arg3[%c34] : memref<288xf32, #tpu.memory_space<smem>>
    %187 = vector.broadcast %186 : f32 to vector<8x16xf32>
    %188 = arith.mulf %187, %47 : vector<8x16xf32>
    %189 = arith.addf %185, %188 : vector<8x16xf32>
    %c35 = arith.constant 35 : index
    %190 = memref.load %arg3[%c35] : memref<288xf32, #tpu.memory_space<smem>>
    %191 = vector.broadcast %190 : f32 to vector<8x16xf32>
    %192 = arith.mulf %191, %48 : vector<8x16xf32>
    %193 = arith.addf %189, %192 : vector<8x16xf32>
    %c0_3 = arith.constant 0 : index
    %194 = memref.load %arg4[%c0_3] : memref<8xf32, #tpu.memory_space<smem>>
    %195 = vector.broadcast %194 : f32 to vector<8x16xf32>
    %196 = arith.addf %193, %195 : vector<8x16xf32>
    %cst_4 = arith.constant 0.000000e+00 : f32
    %197 = vector.broadcast %cst_4 : f32 to vector<8x16xf32>
    %198 = arith.subf %197, %196 : vector<8x16xf32>
    %199 = math.exp %198 : vector<8x16xf32>
    %cst_5 = arith.constant 1.000000e+00 : f32
    %200 = vector.broadcast %cst_5 : f32 to vector<8x16xf32>
    %201 = arith.addf %200, %199 : vector<8x16xf32>
    %cst_6 = arith.constant 1.000000e+00 : f32
    %202 = vector.broadcast %cst_6 : f32 to vector<8x16xf32>
    %203 = arith.divf %202, %201 : vector<8x16xf32>
    %204 = arith.mulf %196, %203 : vector<8x16xf32>
    %c0_7 = arith.constant 0 : index
    %c0_8 = arith.constant 0 : index
    %c0_9 = arith.constant 0 : index
    %c0_10 = arith.constant 0 : index
    %205 = vector.load %arg5[%c0_7, %c0_8, %c0_9, %c0_10] : memref<1x8x8x16xf32, #tpu.memory_space<vmem>>, vector<1x1x8x16xf32>
    %206 = vector.shape_cast %205 : vector<1x1x8x16xf32> to vector<8x16xf32>
    %207 = vector.shape_cast %204 : vector<8x16xf32> to vector<1x1x8x16xf32>
    tpu.vector_store %arg5[%c0_7, %c0_8, %c0_9, %c0_10], %207 {strides = array<i32>} : memref<1x8x8x16xf32, #tpu.memory_space<vmem>>, vector<1x1x8x16xf32>,
    %cst_11 = arith.constant 0.000000e+00 : f32
    %208 = vector.broadcast %cst_11 : f32 to vector<8x16xf32>
    %c36 = arith.constant 36 : index
    %209 = memref.load %arg3[%c36] : memref<288xf32, #tpu.memory_space<smem>>
    %210 = vector.broadcast %209 : f32 to vector<8x16xf32>
    %211 = arith.mulf %210, %7 : vector<8x16xf32>
    %212 = arith.addf %208, %211 : vector<8x16xf32>
    %c37 = arith.constant 37 : index
    %213 = memref.load %arg3[%c37] : memref<288xf32, #tpu.memory_space<smem>>
    %214 = vector.broadcast %213 : f32 to vector<8x16xf32>
    %215 = arith.mulf %214, %8 : vector<8x16xf32>
    %216 = arith.addf %212, %215 : vector<8x16xf32>
    %c38 = arith.constant 38 : index
    %217 = memref.load %arg3[%c38] : memref<288xf32, #tpu.memory_space<smem>>
    %218 = vector.broadcast %217 : f32 to vector<8x16xf32>
    %219 = arith.mulf %218, %9 : vector<8x16xf32>
    %220 = arith.addf %216, %219 : vector<8x16xf32>
    %c39 = arith.constant 39 : index
    %221 = memref.load %arg3[%c39] : memref<288xf32, #tpu.memory_space<smem>>
    %222 = vector.broadcast %221 : f32 to vector<8x16xf32>
    %223 = arith.mulf %222, %10 : vector<8x16xf32>
    %224 = arith.addf %220, %223 : vector<8x16xf32>
    %c40 = arith.constant 40 : index
    %225 = memref.load %arg3[%c40] : memref<288xf32, #tpu.memory_space<smem>>
    %226 = vector.broadcast %225 : f32 to vector<8x16xf32>
    %227 = arith.mulf %226, %11 : vector<8x16xf32>
    %228 = arith.addf %224, %227 : vector<8x16xf32>
    %c41 = arith.constant 41 : index
    %229 = memref.load %arg3[%c41] : memref<288xf32, #tpu.memory_space<smem>>
    %230 = vector.broadcast %229 : f32 to vector<8x16xf32>
    %231 = arith.mulf %230, %12 : vector<8x16xf32>
    %232 = arith.addf %228, %231 : vector<8x16xf32>
    %c42 = arith.constant 42 : index
    %233 = memref.load %arg3[%c42] : memref<288xf32, #tpu.memory_space<smem>>
    %234 = vector.broadcast %233 : f32 to vector<8x16xf32>
    %235 = arith.mulf %234, %13 : vector<8x16xf32>
    %236 = arith.addf %232, %235 : vector<8x16xf32>
    %c43 = arith.constant 43 : index
    %237 = memref.load %arg3[%c43] : memref<288xf32, #tpu.memory_space<smem>>
    %238 = vector.broadcast %237 : f32 to vector<8x16xf32>
    %239 = arith.mulf %238, %14 : vector<8x16xf32>
    %240 = arith.addf %236, %239 : vector<8x16xf32>
    %c44 = arith.constant 44 : index
    %241 = memref.load %arg3[%c44] : memref<288xf32, #tpu.memory_space<smem>>
    %242 = vector.broadcast %241 : f32 to vector<8x16xf32>
    %243 = arith.mulf %242, %15 : vector<8x16xf32>
    %244 = arith.addf %240, %243 : vector<8x16xf32>
    %c45 = arith.constant 45 : index
    %245 = memref.load %arg3[%c45] : memref<288xf32, #tpu.memory_space<smem>>
    %246 = vector.broadcast %245 : f32 to vector<8x16xf32>
    %247 = arith.mulf %246, %18 : vector<8x16xf32>
    %248 = arith.addf %244, %247 : vector<8x16xf32>
    %c46 = arith.constant 46 : index
    %249 = memref.load %arg3[%c46] : memref<288xf32, #tpu.memory_space<smem>>
    %250 = vector.broadcast %249 : f32 to vector<8x16xf32>
    %251 = arith.mulf %250, %19 : vector<8x16xf32>
    %252 = arith.addf %248, %251 : vector<8x16xf32>
    %c47 = arith.constant 47 : index
    %253 = memref.load %arg3[%c47] : memref<288xf32, #tpu.memory_space<smem>>
    %254 = vector.broadcast %253 : f32 to vector<8x16xf32>
    %255 = arith.mulf %254, %20 : vector<8x16xf32>
    %256 = arith.addf %252, %255 : vector<8x16xf32>
    %c48 = arith.constant 48 : index
    %257 = memref.load %arg3[%c48] : memref<288xf32, #tpu.memory_space<smem>>
    %258 = vector.broadcast %257 : f32 to vector<8x16xf32>
    %259 = arith.mulf %258, %21 : vector<8x16xf32>
    %260 = arith.addf %256, %259 : vector<8x16xf32>
    %c49 = arith.constant 49 : index
    %261 = memref.load %arg3[%c49] : memref<288xf32, #tpu.memory_space<smem>>
    %262 = vector.broadcast %261 : f32 to vector<8x16xf32>
    %263 = arith.mulf %262, %22 : vector<8x16xf32>
    %264 = arith.addf %260, %263 : vector<8x16xf32>
    %c50 = arith.constant 50 : index
    %265 = memref.load %arg3[%c50] : memref<288xf32, #tpu.memory_space<smem>>
    %266 = vector.broadcast %265 : f32 to vector<8x16xf32>
    %267 = arith.mulf %266, %23 : vector<8x16xf32>
    %268 = arith.addf %264, %267 : vector<8x16xf32>
    %c51 = arith.constant 51 : index
    %269 = memref.load %arg3[%c51] : memref<288xf32, #tpu.memory_space<smem>>
    %270 = vector.broadcast %269 : f32 to vector<8x16xf32>
    %271 = arith.mulf %270, %24 : vector<8x16xf32>
    %272 = arith.addf %268, %271 : vector<8x16xf32>
    %c52 = arith.constant 52 : index
    %273 = memref.load %arg3[%c52] : memref<288xf32, #tpu.memory_space<smem>>
    %274 = vector.broadcast %273 : f32 to vector<8x16xf32>
    %275 = arith.mulf %274, %25 : vector<8x16xf32>
    %276 = arith.addf %272, %275 : vector<8x16xf32>
    %c53 = arith.constant 53 : index
    %277 = memref.load %arg3[%c53] : memref<288xf32, #tpu.memory_space<smem>>
    %278 = vector.broadcast %277 : f32 to vector<8x16xf32>
    %279 = arith.mulf %278, %26 : vector<8x16xf32>
    %280 = arith.addf %276, %279 : vector<8x16xf32>
    %c54 = arith.constant 54 : index
    %281 = memref.load %arg3[%c54] : memref<288xf32, #tpu.memory_space<smem>>
    %282 = vector.broadcast %281 : f32 to vector<8x16xf32>
    %283 = arith.mulf %282, %29 : vector<8x16xf32>
    %284 = arith.addf %280, %283 : vector<8x16xf32>
    %c55 = arith.constant 55 : index
    %285 = memref.load %arg3[%c55] : memref<288xf32, #tpu.memory_space<smem>>
    %286 = vector.broadcast %285 : f32 to vector<8x16xf32>
    %287 = arith.mulf %286, %30 : vector<8x16xf32>
    %288 = arith.addf %284, %287 : vector<8x16xf32>
    %c56 = arith.constant 56 : index
    %289 = memref.load %arg3[%c56] : memref<288xf32, #tpu.memory_space<smem>>
    %290 = vector.broadcast %289 : f32 to vector<8x16xf32>
    %291 = arith.mulf %290, %31 : vector<8x16xf32>
    %292 = arith.addf %288, %291 : vector<8x16xf32>
    %c57 = arith.constant 57 : index
    %293 = memref.load %arg3[%c57] : memref<288xf32, #tpu.memory_space<smem>>
    %294 = vector.broadcast %293 : f32 to vector<8x16xf32>
    %295 = arith.mulf %294, %32 : vector<8x16xf32>
    %296 = arith.addf %292, %295 : vector<8x16xf32>
    %c58 = arith.constant 58 : index
    %297 = memref.load %arg3[%c58] : memref<288xf32, #tpu.memory_space<smem>>
    %298 = vector.broadcast %297 : f32 to vector<8x16xf32>
    %299 = arith.mulf %298, %33 : vector<8x16xf32>
    %300 = arith.addf %296, %299 : vector<8x16xf32>
    %c59 = arith.constant 59 : index
    %301 = memref.load %arg3[%c59] : memref<288xf32, #tpu.memory_space<smem>>
    %302 = vector.broadcast %301 : f32 to vector<8x16xf32>
    %303 = arith.mulf %302, %34 : vector<8x16xf32>
    %304 = arith.addf %300, %303 : vector<8x16xf32>
    %c60 = arith.constant 60 : index
    %305 = memref.load %arg3[%c60] : memref<288xf32, #tpu.memory_space<smem>>
    %306 = vector.broadcast %305 : f32 to vector<8x16xf32>
    %307 = arith.mulf %306, %35 : vector<8x16xf32>
    %308 = arith.addf %304, %307 : vector<8x16xf32>
    %c61 = arith.constant 61 : index
    %309 = memref.load %arg3[%c61] : memref<288xf32, #tpu.memory_space<smem>>
    %310 = vector.broadcast %309 : f32 to vector<8x16xf32>
    %311 = arith.mulf %310, %36 : vector<8x16xf32>
    %312 = arith.addf %308, %311 : vector<8x16xf32>
    %c62 = arith.constant 62 : index
    %313 = memref.load %arg3[%c62] : memref<288xf32, #tpu.memory_space<smem>>
    %314 = vector.broadcast %313 : f32 to vector<8x16xf32>
    %315 = arith.mulf %314, %37 : vector<8x16xf32>
    %316 = arith.addf %312, %315 : vector<8x16xf32>
    %c63 = arith.constant 63 : index
    %317 = memref.load %arg3[%c63] : memref<288xf32, #tpu.memory_space<smem>>
    %318 = vector.broadcast %317 : f32 to vector<8x16xf32>
    %319 = arith.mulf %318, %40 : vector<8x16xf32>
    %320 = arith.addf %316, %319 : vector<8x16xf32>
    %c64 = arith.constant 64 : index
    %321 = memref.load %arg3[%c64] : memref<288xf32, #tpu.memory_space<smem>>
    %322 = vector.broadcast %321 : f32 to vector<8x16xf32>
    %323 = arith.mulf %322, %41 : vector<8x16xf32>
    %324 = arith.addf %320, %323 : vector<8x16xf32>
    %c65 = arith.constant 65 : index
    %325 = memref.load %arg3[%c65] : memref<288xf32, #tpu.memory_space<smem>>
    %326 = vector.broadcast %325 : f32 to vector<8x16xf32>
    %327 = arith.mulf %326, %42 : vector<8x16xf32>
    %328 = arith.addf %324, %327 : vector<8x16xf32>
    %c66 = arith.constant 66 : index
    %329 = memref.load %arg3[%c66] : memref<288xf32, #tpu.memory_space<smem>>
    %330 = vector.broadcast %329 : f32 to vector<8x16xf32>
    %331 = arith.mulf %330, %43 : vector<8x16xf32>
    %332 = arith.addf %328, %331 : vector<8x16xf32>
    %c67 = arith.constant 67 : index
    %333 = memref.load %arg3[%c67] : memref<288xf32, #tpu.memory_space<smem>>
    %334 = vector.broadcast %333 : f32 to vector<8x16xf32>
    %335 = arith.mulf %334, %44 : vector<8x16xf32>
    %336 = arith.addf %332, %335 : vector<8x16xf32>
    %c68 = arith.constant 68 : index
    %337 = memref.load %arg3[%c68] : memref<288xf32, #tpu.memory_space<smem>>
    %338 = vector.broadcast %337 : f32 to vector<8x16xf32>
    %339 = arith.mulf %338, %45 : vector<8x16xf32>
    %340 = arith.addf %336, %339 : vector<8x16xf32>
    %c69 = arith.constant 69 : index
    %341 = memref.load %arg3[%c69] : memref<288xf32, #tpu.memory_space<smem>>
    %342 = vector.broadcast %341 : f32 to vector<8x16xf32>
    %343 = arith.mulf %342, %46 : vector<8x16xf32>
    %344 = arith.addf %340, %343 : vector<8x16xf32>
    %c70 = arith.constant 70 : index
    %345 = memref.load %arg3[%c70] : memref<288xf32, #tpu.memory_space<smem>>
    %346 = vector.broadcast %345 : f32 to vector<8x16xf32>
    %347 = arith.mulf %346, %47 : vector<8x16xf32>
    %348 = arith.addf %344, %347 : vector<8x16xf32>
    %c71 = arith.constant 71 : index
    %349 = memref.load %arg3[%c71] : memref<288xf32, #tpu.memory_space<smem>>
    %350 = vector.broadcast %349 : f32 to vector<8x16xf32>
    %351 = arith.mulf %350, %48 : vector<8x16xf32>
    %352 = arith.addf %348, %351 : vector<8x16xf32>
    %c1_12 = arith.constant 1 : index
    %353 = memref.load %arg4[%c1_12] : memref<8xf32, #tpu.memory_space<smem>>
    %354 = vector.broadcast %353 : f32 to vector<8x16xf32>
    %355 = arith.addf %352, %354 : vector<8x16xf32>
    %cst_13 = arith.constant 0.000000e+00 : f32
    %356 = vector.broadcast %cst_13 : f32 to vector<8x16xf32>
    %357 = arith.subf %356, %355 : vector<8x16xf32>
    %358 = math.exp %357 : vector<8x16xf32>
    %cst_14 = arith.constant 1.000000e+00 : f32
    %359 = vector.broadcast %cst_14 : f32 to vector<8x16xf32>
    %360 = arith.addf %359, %358 : vector<8x16xf32>
    %cst_15 = arith.constant 1.000000e+00 : f32
    %361 = vector.broadcast %cst_15 : f32 to vector<8x16xf32>
    %362 = arith.divf %361, %360 : vector<8x16xf32>
    %363 = arith.mulf %355, %362 : vector<8x16xf32>
    %c0_16 = arith.constant 0 : index
    %c1_17 = arith.constant 1 : index
    %c0_18 = arith.constant 0 : index
    %c0_19 = arith.constant 0 : index
    %364 = vector.load %arg5[%c0_16, %c1_17, %c0_18, %c0_19] : memref<1x8x8x16xf32, #tpu.memory_space<vmem>>, vector<1x1x8x16xf32>
    %365 = vector.shape_cast %364 : vector<1x1x8x16xf32> to vector<8x16xf32>
    %366 = vector.shape_cast %363 : vector<8x16xf32> to vector<1x1x8x16xf32>
    tpu.vector_store %arg5[%c0_16, %c1_17, %c0_18, %c0_19], %366 {strides = array<i32>} : memref<1x8x8x16xf32, #tpu.memory_space<vmem>>, vector<1x1x8x16xf32>,
    %cst_20 = arith.constant 0.000000e+00 : f32
    %367 = vector.broadcast %cst_20 : f32 to vector<8x16xf32>
    %c72 = arith.constant 72 : index
    %368 = memref.load %arg3[%c72] : memref<288xf32, #tpu.memory_space<smem>>
    %369 = vector.broadcast %368 : f32 to vector<8x16xf32>
    %370 = arith.mulf %369, %7 : vector<8x16xf32>
    %371 = arith.addf %367, %370 : vector<8x16xf32>
    %c73 = arith.constant 73 : index
    %372 = memref.load %arg3[%c73] : memref<288xf32, #tpu.memory_space<smem>>
    %373 = vector.broadcast %372 : f32 to vector<8x16xf32>
    %374 = arith.mulf %373, %8 : vector<8x16xf32>
    %375 = arith.addf %371, %374 : vector<8x16xf32>
    %c74 = arith.constant 74 : index
    %376 = memref.load %arg3[%c74] : memref<288xf32, #tpu.memory_space<smem>>
    %377 = vector.broadcast %376 : f32 to vector<8x16xf32>
    %378 = arith.mulf %377, %9 : vector<8x16xf32>
    %379 = arith.addf %375, %378 : vector<8x16xf32>
    %c75 = arith.constant 75 : index
    %380 = memref.load %arg3[%c75] : memref<288xf32, #tpu.memory_space<smem>>
    %381 = vector.broadcast %380 : f32 to vector<8x16xf32>
    %382 = arith.mulf %381, %10 : vector<8x16xf32>
    %383 = arith.addf %379, %382 : vector<8x16xf32>
    %c76 = arith.constant 76 : index
    %384 = memref.load %arg3[%c76] : memref<288xf32, #tpu.memory_space<smem>>
    %385 = vector.broadcast %384 : f32 to vector<8x16xf32>
    %386 = arith.mulf %385, %11 : vector<8x16xf32>
    %387 = arith.addf %383, %386 : vector<8x16xf32>
    %c77 = arith.constant 77 : index
    %388 = memref.load %arg3[%c77] : memref<288xf32, #tpu.memory_space<smem>>
    %389 = vector.broadcast %388 : f32 to vector<8x16xf32>
    %390 = arith.mulf %389, %12 : vector<8x16xf32>
    %391 = arith.addf %387, %390 : vector<8x16xf32>
    %c78 = arith.constant 78 : index
    %392 = memref.load %arg3[%c78] : memref<288xf32, #tpu.memory_space<smem>>
    %393 = vector.broadcast %392 : f32 to vector<8x16xf32>
    %394 = arith.mulf %393, %13 : vector<8x16xf32>
    %395 = arith.addf %391, %394 : vector<8x16xf32>
    %c79 = arith.constant 79 : index
    %396 = memref.load %arg3[%c79] : memref<288xf32, #tpu.memory_space<smem>>
    %397 = vector.broadcast %396 : f32 to vector<8x16xf32>
    %398 = arith.mulf %397, %14 : vector<8x16xf32>
    %399 = arith.addf %395, %398 : vector<8x16xf32>
    %c80 = arith.constant 80 : index
    %400 = memref.load %arg3[%c80] : memref<288xf32, #tpu.memory_space<smem>>
    %401 = vector.broadcast %400 : f32 to vector<8x16xf32>
    %402 = arith.mulf %401, %15 : vector<8x16xf32>
    %403 = arith.addf %399, %402 : vector<8x16xf32>
    %c81 = arith.constant 81 : index
    %404 = memref.load %arg3[%c81] : memref<288xf32, #tpu.memory_space<smem>>
    %405 = vector.broadcast %404 : f32 to vector<8x16xf32>
    %406 = arith.mulf %405, %18 : vector<8x16xf32>
    %407 = arith.addf %403, %406 : vector<8x16xf32>
    %c82 = arith.constant 82 : index
    %408 = memref.load %arg3[%c82] : memref<288xf32, #tpu.memory_space<smem>>
    %409 = vector.broadcast %408 : f32 to vector<8x16xf32>
    %410 = arith.mulf %409, %19 : vector<8x16xf32>
    %411 = arith.addf %407, %410 : vector<8x16xf32>
    %c83 = arith.constant 83 : index
    %412 = memref.load %arg3[%c83] : memref<288xf32, #tpu.memory_space<smem>>
    %413 = vector.broadcast %412 : f32 to vector<8x16xf32>
    %414 = arith.mulf %413, %20 : vector<8x16xf32>
    %415 = arith.addf %411, %414 : vector<8x16xf32>
    %c84 = arith.constant 84 : index
    %416 = memref.load %arg3[%c84] : memref<288xf32, #tpu.memory_space<smem>>
    %417 = vector.broadcast %416 : f32 to vector<8x16xf32>
    %418 = arith.mulf %417, %21 : vector<8x16xf32>
    %419 = arith.addf %415, %418 : vector<8x16xf32>
    %c85 = arith.constant 85 : index
    %420 = memref.load %arg3[%c85] : memref<288xf32, #tpu.memory_space<smem>>
    %421 = vector.broadcast %420 : f32 to vector<8x16xf32>
    %422 = arith.mulf %421, %22 : vector<8x16xf32>
    %423 = arith.addf %419, %422 : vector<8x16xf32>
    %c86 = arith.constant 86 : index
    %424 = memref.load %arg3[%c86] : memref<288xf32, #tpu.memory_space<smem>>
    %425 = vector.broadcast %424 : f32 to vector<8x16xf32>
    %426 = arith.mulf %425, %23 : vector<8x16xf32>
    %427 = arith.addf %423, %426 : vector<8x16xf32>
    %c87 = arith.constant 87 : index
    %428 = memref.load %arg3[%c87] : memref<288xf32, #tpu.memory_space<smem>>
    %429 = vector.broadcast %428 : f32 to vector<8x16xf32>
    %430 = arith.mulf %429, %24 : vector<8x16xf32>
    %431 = arith.addf %427, %430 : vector<8x16xf32>
    %c88 = arith.constant 88 : index
    %432 = memref.load %arg3[%c88] : memref<288xf32, #tpu.memory_space<smem>>
    %433 = vector.broadcast %432 : f32 to vector<8x16xf32>
    %434 = arith.mulf %433, %25 : vector<8x16xf32>
    %435 = arith.addf %431, %434 : vector<8x16xf32>
    %c89 = arith.constant 89 : index
    %436 = memref.load %arg3[%c89] : memref<288xf32, #tpu.memory_space<smem>>
    %437 = vector.broadcast %436 : f32 to vector<8x16xf32>
    %438 = arith.mulf %437, %26 : vector<8x16xf32>
    %439 = arith.addf %435, %438 : vector<8x16xf32>
    %c90 = arith.constant 90 : index
    %440 = memref.load %arg3[%c90] : memref<288xf32, #tpu.memory_space<smem>>
    %441 = vector.broadcast %440 : f32 to vector<8x16xf32>
    %442 = arith.mulf %441, %29 : vector<8x16xf32>
    %443 = arith.addf %439, %442 : vector<8x16xf32>
    %c91 = arith.constant 91 : index
    %444 = memref.load %arg3[%c91] : memref<288xf32, #tpu.memory_space<smem>>
    %445 = vector.broadcast %444 : f32 to vector<8x16xf32>
    %446 = arith.mulf %445, %30 : vector<8x16xf32>
    %447 = arith.addf %443, %446 : vector<8x16xf32>
    %c92 = arith.constant 92 : index
    %448 = memref.load %arg3[%c92] : memref<288xf32, #tpu.memory_space<smem>>
    %449 = vector.broadcast %448 : f32 to vector<8x16xf32>
    %450 = arith.mulf %449, %31 : vector<8x16xf32>
    %451 = arith.addf %447, %450 : vector<8x16xf32>
    %c93 = arith.constant 93 : index
    %452 = memref.load %arg3[%c93] : memref<288xf32, #tpu.memory_space<smem>>
    %453 = vector.broadcast %452 : f32 to vector<8x16xf32>
    %454 = arith.mulf %453, %32 : vector<8x16xf32>
    %455 = arith.addf %451, %454 : vector<8x16xf32>
    %c94 = arith.constant 94 : index
    %456 = memref.load %arg3[%c94] : memref<288xf32, #tpu.memory_space<smem>>
    %457 = vector.broadcast %456 : f32 to vector<8x16xf32>
    %458 = arith.mulf %457, %33 : vector<8x16xf32>
    %459 = arith.addf %455, %458 : vector<8x16xf32>
    %c95 = arith.constant 95 : index
    %460 = memref.load %arg3[%c95] : memref<288xf32, #tpu.memory_space<smem>>
    %461 = vector.broadcast %460 : f32 to vector<8x16xf32>
    %462 = arith.mulf %461, %34 : vector<8x16xf32>
    %463 = arith.addf %459, %462 : vector<8x16xf32>
    %c96 = arith.constant 96 : index
    %464 = memref.load %arg3[%c96] : memref<288xf32, #tpu.memory_space<smem>>
    %465 = vector.broadcast %464 : f32 to vector<8x16xf32>
    %466 = arith.mulf %465, %35 : vector<8x16xf32>
    %467 = arith.addf %463, %466 : vector<8x16xf32>
    %c97 = arith.constant 97 : index
    %468 = memref.load %arg3[%c97] : memref<288xf32, #tpu.memory_space<smem>>
    %469 = vector.broadcast %468 : f32 to vector<8x16xf32>
    %470 = arith.mulf %469, %36 : vector<8x16xf32>
    %471 = arith.addf %467, %470 : vector<8x16xf32>
    %c98 = arith.constant 98 : index
    %472 = memref.load %arg3[%c98] : memref<288xf32, #tpu.memory_space<smem>>
    %473 = vector.broadcast %472 : f32 to vector<8x16xf32>
    %474 = arith.mulf %473, %37 : vector<8x16xf32>
    %475 = arith.addf %471, %474 : vector<8x16xf32>
    %c99 = arith.constant 99 : index
    %476 = memref.load %arg3[%c99] : memref<288xf32, #tpu.memory_space<smem>>
    %477 = vector.broadcast %476 : f32 to vector<8x16xf32>
    %478 = arith.mulf %477, %40 : vector<8x16xf32>
    %479 = arith.addf %475, %478 : vector<8x16xf32>
    %c100 = arith.constant 100 : index
    %480 = memref.load %arg3[%c100] : memref<288xf32, #tpu.memory_space<smem>>
    %481 = vector.broadcast %480 : f32 to vector<8x16xf32>
    %482 = arith.mulf %481, %41 : vector<8x16xf32>
    %483 = arith.addf %479, %482 : vector<8x16xf32>
    %c101 = arith.constant 101 : index
    %484 = memref.load %arg3[%c101] : memref<288xf32, #tpu.memory_space<smem>>
    %485 = vector.broadcast %484 : f32 to vector<8x16xf32>
    %486 = arith.mulf %485, %42 : vector<8x16xf32>
    %487 = arith.addf %483, %486 : vector<8x16xf32>
    %c102 = arith.constant 102 : index
    %488 = memref.load %arg3[%c102] : memref<288xf32, #tpu.memory_space<smem>>
    %489 = vector.broadcast %488 : f32 to vector<8x16xf32>
    %490 = arith.mulf %489, %43 : vector<8x16xf32>
    %491 = arith.addf %487, %490 : vector<8x16xf32>
    %c103 = arith.constant 103 : index
    %492 = memref.load %arg3[%c103] : memref<288xf32, #tpu.memory_space<smem>>
    %493 = vector.broadcast %492 : f32 to vector<8x16xf32>
    %494 = arith.mulf %493, %44 : vector<8x16xf32>
    %495 = arith.addf %491, %494 : vector<8x16xf32>
    %c104 = arith.constant 104 : index
    %496 = memref.load %arg3[%c104] : memref<288xf32, #tpu.memory_space<smem>>
    %497 = vector.broadcast %496 : f32 to vector<8x16xf32>
    %498 = arith.mulf %497, %45 : vector<8x16xf32>
    %499 = arith.addf %495, %498 : vector<8x16xf32>
    %c105 = arith.constant 105 : index
    %500 = memref.load %arg3[%c105] : memref<288xf32, #tpu.memory_space<smem>>
    %501 = vector.broadcast %500 : f32 to vector<8x16xf32>
    %502 = arith.mulf %501, %46 : vector<8x16xf32>
    %503 = arith.addf %499, %502 : vector<8x16xf32>
    %c106 = arith.constant 106 : index
    %504 = memref.load %arg3[%c106] : memref<288xf32, #tpu.memory_space<smem>>
    %505 = vector.broadcast %504 : f32 to vector<8x16xf32>
    %506 = arith.mulf %505, %47 : vector<8x16xf32>
    %507 = arith.addf %503, %506 : vector<8x16xf32>
    %c107 = arith.constant 107 : index
    %508 = memref.load %arg3[%c107] : memref<288xf32, #tpu.memory_space<smem>>
    %509 = vector.broadcast %508 : f32 to vector<8x16xf32>
    %510 = arith.mulf %509, %48 : vector<8x16xf32>
    %511 = arith.addf %507, %510 : vector<8x16xf32>
    %c2_21 = arith.constant 2 : index
    %512 = memref.load %arg4[%c2_21] : memref<8xf32, #tpu.memory_space<smem>>
    %513 = vector.broadcast %512 : f32 to vector<8x16xf32>
    %514 = arith.addf %511, %513 : vector<8x16xf32>
    %cst_22 = arith.constant 0.000000e+00 : f32
    %515 = vector.broadcast %cst_22 : f32 to vector<8x16xf32>
    %516 = arith.subf %515, %514 : vector<8x16xf32>
    %517 = math.exp %516 : vector<8x16xf32>
    %cst_23 = arith.constant 1.000000e+00 : f32
    %518 = vector.broadcast %cst_23 : f32 to vector<8x16xf32>
    %519 = arith.addf %518, %517 : vector<8x16xf32>
    %cst_24 = arith.constant 1.000000e+00 : f32
    %520 = vector.broadcast %cst_24 : f32 to vector<8x16xf32>
    %521 = arith.divf %520, %519 : vector<8x16xf32>
    %522 = arith.mulf %514, %521 : vector<8x16xf32>
    %c0_25 = arith.constant 0 : index
    %c2_26 = arith.constant 2 : index
    %c0_27 = arith.constant 0 : index
    %c0_28 = arith.constant 0 : index
    %523 = vector.load %arg5[%c0_25, %c2_26, %c0_27, %c0_28] : memref<1x8x8x16xf32, #tpu.memory_space<vmem>>, vector<1x1x8x16xf32>
    %524 = vector.shape_cast %523 : vector<1x1x8x16xf32> to vector<8x16xf32>
    %525 = vector.shape_cast %522 : vector<8x16xf32> to vector<1x1x8x16xf32>
    tpu.vector_store %arg5[%c0_25, %c2_26, %c0_27, %c0_28], %525 {strides = array<i32>} : memref<1x8x8x16xf32, #tpu.memory_space<vmem>>, vector<1x1x8x16xf32>,
    %cst_29 = arith.constant 0.000000e+00 : f32
    %526 = vector.broadcast %cst_29 : f32 to vector<8x16xf32>
    %c108 = arith.constant 108 : index
    %527 = memref.load %arg3[%c108] : memref<288xf32, #tpu.memory_space<smem>>
    %528 = vector.broadcast %527 : f32 to vector<8x16xf32>
    %529 = arith.mulf %528, %7 : vector<8x16xf32>
    %530 = arith.addf %526, %529 : vector<8x16xf32>
    %c109 = arith.constant 109 : index
    %531 = memref.load %arg3[%c109] : memref<288xf32, #tpu.memory_space<smem>>
    %532 = vector.broadcast %531 : f32 to vector<8x16xf32>
    %533 = arith.mulf %532, %8 : vector<8x16xf32>
    %534 = arith.addf %530, %533 : vector<8x16xf32>
    %c110 = arith.constant 110 : index
    %535 = memref.load %arg3[%c110] : memref<288xf32, #tpu.memory_space<smem>>
    %536 = vector.broadcast %535 : f32 to vector<8x16xf32>
    %537 = arith.mulf %536, %9 : vector<8x16xf32>
    %538 = arith.addf %534, %537 : vector<8x16xf32>
    %c111 = arith.constant 111 : index
    %539 = memref.load %arg3[%c111] : memref<288xf32, #tpu.memory_space<smem>>
    %540 = vector.broadcast %539 : f32 to vector<8x16xf32>
    %541 = arith.mulf %540, %10 : vector<8x16xf32>
    %542 = arith.addf %538, %541 : vector<8x16xf32>
    %c112 = arith.constant 112 : index
    %543 = memref.load %arg3[%c112] : memref<288xf32, #tpu.memory_space<smem>>
    %544 = vector.broadcast %543 : f32 to vector<8x16xf32>
    %545 = arith.mulf %544, %11 : vector<8x16xf32>
    %546 = arith.addf %542, %545 : vector<8x16xf32>
    %c113 = arith.constant 113 : index
    %547 = memref.load %arg3[%c113] : memref<288xf32, #tpu.memory_space<smem>>
    %548 = vector.broadcast %547 : f32 to vector<8x16xf32>
    %549 = arith.mulf %548, %12 : vector<8x16xf32>
    %550 = arith.addf %546, %549 : vector<8x16xf32>
    %c114 = arith.constant 114 : index
    %551 = memref.load %arg3[%c114] : memref<288xf32, #tpu.memory_space<smem>>
    %552 = vector.broadcast %551 : f32 to vector<8x16xf32>
    %553 = arith.mulf %552, %13 : vector<8x16xf32>
    %554 = arith.addf %550, %553 : vector<8x16xf32>
    %c115 = arith.constant 115 : index
    %555 = memref.load %arg3[%c115] : memref<288xf32, #tpu.memory_space<smem>>
    %556 = vector.broadcast %555 : f32 to vector<8x16xf32>
    %557 = arith.mulf %556, %14 : vector<8x16xf32>
    %558 = arith.addf %554, %557 : vector<8x16xf32>
    %c116 = arith.constant 116 : index
    %559 = memref.load %arg3[%c116] : memref<288xf32, #tpu.memory_space<smem>>
    %560 = vector.broadcast %559 : f32 to vector<8x16xf32>
    %561 = arith.mulf %560, %15 : vector<8x16xf32>
    %562 = arith.addf %558, %561 : vector<8x16xf32>
    %c117 = arith.constant 117 : index
    %563 = memref.load %arg3[%c117] : memref<288xf32, #tpu.memory_space<smem>>
    %564 = vector.broadcast %563 : f32 to vector<8x16xf32>
    %565 = arith.mulf %564, %18 : vector<8x16xf32>
    %566 = arith.addf %562, %565 : vector<8x16xf32>
    %c118 = arith.constant 118 : index
    %567 = memref.load %arg3[%c118] : memref<288xf32, #tpu.memory_space<smem>>
    %568 = vector.broadcast %567 : f32 to vector<8x16xf32>
    %569 = arith.mulf %568, %19 : vector<8x16xf32>
    %570 = arith.addf %566, %569 : vector<8x16xf32>
    %c119 = arith.constant 119 : index
    %571 = memref.load %arg3[%c119] : memref<288xf32, #tpu.memory_space<smem>>
    %572 = vector.broadcast %571 : f32 to vector<8x16xf32>
    %573 = arith.mulf %572, %20 : vector<8x16xf32>
    %574 = arith.addf %570, %573 : vector<8x16xf32>
    %c120 = arith.constant 120 : index
    %575 = memref.load %arg3[%c120] : memref<288xf32, #tpu.memory_space<smem>>
    %576 = vector.broadcast %575 : f32 to vector<8x16xf32>
    %577 = arith.mulf %576, %21 : vector<8x16xf32>
    %578 = arith.addf %574, %577 : vector<8x16xf32>
    %c121 = arith.constant 121 : index
    %579 = memref.load %arg3[%c121] : memref<288xf32, #tpu.memory_space<smem>>
    %580 = vector.broadcast %579 : f32 to vector<8x16xf32>
    %581 = arith.mulf %580, %22 : vector<8x16xf32>
    %582 = arith.addf %578, %581 : vector<8x16xf32>
    %c122 = arith.constant 122 : index
    %583 = memref.load %arg3[%c122] : memref<288xf32, #tpu.memory_space<smem>>
    %584 = vector.broadcast %583 : f32 to vector<8x16xf32>
    %585 = arith.mulf %584, %23 : vector<8x16xf32>
    %586 = arith.addf %582, %585 : vector<8x16xf32>
    %c123 = arith.constant 123 : index
    %587 = memref.load %arg3[%c123] : memref<288xf32, #tpu.memory_space<smem>>
    %588 = vector.broadcast %587 : f32 to vector<8x16xf32>
    %589 = arith.mulf %588, %24 : vector<8x16xf32>
    %590 = arith.addf %586, %589 : vector<8x16xf32>
    %c124 = arith.constant 124 : index
    %591 = memref.load %arg3[%c124] : memref<288xf32, #tpu.memory_space<smem>>
    %592 = vector.broadcast %591 : f32 to vector<8x16xf32>
    %593 = arith.mulf %592, %25 : vector<8x16xf32>
    %594 = arith.addf %590, %593 : vector<8x16xf32>
    %c125 = arith.constant 125 : index
    %595 = memref.load %arg3[%c125] : memref<288xf32, #tpu.memory_space<smem>>
    %596 = vector.broadcast %595 : f32 to vector<8x16xf32>
    %597 = arith.mulf %596, %26 : vector<8x16xf32>
    %598 = arith.addf %594, %597 : vector<8x16xf32>
    %c126 = arith.constant 126 : index
    %599 = memref.load %arg3[%c126] : memref<288xf32, #tpu.memory_space<smem>>
    %600 = vector.broadcast %599 : f32 to vector<8x16xf32>
    %601 = arith.mulf %600, %29 : vector<8x16xf32>
    %602 = arith.addf %598, %601 : vector<8x16xf32>
    %c127 = arith.constant 127 : index
    %603 = memref.load %arg3[%c127] : memref<288xf32, #tpu.memory_space<smem>>
    %604 = vector.broadcast %603 : f32 to vector<8x16xf32>
    %605 = arith.mulf %604, %30 : vector<8x16xf32>
    %606 = arith.addf %602, %605 : vector<8x16xf32>
    %c128 = arith.constant 128 : index
    %607 = memref.load %arg3[%c128] : memref<288xf32, #tpu.memory_space<smem>>
    %608 = vector.broadcast %607 : f32 to vector<8x16xf32>
    %609 = arith.mulf %608, %31 : vector<8x16xf32>
    %610 = arith.addf %606, %609 : vector<8x16xf32>
    %c129 = arith.constant 129 : index
    %611 = memref.load %arg3[%c129] : memref<288xf32, #tpu.memory_space<smem>>
    %612 = vector.broadcast %611 : f32 to vector<8x16xf32>
    %613 = arith.mulf %612, %32 : vector<8x16xf32>
    %614 = arith.addf %610, %613 : vector<8x16xf32>
    %c130 = arith.constant 130 : index
    %615 = memref.load %arg3[%c130] : memref<288xf32, #tpu.memory_space<smem>>
    %616 = vector.broadcast %615 : f32 to vector<8x16xf32>
    %617 = arith.mulf %616, %33 : vector<8x16xf32>
    %618 = arith.addf %614, %617 : vector<8x16xf32>
    %c131 = arith.constant 131 : index
    %619 = memref.load %arg3[%c131] : memref<288xf32, #tpu.memory_space<smem>>
    %620 = vector.broadcast %619 : f32 to vector<8x16xf32>
    %621 = arith.mulf %620, %34 : vector<8x16xf32>
    %622 = arith.addf %618, %621 : vector<8x16xf32>
    %c132 = arith.constant 132 : index
    %623 = memref.load %arg3[%c132] : memref<288xf32, #tpu.memory_space<smem>>
    %624 = vector.broadcast %623 : f32 to vector<8x16xf32>
    %625 = arith.mulf %624, %35 : vector<8x16xf32>
    %626 = arith.addf %622, %625 : vector<8x16xf32>
    %c133 = arith.constant 133 : index
    %627 = memref.load %arg3[%c133] : memref<288xf32, #tpu.memory_space<smem>>
    %628 = vector.broadcast %627 : f32 to vector<8x16xf32>
    %629 = arith.mulf %628, %36 : vector<8x16xf32>
    %630 = arith.addf %626, %629 : vector<8x16xf32>
    %c134 = arith.constant 134 : index
    %631 = memref.load %arg3[%c134] : memref<288xf32, #tpu.memory_space<smem>>
    %632 = vector.broadcast %631 : f32 to vector<8x16xf32>
    %633 = arith.mulf %632, %37 : vector<8x16xf32>
    %634 = arith.addf %630, %633 : vector<8x16xf32>
    %c135 = arith.constant 135 : index
    %635 = memref.load %arg3[%c135] : memref<288xf32, #tpu.memory_space<smem>>
    %636 = vector.broadcast %635 : f32 to vector<8x16xf32>
    %637 = arith.mulf %636, %40 : vector<8x16xf32>
    %638 = arith.addf %634, %637 : vector<8x16xf32>
    %c136 = arith.constant 136 : index
    %639 = memref.load %arg3[%c136] : memref<288xf32, #tpu.memory_space<smem>>
    %640 = vector.broadcast %639 : f32 to vector<8x16xf32>
    %641 = arith.mulf %640, %41 : vector<8x16xf32>
    %642 = arith.addf %638, %641 : vector<8x16xf32>
    %c137 = arith.constant 137 : index
    %643 = memref.load %arg3[%c137] : memref<288xf32, #tpu.memory_space<smem>>
    %644 = vector.broadcast %643 : f32 to vector<8x16xf32>
    %645 = arith.mulf %644, %42 : vector<8x16xf32>
    %646 = arith.addf %642, %645 : vector<8x16xf32>
    %c138 = arith.constant 138 : index
    %647 = memref.load %arg3[%c138] : memref<288xf32, #tpu.memory_space<smem>>
    %648 = vector.broadcast %647 : f32 to vector<8x16xf32>
    %649 = arith.mulf %648, %43 : vector<8x16xf32>
    %650 = arith.addf %646, %649 : vector<8x16xf32>
    %c139 = arith.constant 139 : index
    %651 = memref.load %arg3[%c139] : memref<288xf32, #tpu.memory_space<smem>>
    %652 = vector.broadcast %651 : f32 to vector<8x16xf32>
    %653 = arith.mulf %652, %44 : vector<8x16xf32>
    %654 = arith.addf %650, %653 : vector<8x16xf32>
    %c140 = arith.constant 140 : index
    %655 = memref.load %arg3[%c140] : memref<288xf32, #tpu.memory_space<smem>>
    %656 = vector.broadcast %655 : f32 to vector<8x16xf32>
    %657 = arith.mulf %656, %45 : vector<8x16xf32>
    %658 = arith.addf %654, %657 : vector<8x16xf32>
    %c141 = arith.constant 141 : index
    %659 = memref.load %arg3[%c141] : memref<288xf32, #tpu.memory_space<smem>>
    %660 = vector.broadcast %659 : f32 to vector<8x16xf32>
    %661 = arith.mulf %660, %46 : vector<8x16xf32>
    %662 = arith.addf %658, %661 : vector<8x16xf32>
    %c142 = arith.constant 142 : index
    %663 = memref.load %arg3[%c142] : memref<288xf32, #tpu.memory_space<smem>>
    %664 = vector.broadcast %663 : f32 to vector<8x16xf32>
    %665 = arith.mulf %664, %47 : vector<8x16xf32>
    %666 = arith.addf %662, %665 : vector<8x16xf32>
    %c143 = arith.constant 143 : index
    %667 = memref.load %arg3[%c143] : memref<288xf32, #tpu.memory_space<smem>>
    %668 = vector.broadcast %667 : f32 to vector<8x16xf32>
    %669 = arith.mulf %668, %48 : vector<8x16xf32>
    %670 = arith.addf %666, %669 : vector<8x16xf32>
    %c3_30 = arith.constant 3 : index
    %671 = memref.load %arg4[%c3_30] : memref<8xf32, #tpu.memory_space<smem>>
    %672 = vector.broadcast %671 : f32 to vector<8x16xf32>
    %673 = arith.addf %670, %672 : vector<8x16xf32>
    %cst_31 = arith.constant 0.000000e+00 : f32
    %674 = vector.broadcast %cst_31 : f32 to vector<8x16xf32>
    %675 = arith.subf %674, %673 : vector<8x16xf32>
    %676 = math.exp %675 : vector<8x16xf32>
    %cst_32 = arith.constant 1.000000e+00 : f32
    %677 = vector.broadcast %cst_32 : f32 to vector<8x16xf32>
    %678 = arith.addf %677, %676 : vector<8x16xf32>
    %cst_33 = arith.constant 1.000000e+00 : f32
    %679 = vector.broadcast %cst_33 : f32 to vector<8x16xf32>
    %680 = arith.divf %679, %678 : vector<8x16xf32>
    %681 = arith.mulf %673, %680 : vector<8x16xf32>
    %c0_34 = arith.constant 0 : index
    %c3_35 = arith.constant 3 : index
    %c0_36 = arith.constant 0 : index
    %c0_37 = arith.constant 0 : index
    %682 = vector.load %arg5[%c0_34, %c3_35, %c0_36, %c0_37] : memref<1x8x8x16xf32, #tpu.memory_space<vmem>>, vector<1x1x8x16xf32>
    %683 = vector.shape_cast %682 : vector<1x1x8x16xf32> to vector<8x16xf32>
    %684 = vector.shape_cast %681 : vector<8x16xf32> to vector<1x1x8x16xf32>
    tpu.vector_store %arg5[%c0_34, %c3_35, %c0_36, %c0_37], %684 {strides = array<i32>} : memref<1x8x8x16xf32, #tpu.memory_space<vmem>>, vector<1x1x8x16xf32>,
    %cst_38 = arith.constant 0.000000e+00 : f32
    %685 = vector.broadcast %cst_38 : f32 to vector<8x16xf32>
    %c144 = arith.constant 144 : index
    %686 = memref.load %arg3[%c144] : memref<288xf32, #tpu.memory_space<smem>>
    %687 = vector.broadcast %686 : f32 to vector<8x16xf32>
    %688 = arith.mulf %687, %7 : vector<8x16xf32>
    %689 = arith.addf %685, %688 : vector<8x16xf32>
    %c145 = arith.constant 145 : index
    %690 = memref.load %arg3[%c145] : memref<288xf32, #tpu.memory_space<smem>>
    %691 = vector.broadcast %690 : f32 to vector<8x16xf32>
    %692 = arith.mulf %691, %8 : vector<8x16xf32>
    %693 = arith.addf %689, %692 : vector<8x16xf32>
    %c146 = arith.constant 146 : index
    %694 = memref.load %arg3[%c146] : memref<288xf32, #tpu.memory_space<smem>>
    %695 = vector.broadcast %694 : f32 to vector<8x16xf32>
    %696 = arith.mulf %695, %9 : vector<8x16xf32>
    %697 = arith.addf %693, %696 : vector<8x16xf32>
    %c147 = arith.constant 147 : index
    %698 = memref.load %arg3[%c147] : memref<288xf32, #tpu.memory_space<smem>>
    %699 = vector.broadcast %698 : f32 to vector<8x16xf32>
    %700 = arith.mulf %699, %10 : vector<8x16xf32>
    %701 = arith.addf %697, %700 : vector<8x16xf32>
    %c148 = arith.constant 148 : index
    %702 = memref.load %arg3[%c148] : memref<288xf32, #tpu.memory_space<smem>>
    %703 = vector.broadcast %702 : f32 to vector<8x16xf32>
    %704 = arith.mulf %703, %11 : vector<8x16xf32>
    %705 = arith.addf %701, %704 : vector<8x16xf32>
    %c149 = arith.constant 149 : index
    %706 = memref.load %arg3[%c149] : memref<288xf32, #tpu.memory_space<smem>>
    %707 = vector.broadcast %706 : f32 to vector<8x16xf32>
    %708 = arith.mulf %707, %12 : vector<8x16xf32>
    %709 = arith.addf %705, %708 : vector<8x16xf32>
    %c150 = arith.constant 150 : index
    %710 = memref.load %arg3[%c150] : memref<288xf32, #tpu.memory_space<smem>>
    %711 = vector.broadcast %710 : f32 to vector<8x16xf32>
    %712 = arith.mulf %711, %13 : vector<8x16xf32>
    %713 = arith.addf %709, %712 : vector<8x16xf32>
    %c151 = arith.constant 151 : index
    %714 = memref.load %arg3[%c151] : memref<288xf32, #tpu.memory_space<smem>>
    %715 = vector.broadcast %714 : f32 to vector<8x16xf32>
    %716 = arith.mulf %715, %14 : vector<8x16xf32>
    %717 = arith.addf %713, %716 : vector<8x16xf32>
    %c152 = arith.constant 152 : index
    %718 = memref.load %arg3[%c152] : memref<288xf32, #tpu.memory_space<smem>>
    %719 = vector.broadcast %718 : f32 to vector<8x16xf32>
    %720 = arith.mulf %719, %15 : vector<8x16xf32>
    %721 = arith.addf %717, %720 : vector<8x16xf32>
    %c153 = arith.constant 153 : index
    %722 = memref.load %arg3[%c153] : memref<288xf32, #tpu.memory_space<smem>>
    %723 = vector.broadcast %722 : f32 to vector<8x16xf32>
    %724 = arith.mulf %723, %18 : vector<8x16xf32>
    %725 = arith.addf %721, %724 : vector<8x16xf32>
    %c154 = arith.constant 154 : index
    %726 = memref.load %arg3[%c154] : memref<288xf32, #tpu.memory_space<smem>>
    %727 = vector.broadcast %726 : f32 to vector<8x16xf32>
    %728 = arith.mulf %727, %19 : vector<8x16xf32>
    %729 = arith.addf %725, %728 : vector<8x16xf32>
    %c155 = arith.constant 155 : index
    %730 = memref.load %arg3[%c155] : memref<288xf32, #tpu.memory_space<smem>>
    %731 = vector.broadcast %730 : f32 to vector<8x16xf32>
    %732 = arith.mulf %731, %20 : vector<8x16xf32>
    %733 = arith.addf %729, %732 : vector<8x16xf32>
    %c156 = arith.constant 156 : index
    %734 = memref.load %arg3[%c156] : memref<288xf32, #tpu.memory_space<smem>>
    %735 = vector.broadcast %734 : f32 to vector<8x16xf32>
    %736 = arith.mulf %735, %21 : vector<8x16xf32>
    %737 = arith.addf %733, %736 : vector<8x16xf32>
    %c157 = arith.constant 157 : index
    %738 = memref.load %arg3[%c157] : memref<288xf32, #tpu.memory_space<smem>>
    %739 = vector.broadcast %738 : f32 to vector<8x16xf32>
    %740 = arith.mulf %739, %22 : vector<8x16xf32>
    %741 = arith.addf %737, %740 : vector<8x16xf32>
    %c158 = arith.constant 158 : index
    %742 = memref.load %arg3[%c158] : memref<288xf32, #tpu.memory_space<smem>>
    %743 = vector.broadcast %742 : f32 to vector<8x16xf32>
    %744 = arith.mulf %743, %23 : vector<8x16xf32>
    %745 = arith.addf %741, %744 : vector<8x16xf32>
    %c159 = arith.constant 159 : index
    %746 = memref.load %arg3[%c159] : memref<288xf32, #tpu.memory_space<smem>>
    %747 = vector.broadcast %746 : f32 to vector<8x16xf32>
    %748 = arith.mulf %747, %24 : vector<8x16xf32>
    %749 = arith.addf %745, %748 : vector<8x16xf32>
    %c160 = arith.constant 160 : index
    %750 = memref.load %arg3[%c160] : memref<288xf32, #tpu.memory_space<smem>>
    %751 = vector.broadcast %750 : f32 to vector<8x16xf32>
    %752 = arith.mulf %751, %25 : vector<8x16xf32>
    %753 = arith.addf %749, %752 : vector<8x16xf32>
    %c161 = arith.constant 161 : index
    %754 = memref.load %arg3[%c161] : memref<288xf32, #tpu.memory_space<smem>>
    %755 = vector.broadcast %754 : f32 to vector<8x16xf32>
    %756 = arith.mulf %755, %26 : vector<8x16xf32>
    %757 = arith.addf %753, %756 : vector<8x16xf32>
    %c162 = arith.constant 162 : index
    %758 = memref.load %arg3[%c162] : memref<288xf32, #tpu.memory_space<smem>>
    %759 = vector.broadcast %758 : f32 to vector<8x16xf32>
    %760 = arith.mulf %759, %29 : vector<8x16xf32>
    %761 = arith.addf %757, %760 : vector<8x16xf32>
    %c163 = arith.constant 163 : index
    %762 = memref.load %arg3[%c163] : memref<288xf32, #tpu.memory_space<smem>>
    %763 = vector.broadcast %762 : f32 to vector<8x16xf32>
    %764 = arith.mulf %763, %30 : vector<8x16xf32>
    %765 = arith.addf %761, %764 : vector<8x16xf32>
    %c164 = arith.constant 164 : index
    %766 = memref.load %arg3[%c164] : memref<288xf32, #tpu.memory_space<smem>>
    %767 = vector.broadcast %766 : f32 to vector<8x16xf32>
    %768 = arith.mulf %767, %31 : vector<8x16xf32>
    %769 = arith.addf %765, %768 : vector<8x16xf32>
    %c165 = arith.constant 165 : index
    %770 = memref.load %arg3[%c165] : memref<288xf32, #tpu.memory_space<smem>>
    %771 = vector.broadcast %770 : f32 to vector<8x16xf32>
    %772 = arith.mulf %771, %32 : vector<8x16xf32>
    %773 = arith.addf %769, %772 : vector<8x16xf32>
    %c166 = arith.constant 166 : index
    %774 = memref.load %arg3[%c166] : memref<288xf32, #tpu.memory_space<smem>>
    %775 = vector.broadcast %774 : f32 to vector<8x16xf32>
    %776 = arith.mulf %775, %33 : vector<8x16xf32>
    %777 = arith.addf %773, %776 : vector<8x16xf32>
    %c167 = arith.constant 167 : index
    %778 = memref.load %arg3[%c167] : memref<288xf32, #tpu.memory_space<smem>>
    %779 = vector.broadcast %778 : f32 to vector<8x16xf32>
    %780 = arith.mulf %779, %34 : vector<8x16xf32>
    %781 = arith.addf %777, %780 : vector<8x16xf32>
    %c168 = arith.constant 168 : index
    %782 = memref.load %arg3[%c168] : memref<288xf32, #tpu.memory_space<smem>>
    %783 = vector.broadcast %782 : f32 to vector<8x16xf32>
    %784 = arith.mulf %783, %35 : vector<8x16xf32>
    %785 = arith.addf %781, %784 : vector<8x16xf32>
    %c169 = arith.constant 169 : index
    %786 = memref.load %arg3[%c169] : memref<288xf32, #tpu.memory_space<smem>>
    %787 = vector.broadcast %786 : f32 to vector<8x16xf32>
    %788 = arith.mulf %787, %36 : vector<8x16xf32>
    %789 = arith.addf %785, %788 : vector<8x16xf32>
    %c170 = arith.constant 170 : index
    %790 = memref.load %arg3[%c170] : memref<288xf32, #tpu.memory_space<smem>>
    %791 = vector.broadcast %790 : f32 to vector<8x16xf32>
    %792 = arith.mulf %791, %37 : vector<8x16xf32>
    %793 = arith.addf %789, %792 : vector<8x16xf32>
    %c171 = arith.constant 171 : index
    %794 = memref.load %arg3[%c171] : memref<288xf32, #tpu.memory_space<smem>>
    %795 = vector.broadcast %794 : f32 to vector<8x16xf32>
    %796 = arith.mulf %795, %40 : vector<8x16xf32>
    %797 = arith.addf %793, %796 : vector<8x16xf32>
    %c172 = arith.constant 172 : index
    %798 = memref.load %arg3[%c172] : memref<288xf32, #tpu.memory_space<smem>>
    %799 = vector.broadcast %798 : f32 to vector<8x16xf32>
    %800 = arith.mulf %799, %41 : vector<8x16xf32>
    %801 = arith.addf %797, %800 : vector<8x16xf32>
    %c173 = arith.constant 173 : index
    %802 = memref.load %arg3[%c173] : memref<288xf32, #tpu.memory_space<smem>>
    %803 = vector.broadcast %802 : f32 to vector<8x16xf32>
    %804 = arith.mulf %803, %42 : vector<8x16xf32>
    %805 = arith.addf %801, %804 : vector<8x16xf32>
    %c174 = arith.constant 174 : index
    %806 = memref.load %arg3[%c174] : memref<288xf32, #tpu.memory_space<smem>>
    %807 = vector.broadcast %806 : f32 to vector<8x16xf32>
    %808 = arith.mulf %807, %43 : vector<8x16xf32>
    %809 = arith.addf %805, %808 : vector<8x16xf32>
    %c175 = arith.constant 175 : index
    %810 = memref.load %arg3[%c175] : memref<288xf32, #tpu.memory_space<smem>>
    %811 = vector.broadcast %810 : f32 to vector<8x16xf32>
    %812 = arith.mulf %811, %44 : vector<8x16xf32>
    %813 = arith.addf %809, %812 : vector<8x16xf32>
    %c176 = arith.constant 176 : index
    %814 = memref.load %arg3[%c176] : memref<288xf32, #tpu.memory_space<smem>>
    %815 = vector.broadcast %814 : f32 to vector<8x16xf32>
    %816 = arith.mulf %815, %45 : vector<8x16xf32>
    %817 = arith.addf %813, %816 : vector<8x16xf32>
    %c177 = arith.constant 177 : index
    %818 = memref.load %arg3[%c177] : memref<288xf32, #tpu.memory_space<smem>>
    %819 = vector.broadcast %818 : f32 to vector<8x16xf32>
    %820 = arith.mulf %819, %46 : vector<8x16xf32>
    %821 = arith.addf %817, %820 : vector<8x16xf32>
    %c178 = arith.constant 178 : index
    %822 = memref.load %arg3[%c178] : memref<288xf32, #tpu.memory_space<smem>>
    %823 = vector.broadcast %822 : f32 to vector<8x16xf32>
    %824 = arith.mulf %823, %47 : vector<8x16xf32>
    %825 = arith.addf %821, %824 : vector<8x16xf32>
    %c179 = arith.constant 179 : index
    %826 = memref.load %arg3[%c179] : memref<288xf32, #tpu.memory_space<smem>>
    %827 = vector.broadcast %826 : f32 to vector<8x16xf32>
    %828 = arith.mulf %827, %48 : vector<8x16xf32>
    %829 = arith.addf %825, %828 : vector<8x16xf32>
    %c4_39 = arith.constant 4 : index
    %830 = memref.load %arg4[%c4_39] : memref<8xf32, #tpu.memory_space<smem>>
    %831 = vector.broadcast %830 : f32 to vector<8x16xf32>
    %832 = arith.addf %829, %831 : vector<8x16xf32>
    %cst_40 = arith.constant 0.000000e+00 : f32
    %833 = vector.broadcast %cst_40 : f32 to vector<8x16xf32>
    %834 = arith.subf %833, %832 : vector<8x16xf32>
    %835 = math.exp %834 : vector<8x16xf32>
    %cst_41 = arith.constant 1.000000e+00 : f32
    %836 = vector.broadcast %cst_41 : f32 to vector<8x16xf32>
    %837 = arith.addf %836, %835 : vector<8x16xf32>
    %cst_42 = arith.constant 1.000000e+00 : f32
    %838 = vector.broadcast %cst_42 : f32 to vector<8x16xf32>
    %839 = arith.divf %838, %837 : vector<8x16xf32>
    %840 = arith.mulf %832, %839 : vector<8x16xf32>
    %c0_43 = arith.constant 0 : index
    %c4_44 = arith.constant 4 : index
    %c0_45 = arith.constant 0 : index
    %c0_46 = arith.constant 0 : index
    %841 = vector.load %arg5[%c0_43, %c4_44, %c0_45, %c0_46] : memref<1x8x8x16xf32, #tpu.memory_space<vmem>>, vector<1x1x8x16xf32>
    %842 = vector.shape_cast %841 : vector<1x1x8x16xf32> to vector<8x16xf32>
    %843 = vector.shape_cast %840 : vector<8x16xf32> to vector<1x1x8x16xf32>
    tpu.vector_store %arg5[%c0_43, %c4_44, %c0_45, %c0_46], %843 {strides = array<i32>} : memref<1x8x8x16xf32, #tpu.memory_space<vmem>>, vector<1x1x8x16xf32>,
    %cst_47 = arith.constant 0.000000e+00 : f32
    %844 = vector.broadcast %cst_47 : f32 to vector<8x16xf32>
    %c180 = arith.constant 180 : index
    %845 = memref.load %arg3[%c180] : memref<288xf32, #tpu.memory_space<smem>>
    %846 = vector.broadcast %845 : f32 to vector<8x16xf32>
    %847 = arith.mulf %846, %7 : vector<8x16xf32>
    %848 = arith.addf %844, %847 : vector<8x16xf32>
    %c181 = arith.constant 181 : index
    %849 = memref.load %arg3[%c181] : memref<288xf32, #tpu.memory_space<smem>>
    %850 = vector.broadcast %849 : f32 to vector<8x16xf32>
    %851 = arith.mulf %850, %8 : vector<8x16xf32>
    %852 = arith.addf %848, %851 : vector<8x16xf32>
    %c182 = arith.constant 182 : index
    %853 = memref.load %arg3[%c182] : memref<288xf32, #tpu.memory_space<smem>>
    %854 = vector.broadcast %853 : f32 to vector<8x16xf32>
    %855 = arith.mulf %854, %9 : vector<8x16xf32>
    %856 = arith.addf %852, %855 : vector<8x16xf32>
    %c183 = arith.constant 183 : index
    %857 = memref.load %arg3[%c183] : memref<288xf32, #tpu.memory_space<smem>>
    %858 = vector.broadcast %857 : f32 to vector<8x16xf32>
    %859 = arith.mulf %858, %10 : vector<8x16xf32>
    %860 = arith.addf %856, %859 : vector<8x16xf32>
    %c184 = arith.constant 184 : index
    %861 = memref.load %arg3[%c184] : memref<288xf32, #tpu.memory_space<smem>>
    %862 = vector.broadcast %861 : f32 to vector<8x16xf32>
    %863 = arith.mulf %862, %11 : vector<8x16xf32>
    %864 = arith.addf %860, %863 : vector<8x16xf32>
    %c185 = arith.constant 185 : index
    %865 = memref.load %arg3[%c185] : memref<288xf32, #tpu.memory_space<smem>>
    %866 = vector.broadcast %865 : f32 to vector<8x16xf32>
    %867 = arith.mulf %866, %12 : vector<8x16xf32>
    %868 = arith.addf %864, %867 : vector<8x16xf32>
    %c186 = arith.constant 186 : index
    %869 = memref.load %arg3[%c186] : memref<288xf32, #tpu.memory_space<smem>>
    %870 = vector.broadcast %869 : f32 to vector<8x16xf32>
    %871 = arith.mulf %870, %13 : vector<8x16xf32>
    %872 = arith.addf %868, %871 : vector<8x16xf32>
    %c187 = arith.constant 187 : index
    %873 = memref.load %arg3[%c187] : memref<288xf32, #tpu.memory_space<smem>>
    %874 = vector.broadcast %873 : f32 to vector<8x16xf32>
    %875 = arith.mulf %874, %14 : vector<8x16xf32>
    %876 = arith.addf %872, %875 : vector<8x16xf32>
    %c188 = arith.constant 188 : index
    %877 = memref.load %arg3[%c188] : memref<288xf32, #tpu.memory_space<smem>>
    %878 = vector.broadcast %877 : f32 to vector<8x16xf32>
    %879 = arith.mulf %878, %15 : vector<8x16xf32>
    %880 = arith.addf %876, %879 : vector<8x16xf32>
    %c189 = arith.constant 189 : index
    %881 = memref.load %arg3[%c189] : memref<288xf32, #tpu.memory_space<smem>>
    %882 = vector.broadcast %881 : f32 to vector<8x16xf32>
    %883 = arith.mulf %882, %18 : vector<8x16xf32>
    %884 = arith.addf %880, %883 : vector<8x16xf32>
    %c190 = arith.constant 190 : index
    %885 = memref.load %arg3[%c190] : memref<288xf32, #tpu.memory_space<smem>>
    %886 = vector.broadcast %885 : f32 to vector<8x16xf32>
    %887 = arith.mulf %886, %19 : vector<8x16xf32>
    %888 = arith.addf %884, %887 : vector<8x16xf32>
    %c191 = arith.constant 191 : index
    %889 = memref.load %arg3[%c191] : memref<288xf32, #tpu.memory_space<smem>>
    %890 = vector.broadcast %889 : f32 to vector<8x16xf32>
    %891 = arith.mulf %890, %20 : vector<8x16xf32>
    %892 = arith.addf %888, %891 : vector<8x16xf32>
    %c192 = arith.constant 192 : index
    %893 = memref.load %arg3[%c192] : memref<288xf32, #tpu.memory_space<smem>>
    %894 = vector.broadcast %893 : f32 to vector<8x16xf32>
    %895 = arith.mulf %894, %21 : vector<8x16xf32>
    %896 = arith.addf %892, %895 : vector<8x16xf32>
    %c193 = arith.constant 193 : index
    %897 = memref.load %arg3[%c193] : memref<288xf32, #tpu.memory_space<smem>>
    %898 = vector.broadcast %897 : f32 to vector<8x16xf32>
    %899 = arith.mulf %898, %22 : vector<8x16xf32>
    %900 = arith.addf %896, %899 : vector<8x16xf32>
    %c194 = arith.constant 194 : index
    %901 = memref.load %arg3[%c194] : memref<288xf32, #tpu.memory_space<smem>>
    %902 = vector.broadcast %901 : f32 to vector<8x16xf32>
    %903 = arith.mulf %902, %23 : vector<8x16xf32>
    %904 = arith.addf %900, %903 : vector<8x16xf32>
    %c195 = arith.constant 195 : index
    %905 = memref.load %arg3[%c195] : memref<288xf32, #tpu.memory_space<smem>>
    %906 = vector.broadcast %905 : f32 to vector<8x16xf32>
    %907 = arith.mulf %906, %24 : vector<8x16xf32>
    %908 = arith.addf %904, %907 : vector<8x16xf32>
    %c196 = arith.constant 196 : index
    %909 = memref.load %arg3[%c196] : memref<288xf32, #tpu.memory_space<smem>>
    %910 = vector.broadcast %909 : f32 to vector<8x16xf32>
    %911 = arith.mulf %910, %25 : vector<8x16xf32>
    %912 = arith.addf %908, %911 : vector<8x16xf32>
    %c197 = arith.constant 197 : index
    %913 = memref.load %arg3[%c197] : memref<288xf32, #tpu.memory_space<smem>>
    %914 = vector.broadcast %913 : f32 to vector<8x16xf32>
    %915 = arith.mulf %914, %26 : vector<8x16xf32>
    %916 = arith.addf %912, %915 : vector<8x16xf32>
    %c198 = arith.constant 198 : index
    %917 = memref.load %arg3[%c198] : memref<288xf32, #tpu.memory_space<smem>>
    %918 = vector.broadcast %917 : f32 to vector<8x16xf32>
    %919 = arith.mulf %918, %29 : vector<8x16xf32>
    %920 = arith.addf %916, %919 : vector<8x16xf32>
    %c199 = arith.constant 199 : index
    %921 = memref.load %arg3[%c199] : memref<288xf32, #tpu.memory_space<smem>>
    %922 = vector.broadcast %921 : f32 to vector<8x16xf32>
    %923 = arith.mulf %922, %30 : vector<8x16xf32>
    %924 = arith.addf %920, %923 : vector<8x16xf32>
    %c200 = arith.constant 200 : index
    %925 = memref.load %arg3[%c200] : memref<288xf32, #tpu.memory_space<smem>>
    %926 = vector.broadcast %925 : f32 to vector<8x16xf32>
    %927 = arith.mulf %926, %31 : vector<8x16xf32>
    %928 = arith.addf %924, %927 : vector<8x16xf32>
    %c201 = arith.constant 201 : index
    %929 = memref.load %arg3[%c201] : memref<288xf32, #tpu.memory_space<smem>>
    %930 = vector.broadcast %929 : f32 to vector<8x16xf32>
    %931 = arith.mulf %930, %32 : vector<8x16xf32>
    %932 = arith.addf %928, %931 : vector<8x16xf32>
    %c202 = arith.constant 202 : index
    %933 = memref.load %arg3[%c202] : memref<288xf32, #tpu.memory_space<smem>>
    %934 = vector.broadcast %933 : f32 to vector<8x16xf32>
    %935 = arith.mulf %934, %33 : vector<8x16xf32>
    %936 = arith.addf %932, %935 : vector<8x16xf32>
    %c203 = arith.constant 203 : index
    %937 = memref.load %arg3[%c203] : memref<288xf32, #tpu.memory_space<smem>>
    %938 = vector.broadcast %937 : f32 to vector<8x16xf32>
    %939 = arith.mulf %938, %34 : vector<8x16xf32>
    %940 = arith.addf %936, %939 : vector<8x16xf32>
    %c204 = arith.constant 204 : index
    %941 = memref.load %arg3[%c204] : memref<288xf32, #tpu.memory_space<smem>>
    %942 = vector.broadcast %941 : f32 to vector<8x16xf32>
    %943 = arith.mulf %942, %35 : vector<8x16xf32>
    %944 = arith.addf %940, %943 : vector<8x16xf32>
    %c205 = arith.constant 205 : index
    %945 = memref.load %arg3[%c205] : memref<288xf32, #tpu.memory_space<smem>>
    %946 = vector.broadcast %945 : f32 to vector<8x16xf32>
    %947 = arith.mulf %946, %36 : vector<8x16xf32>
    %948 = arith.addf %944, %947 : vector<8x16xf32>
    %c206 = arith.constant 206 : index
    %949 = memref.load %arg3[%c206] : memref<288xf32, #tpu.memory_space<smem>>
    %950 = vector.broadcast %949 : f32 to vector<8x16xf32>
    %951 = arith.mulf %950, %37 : vector<8x16xf32>
    %952 = arith.addf %948, %951 : vector<8x16xf32>
    %c207 = arith.constant 207 : index
    %953 = memref.load %arg3[%c207] : memref<288xf32, #tpu.memory_space<smem>>
    %954 = vector.broadcast %953 : f32 to vector<8x16xf32>
    %955 = arith.mulf %954, %40 : vector<8x16xf32>
    %956 = arith.addf %952, %955 : vector<8x16xf32>
    %c208 = arith.constant 208 : index
    %957 = memref.load %arg3[%c208] : memref<288xf32, #tpu.memory_space<smem>>
    %958 = vector.broadcast %957 : f32 to vector<8x16xf32>
    %959 = arith.mulf %958, %41 : vector<8x16xf32>
    %960 = arith.addf %956, %959 : vector<8x16xf32>
    %c209 = arith.constant 209 : index
    %961 = memref.load %arg3[%c209] : memref<288xf32, #tpu.memory_space<smem>>
    %962 = vector.broadcast %961 : f32 to vector<8x16xf32>
    %963 = arith.mulf %962, %42 : vector<8x16xf32>
    %964 = arith.addf %960, %963 : vector<8x16xf32>
    %c210 = arith.constant 210 : index
    %965 = memref.load %arg3[%c210] : memref<288xf32, #tpu.memory_space<smem>>
    %966 = vector.broadcast %965 : f32 to vector<8x16xf32>
    %967 = arith.mulf %966, %43 : vector<8x16xf32>
    %968 = arith.addf %964, %967 : vector<8x16xf32>
    %c211 = arith.constant 211 : index
    %969 = memref.load %arg3[%c211] : memref<288xf32, #tpu.memory_space<smem>>
    %970 = vector.broadcast %969 : f32 to vector<8x16xf32>
    %971 = arith.mulf %970, %44 : vector<8x16xf32>
    %972 = arith.addf %968, %971 : vector<8x16xf32>
    %c212 = arith.constant 212 : index
    %973 = memref.load %arg3[%c212] : memref<288xf32, #tpu.memory_space<smem>>
    %974 = vector.broadcast %973 : f32 to vector<8x16xf32>
    %975 = arith.mulf %974, %45 : vector<8x16xf32>
    %976 = arith.addf %972, %975 : vector<8x16xf32>
    %c213 = arith.constant 213 : index
    %977 = memref.load %arg3[%c213] : memref<288xf32, #tpu.memory_space<smem>>
    %978 = vector.broadcast %977 : f32 to vector<8x16xf32>
    %979 = arith.mulf %978, %46 : vector<8x16xf32>
    %980 = arith.addf %976, %979 : vector<8x16xf32>
    %c214 = arith.constant 214 : index
    %981 = memref.load %arg3[%c214] : memref<288xf32, #tpu.memory_space<smem>>
    %982 = vector.broadcast %981 : f32 to vector<8x16xf32>
    %983 = arith.mulf %982, %47 : vector<8x16xf32>
    %984 = arith.addf %980, %983 : vector<8x16xf32>
    %c215 = arith.constant 215 : index
    %985 = memref.load %arg3[%c215] : memref<288xf32, #tpu.memory_space<smem>>
    %986 = vector.broadcast %985 : f32 to vector<8x16xf32>
    %987 = arith.mulf %986, %48 : vector<8x16xf32>
    %988 = arith.addf %984, %987 : vector<8x16xf32>
    %c5_48 = arith.constant 5 : index
    %989 = memref.load %arg4[%c5_48] : memref<8xf32, #tpu.memory_space<smem>>
    %990 = vector.broadcast %989 : f32 to vector<8x16xf32>
    %991 = arith.addf %988, %990 : vector<8x16xf32>
    %cst_49 = arith.constant 0.000000e+00 : f32
    %992 = vector.broadcast %cst_49 : f32 to vector<8x16xf32>
    %993 = arith.subf %992, %991 : vector<8x16xf32>
    %994 = math.exp %993 : vector<8x16xf32>
    %cst_50 = arith.constant 1.000000e+00 : f32
    %995 = vector.broadcast %cst_50 : f32 to vector<8x16xf32>
    %996 = arith.addf %995, %994 : vector<8x16xf32>
    %cst_51 = arith.constant 1.000000e+00 : f32
    %997 = vector.broadcast %cst_51 : f32 to vector<8x16xf32>
    %998 = arith.divf %997, %996 : vector<8x16xf32>
    %999 = arith.mulf %991, %998 : vector<8x16xf32>
    %c0_52 = arith.constant 0 : index
    %c5_53 = arith.constant 5 : index
    %c0_54 = arith.constant 0 : index
    %c0_55 = arith.constant 0 : index
    %1000 = vector.load %arg5[%c0_52, %c5_53, %c0_54, %c0_55] : memref<1x8x8x16xf32, #tpu.memory_space<vmem>>, vector<1x1x8x16xf32>
    %1001 = vector.shape_cast %1000 : vector<1x1x8x16xf32> to vector<8x16xf32>
    %1002 = vector.shape_cast %999 : vector<8x16xf32> to vector<1x1x8x16xf32>
    tpu.vector_store %arg5[%c0_52, %c5_53, %c0_54, %c0_55], %1002 {strides = array<i32>} : memref<1x8x8x16xf32, #tpu.memory_space<vmem>>, vector<1x1x8x16xf32>,
    %cst_56 = arith.constant 0.000000e+00 : f32
    %1003 = vector.broadcast %cst_56 : f32 to vector<8x16xf32>
    %c216 = arith.constant 216 : index
    %1004 = memref.load %arg3[%c216] : memref<288xf32, #tpu.memory_space<smem>>
    %1005 = vector.broadcast %1004 : f32 to vector<8x16xf32>
    %1006 = arith.mulf %1005, %7 : vector<8x16xf32>
    %1007 = arith.addf %1003, %1006 : vector<8x16xf32>
    %c217 = arith.constant 217 : index
    %1008 = memref.load %arg3[%c217] : memref<288xf32, #tpu.memory_space<smem>>
    %1009 = vector.broadcast %1008 : f32 to vector<8x16xf32>
    %1010 = arith.mulf %1009, %8 : vector<8x16xf32>
    %1011 = arith.addf %1007, %1010 : vector<8x16xf32>
    %c218 = arith.constant 218 : index
    %1012 = memref.load %arg3[%c218] : memref<288xf32, #tpu.memory_space<smem>>
    %1013 = vector.broadcast %1012 : f32 to vector<8x16xf32>
    %1014 = arith.mulf %1013, %9 : vector<8x16xf32>
    %1015 = arith.addf %1011, %1014 : vector<8x16xf32>
    %c219 = arith.constant 219 : index
    %1016 = memref.load %arg3[%c219] : memref<288xf32, #tpu.memory_space<smem>>
    %1017 = vector.broadcast %1016 : f32 to vector<8x16xf32>
    %1018 = arith.mulf %1017, %10 : vector<8x16xf32>
    %1019 = arith.addf %1015, %1018 : vector<8x16xf32>
    %c220 = arith.constant 220 : index
    %1020 = memref.load %arg3[%c220] : memref<288xf32, #tpu.memory_space<smem>>
    %1021 = vector.broadcast %1020 : f32 to vector<8x16xf32>
    %1022 = arith.mulf %1021, %11 : vector<8x16xf32>
    %1023 = arith.addf %1019, %1022 : vector<8x16xf32>
    %c221 = arith.constant 221 : index
    %1024 = memref.load %arg3[%c221] : memref<288xf32, #tpu.memory_space<smem>>
    %1025 = vector.broadcast %1024 : f32 to vector<8x16xf32>
    %1026 = arith.mulf %1025, %12 : vector<8x16xf32>
    %1027 = arith.addf %1023, %1026 : vector<8x16xf32>
    %c222 = arith.constant 222 : index
    %1028 = memref.load %arg3[%c222] : memref<288xf32, #tpu.memory_space<smem>>
    %1029 = vector.broadcast %1028 : f32 to vector<8x16xf32>
    %1030 = arith.mulf %1029, %13 : vector<8x16xf32>
    %1031 = arith.addf %1027, %1030 : vector<8x16xf32>
    %c223 = arith.constant 223 : index
    %1032 = memref.load %arg3[%c223] : memref<288xf32, #tpu.memory_space<smem>>
    %1033 = vector.broadcast %1032 : f32 to vector<8x16xf32>
    %1034 = arith.mulf %1033, %14 : vector<8x16xf32>
    %1035 = arith.addf %1031, %1034 : vector<8x16xf32>
    %c224 = arith.constant 224 : index
    %1036 = memref.load %arg3[%c224] : memref<288xf32, #tpu.memory_space<smem>>
    %1037 = vector.broadcast %1036 : f32 to vector<8x16xf32>
    %1038 = arith.mulf %1037, %15 : vector<8x16xf32>
    %1039 = arith.addf %1035, %1038 : vector<8x16xf32>
    %c225 = arith.constant 225 : index
    %1040 = memref.load %arg3[%c225] : memref<288xf32, #tpu.memory_space<smem>>
    %1041 = vector.broadcast %1040 : f32 to vector<8x16xf32>
    %1042 = arith.mulf %1041, %18 : vector<8x16xf32>
    %1043 = arith.addf %1039, %1042 : vector<8x16xf32>
    %c226 = arith.constant 226 : index
    %1044 = memref.load %arg3[%c226] : memref<288xf32, #tpu.memory_space<smem>>
    %1045 = vector.broadcast %1044 : f32 to vector<8x16xf32>
    %1046 = arith.mulf %1045, %19 : vector<8x16xf32>
    %1047 = arith.addf %1043, %1046 : vector<8x16xf32>
    %c227 = arith.constant 227 : index
    %1048 = memref.load %arg3[%c227] : memref<288xf32, #tpu.memory_space<smem>>
    %1049 = vector.broadcast %1048 : f32 to vector<8x16xf32>
    %1050 = arith.mulf %1049, %20 : vector<8x16xf32>
    %1051 = arith.addf %1047, %1050 : vector<8x16xf32>
    %c228 = arith.constant 228 : index
    %1052 = memref.load %arg3[%c228] : memref<288xf32, #tpu.memory_space<smem>>
    %1053 = vector.broadcast %1052 : f32 to vector<8x16xf32>
    %1054 = arith.mulf %1053, %21 : vector<8x16xf32>
    %1055 = arith.addf %1051, %1054 : vector<8x16xf32>
    %c229 = arith.constant 229 : index
    %1056 = memref.load %arg3[%c229] : memref<288xf32, #tpu.memory_space<smem>>
    %1057 = vector.broadcast %1056 : f32 to vector<8x16xf32>
    %1058 = arith.mulf %1057, %22 : vector<8x16xf32>
    %1059 = arith.addf %1055, %1058 : vector<8x16xf32>
    %c230 = arith.constant 230 : index
    %1060 = memref.load %arg3[%c230] : memref<288xf32, #tpu.memory_space<smem>>
    %1061 = vector.broadcast %1060 : f32 to vector<8x16xf32>
    %1062 = arith.mulf %1061, %23 : vector<8x16xf32>
    %1063 = arith.addf %1059, %1062 : vector<8x16xf32>
    %c231 = arith.constant 231 : index
    %1064 = memref.load %arg3[%c231] : memref<288xf32, #tpu.memory_space<smem>>
    %1065 = vector.broadcast %1064 : f32 to vector<8x16xf32>
    %1066 = arith.mulf %1065, %24 : vector<8x16xf32>
    %1067 = arith.addf %1063, %1066 : vector<8x16xf32>
    %c232 = arith.constant 232 : index
    %1068 = memref.load %arg3[%c232] : memref<288xf32, #tpu.memory_space<smem>>
    %1069 = vector.broadcast %1068 : f32 to vector<8x16xf32>
    %1070 = arith.mulf %1069, %25 : vector<8x16xf32>
    %1071 = arith.addf %1067, %1070 : vector<8x16xf32>
    %c233 = arith.constant 233 : index
    %1072 = memref.load %arg3[%c233] : memref<288xf32, #tpu.memory_space<smem>>
    %1073 = vector.broadcast %1072 : f32 to vector<8x16xf32>
    %1074 = arith.mulf %1073, %26 : vector<8x16xf32>
    %1075 = arith.addf %1071, %1074 : vector<8x16xf32>
    %c234 = arith.constant 234 : index
    %1076 = memref.load %arg3[%c234] : memref<288xf32, #tpu.memory_space<smem>>
    %1077 = vector.broadcast %1076 : f32 to vector<8x16xf32>
    %1078 = arith.mulf %1077, %29 : vector<8x16xf32>
    %1079 = arith.addf %1075, %1078 : vector<8x16xf32>
    %c235 = arith.constant 235 : index
    %1080 = memref.load %arg3[%c235] : memref<288xf32, #tpu.memory_space<smem>>
    %1081 = vector.broadcast %1080 : f32 to vector<8x16xf32>
    %1082 = arith.mulf %1081, %30 : vector<8x16xf32>
    %1083 = arith.addf %1079, %1082 : vector<8x16xf32>
    %c236 = arith.constant 236 : index
    %1084 = memref.load %arg3[%c236] : memref<288xf32, #tpu.memory_space<smem>>
    %1085 = vector.broadcast %1084 : f32 to vector<8x16xf32>
    %1086 = arith.mulf %1085, %31 : vector<8x16xf32>
    %1087 = arith.addf %1083, %1086 : vector<8x16xf32>
    %c237 = arith.constant 237 : index
    %1088 = memref.load %arg3[%c237] : memref<288xf32, #tpu.memory_space<smem>>
    %1089 = vector.broadcast %1088 : f32 to vector<8x16xf32>
    %1090 = arith.mulf %1089, %32 : vector<8x16xf32>
    %1091 = arith.addf %1087, %1090 : vector<8x16xf32>
    %c238 = arith.constant 238 : index
    %1092 = memref.load %arg3[%c238] : memref<288xf32, #tpu.memory_space<smem>>
    %1093 = vector.broadcast %1092 : f32 to vector<8x16xf32>
    %1094 = arith.mulf %1093, %33 : vector<8x16xf32>
    %1095 = arith.addf %1091, %1094 : vector<8x16xf32>
    %c239 = arith.constant 239 : index
    %1096 = memref.load %arg3[%c239] : memref<288xf32, #tpu.memory_space<smem>>
    %1097 = vector.broadcast %1096 : f32 to vector<8x16xf32>
    %1098 = arith.mulf %1097, %34 : vector<8x16xf32>
    %1099 = arith.addf %1095, %1098 : vector<8x16xf32>
    %c240 = arith.constant 240 : index
    %1100 = memref.load %arg3[%c240] : memref<288xf32, #tpu.memory_space<smem>>
    %1101 = vector.broadcast %1100 : f32 to vector<8x16xf32>
    %1102 = arith.mulf %1101, %35 : vector<8x16xf32>
    %1103 = arith.addf %1099, %1102 : vector<8x16xf32>
    %c241 = arith.constant 241 : index
    %1104 = memref.load %arg3[%c241] : memref<288xf32, #tpu.memory_space<smem>>
    %1105 = vector.broadcast %1104 : f32 to vector<8x16xf32>
    %1106 = arith.mulf %1105, %36 : vector<8x16xf32>
    %1107 = arith.addf %1103, %1106 : vector<8x16xf32>
    %c242 = arith.constant 242 : index
    %1108 = memref.load %arg3[%c242] : memref<288xf32, #tpu.memory_space<smem>>
    %1109 = vector.broadcast %1108 : f32 to vector<8x16xf32>
    %1110 = arith.mulf %1109, %37 : vector<8x16xf32>
    %1111 = arith.addf %1107, %1110 : vector<8x16xf32>
    %c243 = arith.constant 243 : index
    %1112 = memref.load %arg3[%c243] : memref<288xf32, #tpu.memory_space<smem>>
    %1113 = vector.broadcast %1112 : f32 to vector<8x16xf32>
    %1114 = arith.mulf %1113, %40 : vector<8x16xf32>
    %1115 = arith.addf %1111, %1114 : vector<8x16xf32>
    %c244 = arith.constant 244 : index
    %1116 = memref.load %arg3[%c244] : memref<288xf32, #tpu.memory_space<smem>>
    %1117 = vector.broadcast %1116 : f32 to vector<8x16xf32>
    %1118 = arith.mulf %1117, %41 : vector<8x16xf32>
    %1119 = arith.addf %1115, %1118 : vector<8x16xf32>
    %c245 = arith.constant 245 : index
    %1120 = memref.load %arg3[%c245] : memref<288xf32, #tpu.memory_space<smem>>
    %1121 = vector.broadcast %1120 : f32 to vector<8x16xf32>
    %1122 = arith.mulf %1121, %42 : vector<8x16xf32>
    %1123 = arith.addf %1119, %1122 : vector<8x16xf32>
    %c246 = arith.constant 246 : index
    %1124 = memref.load %arg3[%c246] : memref<288xf32, #tpu.memory_space<smem>>
    %1125 = vector.broadcast %1124 : f32 to vector<8x16xf32>
    %1126 = arith.mulf %1125, %43 : vector<8x16xf32>
    %1127 = arith.addf %1123, %1126 : vector<8x16xf32>
    %c247 = arith.constant 247 : index
    %1128 = memref.load %arg3[%c247] : memref<288xf32, #tpu.memory_space<smem>>
    %1129 = vector.broadcast %1128 : f32 to vector<8x16xf32>
    %1130 = arith.mulf %1129, %44 : vector<8x16xf32>
    %1131 = arith.addf %1127, %1130 : vector<8x16xf32>
    %c248 = arith.constant 248 : index
    %1132 = memref.load %arg3[%c248] : memref<288xf32, #tpu.memory_space<smem>>
    %1133 = vector.broadcast %1132 : f32 to vector<8x16xf32>
    %1134 = arith.mulf %1133, %45 : vector<8x16xf32>
    %1135 = arith.addf %1131, %1134 : vector<8x16xf32>
    %c249 = arith.constant 249 : index
    %1136 = memref.load %arg3[%c249] : memref<288xf32, #tpu.memory_space<smem>>
    %1137 = vector.broadcast %1136 : f32 to vector<8x16xf32>
    %1138 = arith.mulf %1137, %46 : vector<8x16xf32>
    %1139 = arith.addf %1135, %1138 : vector<8x16xf32>
    %c250 = arith.constant 250 : index
    %1140 = memref.load %arg3[%c250] : memref<288xf32, #tpu.memory_space<smem>>
    %1141 = vector.broadcast %1140 : f32 to vector<8x16xf32>
    %1142 = arith.mulf %1141, %47 : vector<8x16xf32>
    %1143 = arith.addf %1139, %1142 : vector<8x16xf32>
    %c251 = arith.constant 251 : index
    %1144 = memref.load %arg3[%c251] : memref<288xf32, #tpu.memory_space<smem>>
    %1145 = vector.broadcast %1144 : f32 to vector<8x16xf32>
    %1146 = arith.mulf %1145, %48 : vector<8x16xf32>
    %1147 = arith.addf %1143, %1146 : vector<8x16xf32>
    %c6_57 = arith.constant 6 : index
    %1148 = memref.load %arg4[%c6_57] : memref<8xf32, #tpu.memory_space<smem>>
    %1149 = vector.broadcast %1148 : f32 to vector<8x16xf32>
    %1150 = arith.addf %1147, %1149 : vector<8x16xf32>
    %cst_58 = arith.constant 0.000000e+00 : f32
    %1151 = vector.broadcast %cst_58 : f32 to vector<8x16xf32>
    %1152 = arith.subf %1151, %1150 : vector<8x16xf32>
    %1153 = math.exp %1152 : vector<8x16xf32>
    %cst_59 = arith.constant 1.000000e+00 : f32
    %1154 = vector.broadcast %cst_59 : f32 to vector<8x16xf32>
    %1155 = arith.addf %1154, %1153 : vector<8x16xf32>
    %cst_60 = arith.constant 1.000000e+00 : f32
    %1156 = vector.broadcast %cst_60 : f32 to vector<8x16xf32>
    %1157 = arith.divf %1156, %1155 : vector<8x16xf32>
    %1158 = arith.mulf %1150, %1157 : vector<8x16xf32>
    %c0_61 = arith.constant 0 : index
    %c6_62 = arith.constant 6 : index
    %c0_63 = arith.constant 0 : index
    %c0_64 = arith.constant 0 : index
    %1159 = vector.load %arg5[%c0_61, %c6_62, %c0_63, %c0_64] : memref<1x8x8x16xf32, #tpu.memory_space<vmem>>, vector<1x1x8x16xf32>
    %1160 = vector.shape_cast %1159 : vector<1x1x8x16xf32> to vector<8x16xf32>
    %1161 = vector.shape_cast %1158 : vector<8x16xf32> to vector<1x1x8x16xf32>
    tpu.vector_store %arg5[%c0_61, %c6_62, %c0_63, %c0_64], %1161 {strides = array<i32>} : memref<1x8x8x16xf32, #tpu.memory_space<vmem>>, vector<1x1x8x16xf32>,
    %cst_65 = arith.constant 0.000000e+00 : f32
    %1162 = vector.broadcast %cst_65 : f32 to vector<8x16xf32>
    %c252 = arith.constant 252 : index
    %1163 = memref.load %arg3[%c252] : memref<288xf32, #tpu.memory_space<smem>>
    %1164 = vector.broadcast %1163 : f32 to vector<8x16xf32>
    %1165 = arith.mulf %1164, %7 : vector<8x16xf32>
    %1166 = arith.addf %1162, %1165 : vector<8x16xf32>
    %c253 = arith.constant 253 : index
    %1167 = memref.load %arg3[%c253] : memref<288xf32, #tpu.memory_space<smem>>
    %1168 = vector.broadcast %1167 : f32 to vector<8x16xf32>
    %1169 = arith.mulf %1168, %8 : vector<8x16xf32>
    %1170 = arith.addf %1166, %1169 : vector<8x16xf32>
    %c254 = arith.constant 254 : index
    %1171 = memref.load %arg3[%c254] : memref<288xf32, #tpu.memory_space<smem>>
    %1172 = vector.broadcast %1171 : f32 to vector<8x16xf32>
    %1173 = arith.mulf %1172, %9 : vector<8x16xf32>
    %1174 = arith.addf %1170, %1173 : vector<8x16xf32>
    %c255 = arith.constant 255 : index
    %1175 = memref.load %arg3[%c255] : memref<288xf32, #tpu.memory_space<smem>>
    %1176 = vector.broadcast %1175 : f32 to vector<8x16xf32>
    %1177 = arith.mulf %1176, %10 : vector<8x16xf32>
    %1178 = arith.addf %1174, %1177 : vector<8x16xf32>
    %c256 = arith.constant 256 : index
    %1179 = memref.load %arg3[%c256] : memref<288xf32, #tpu.memory_space<smem>>
    %1180 = vector.broadcast %1179 : f32 to vector<8x16xf32>
    %1181 = arith.mulf %1180, %11 : vector<8x16xf32>
    %1182 = arith.addf %1178, %1181 : vector<8x16xf32>
    %c257 = arith.constant 257 : index
    %1183 = memref.load %arg3[%c257] : memref<288xf32, #tpu.memory_space<smem>>
    %1184 = vector.broadcast %1183 : f32 to vector<8x16xf32>
    %1185 = arith.mulf %1184, %12 : vector<8x16xf32>
    %1186 = arith.addf %1182, %1185 : vector<8x16xf32>
    %c258 = arith.constant 258 : index
    %1187 = memref.load %arg3[%c258] : memref<288xf32, #tpu.memory_space<smem>>
    %1188 = vector.broadcast %1187 : f32 to vector<8x16xf32>
    %1189 = arith.mulf %1188, %13 : vector<8x16xf32>
    %1190 = arith.addf %1186, %1189 : vector<8x16xf32>
    %c259 = arith.constant 259 : index
    %1191 = memref.load %arg3[%c259] : memref<288xf32, #tpu.memory_space<smem>>
    %1192 = vector.broadcast %1191 : f32 to vector<8x16xf32>
    %1193 = arith.mulf %1192, %14 : vector<8x16xf32>
    %1194 = arith.addf %1190, %1193 : vector<8x16xf32>
    %c260 = arith.constant 260 : index
    %1195 = memref.load %arg3[%c260] : memref<288xf32, #tpu.memory_space<smem>>
    %1196 = vector.broadcast %1195 : f32 to vector<8x16xf32>
    %1197 = arith.mulf %1196, %15 : vector<8x16xf32>
    %1198 = arith.addf %1194, %1197 : vector<8x16xf32>
    %c261 = arith.constant 261 : index
    %1199 = memref.load %arg3[%c261] : memref<288xf32, #tpu.memory_space<smem>>
    %1200 = vector.broadcast %1199 : f32 to vector<8x16xf32>
    %1201 = arith.mulf %1200, %18 : vector<8x16xf32>
    %1202 = arith.addf %1198, %1201 : vector<8x16xf32>
    %c262 = arith.constant 262 : index
    %1203 = memref.load %arg3[%c262] : memref<288xf32, #tpu.memory_space<smem>>
    %1204 = vector.broadcast %1203 : f32 to vector<8x16xf32>
    %1205 = arith.mulf %1204, %19 : vector<8x16xf32>
    %1206 = arith.addf %1202, %1205 : vector<8x16xf32>
    %c263 = arith.constant 263 : index
    %1207 = memref.load %arg3[%c263] : memref<288xf32, #tpu.memory_space<smem>>
    %1208 = vector.broadcast %1207 : f32 to vector<8x16xf32>
    %1209 = arith.mulf %1208, %20 : vector<8x16xf32>
    %1210 = arith.addf %1206, %1209 : vector<8x16xf32>
    %c264 = arith.constant 264 : index
    %1211 = memref.load %arg3[%c264] : memref<288xf32, #tpu.memory_space<smem>>
    %1212 = vector.broadcast %1211 : f32 to vector<8x16xf32>
    %1213 = arith.mulf %1212, %21 : vector<8x16xf32>
    %1214 = arith.addf %1210, %1213 : vector<8x16xf32>
    %c265 = arith.constant 265 : index
    %1215 = memref.load %arg3[%c265] : memref<288xf32, #tpu.memory_space<smem>>
    %1216 = vector.broadcast %1215 : f32 to vector<8x16xf32>
    %1217 = arith.mulf %1216, %22 : vector<8x16xf32>
    %1218 = arith.addf %1214, %1217 : vector<8x16xf32>
    %c266 = arith.constant 266 : index
    %1219 = memref.load %arg3[%c266] : memref<288xf32, #tpu.memory_space<smem>>
    %1220 = vector.broadcast %1219 : f32 to vector<8x16xf32>
    %1221 = arith.mulf %1220, %23 : vector<8x16xf32>
    %1222 = arith.addf %1218, %1221 : vector<8x16xf32>
    %c267 = arith.constant 267 : index
    %1223 = memref.load %arg3[%c267] : memref<288xf32, #tpu.memory_space<smem>>
    %1224 = vector.broadcast %1223 : f32 to vector<8x16xf32>
    %1225 = arith.mulf %1224, %24 : vector<8x16xf32>
    %1226 = arith.addf %1222, %1225 : vector<8x16xf32>
    %c268 = arith.constant 268 : index
    %1227 = memref.load %arg3[%c268] : memref<288xf32, #tpu.memory_space<smem>>
    %1228 = vector.broadcast %1227 : f32 to vector<8x16xf32>
    %1229 = arith.mulf %1228, %25 : vector<8x16xf32>
    %1230 = arith.addf %1226, %1229 : vector<8x16xf32>
    %c269 = arith.constant 269 : index
    %1231 = memref.load %arg3[%c269] : memref<288xf32, #tpu.memory_space<smem>>
    %1232 = vector.broadcast %1231 : f32 to vector<8x16xf32>
    %1233 = arith.mulf %1232, %26 : vector<8x16xf32>
    %1234 = arith.addf %1230, %1233 : vector<8x16xf32>
    %c270 = arith.constant 270 : index
    %1235 = memref.load %arg3[%c270] : memref<288xf32, #tpu.memory_space<smem>>
    %1236 = vector.broadcast %1235 : f32 to vector<8x16xf32>
    %1237 = arith.mulf %1236, %29 : vector<8x16xf32>
    %1238 = arith.addf %1234, %1237 : vector<8x16xf32>
    %c271 = arith.constant 271 : index
    %1239 = memref.load %arg3[%c271] : memref<288xf32, #tpu.memory_space<smem>>
    %1240 = vector.broadcast %1239 : f32 to vector<8x16xf32>
    %1241 = arith.mulf %1240, %30 : vector<8x16xf32>
    %1242 = arith.addf %1238, %1241 : vector<8x16xf32>
    %c272 = arith.constant 272 : index
    %1243 = memref.load %arg3[%c272] : memref<288xf32, #tpu.memory_space<smem>>
    %1244 = vector.broadcast %1243 : f32 to vector<8x16xf32>
    %1245 = arith.mulf %1244, %31 : vector<8x16xf32>
    %1246 = arith.addf %1242, %1245 : vector<8x16xf32>
    %c273 = arith.constant 273 : index
    %1247 = memref.load %arg3[%c273] : memref<288xf32, #tpu.memory_space<smem>>
    %1248 = vector.broadcast %1247 : f32 to vector<8x16xf32>
    %1249 = arith.mulf %1248, %32 : vector<8x16xf32>
    %1250 = arith.addf %1246, %1249 : vector<8x16xf32>
    %c274 = arith.constant 274 : index
    %1251 = memref.load %arg3[%c274] : memref<288xf32, #tpu.memory_space<smem>>
    %1252 = vector.broadcast %1251 : f32 to vector<8x16xf32>
    %1253 = arith.mulf %1252, %33 : vector<8x16xf32>
    %1254 = arith.addf %1250, %1253 : vector<8x16xf32>
    %c275 = arith.constant 275 : index
    %1255 = memref.load %arg3[%c275] : memref<288xf32, #tpu.memory_space<smem>>
    %1256 = vector.broadcast %1255 : f32 to vector<8x16xf32>
    %1257 = arith.mulf %1256, %34 : vector<8x16xf32>
    %1258 = arith.addf %1254, %1257 : vector<8x16xf32>
    %c276 = arith.constant 276 : index
    %1259 = memref.load %arg3[%c276] : memref<288xf32, #tpu.memory_space<smem>>
    %1260 = vector.broadcast %1259 : f32 to vector<8x16xf32>
    %1261 = arith.mulf %1260, %35 : vector<8x16xf32>
    %1262 = arith.addf %1258, %1261 : vector<8x16xf32>
    %c277 = arith.constant 277 : index
    %1263 = memref.load %arg3[%c277] : memref<288xf32, #tpu.memory_space<smem>>
    %1264 = vector.broadcast %1263 : f32 to vector<8x16xf32>
    %1265 = arith.mulf %1264, %36 : vector<8x16xf32>
    %1266 = arith.addf %1262, %1265 : vector<8x16xf32>
    %c278 = arith.constant 278 : index
    %1267 = memref.load %arg3[%c278] : memref<288xf32, #tpu.memory_space<smem>>
    %1268 = vector.broadcast %1267 : f32 to vector<8x16xf32>
    %1269 = arith.mulf %1268, %37 : vector<8x16xf32>
    %1270 = arith.addf %1266, %1269 : vector<8x16xf32>
    %c279 = arith.constant 279 : index
    %1271 = memref.load %arg3[%c279] : memref<288xf32, #tpu.memory_space<smem>>
    %1272 = vector.broadcast %1271 : f32 to vector<8x16xf32>
    %1273 = arith.mulf %1272, %40 : vector<8x16xf32>
    %1274 = arith.addf %1270, %1273 : vector<8x16xf32>
    %c280 = arith.constant 280 : index
    %1275 = memref.load %arg3[%c280] : memref<288xf32, #tpu.memory_space<smem>>
    %1276 = vector.broadcast %1275 : f32 to vector<8x16xf32>
    %1277 = arith.mulf %1276, %41 : vector<8x16xf32>
    %1278 = arith.addf %1274, %1277 : vector<8x16xf32>
    %c281 = arith.constant 281 : index
    %1279 = memref.load %arg3[%c281] : memref<288xf32, #tpu.memory_space<smem>>
    %1280 = vector.broadcast %1279 : f32 to vector<8x16xf32>
    %1281 = arith.mulf %1280, %42 : vector<8x16xf32>
    %1282 = arith.addf %1278, %1281 : vector<8x16xf32>
    %c282 = arith.constant 282 : index
    %1283 = memref.load %arg3[%c282] : memref<288xf32, #tpu.memory_space<smem>>
    %1284 = vector.broadcast %1283 : f32 to vector<8x16xf32>
    %1285 = arith.mulf %1284, %43 : vector<8x16xf32>
    %1286 = arith.addf %1282, %1285 : vector<8x16xf32>
    %c283 = arith.constant 283 : index
    %1287 = memref.load %arg3[%c283] : memref<288xf32, #tpu.memory_space<smem>>
    %1288 = vector.broadcast %1287 : f32 to vector<8x16xf32>
    %1289 = arith.mulf %1288, %44 : vector<8x16xf32>
    %1290 = arith.addf %1286, %1289 : vector<8x16xf32>
    %c284 = arith.constant 284 : index
    %1291 = memref.load %arg3[%c284] : memref<288xf32, #tpu.memory_space<smem>>
    %1292 = vector.broadcast %1291 : f32 to vector<8x16xf32>
    %1293 = arith.mulf %1292, %45 : vector<8x16xf32>
    %1294 = arith.addf %1290, %1293 : vector<8x16xf32>
    %c285 = arith.constant 285 : index
    %1295 = memref.load %arg3[%c285] : memref<288xf32, #tpu.memory_space<smem>>
    %1296 = vector.broadcast %1295 : f32 to vector<8x16xf32>
    %1297 = arith.mulf %1296, %46 : vector<8x16xf32>
    %1298 = arith.addf %1294, %1297 : vector<8x16xf32>
    %c286 = arith.constant 286 : index
    %1299 = memref.load %arg3[%c286] : memref<288xf32, #tpu.memory_space<smem>>
    %1300 = vector.broadcast %1299 : f32 to vector<8x16xf32>
    %1301 = arith.mulf %1300, %47 : vector<8x16xf32>
    %1302 = arith.addf %1298, %1301 : vector<8x16xf32>
    %c287 = arith.constant 287 : index
    %1303 = memref.load %arg3[%c287] : memref<288xf32, #tpu.memory_space<smem>>
    %1304 = vector.broadcast %1303 : f32 to vector<8x16xf32>
    %1305 = arith.mulf %1304, %48 : vector<8x16xf32>
    %1306 = arith.addf %1302, %1305 : vector<8x16xf32>
    %c7_66 = arith.constant 7 : index
    %1307 = memref.load %arg4[%c7_66] : memref<8xf32, #tpu.memory_space<smem>>
    %1308 = vector.broadcast %1307 : f32 to vector<8x16xf32>
    %1309 = arith.addf %1306, %1308 : vector<8x16xf32>
    %cst_67 = arith.constant 0.000000e+00 : f32
    %1310 = vector.broadcast %cst_67 : f32 to vector<8x16xf32>
    %1311 = arith.subf %1310, %1309 : vector<8x16xf32>
    %1312 = math.exp %1311 : vector<8x16xf32>
    %cst_68 = arith.constant 1.000000e+00 : f32
    %1313 = vector.broadcast %cst_68 : f32 to vector<8x16xf32>
    %1314 = arith.addf %1313, %1312 : vector<8x16xf32>
    %cst_69 = arith.constant 1.000000e+00 : f32
    %1315 = vector.broadcast %cst_69 : f32 to vector<8x16xf32>
    %1316 = arith.divf %1315, %1314 : vector<8x16xf32>
    %1317 = arith.mulf %1309, %1316 : vector<8x16xf32>
    %c0_70 = arith.constant 0 : index
    %c7_71 = arith.constant 7 : index
    %c0_72 = arith.constant 0 : index
    %c0_73 = arith.constant 0 : index
    %1318 = vector.load %arg5[%c0_70, %c7_71, %c0_72, %c0_73] : memref<1x8x8x16xf32, #tpu.memory_space<vmem>>, vector<1x1x8x16xf32>
    %1319 = vector.shape_cast %1318 : vector<1x1x8x16xf32> to vector<8x16xf32>
    %1320 = vector.shape_cast %1317 : vector<8x16xf32> to vector<1x1x8x16xf32>
    tpu.vector_store %arg5[%c0_70, %c7_71, %c0_72, %c0_73], %1320 {strides = array<i32>} : memref<1x8x8x16xf32, #tpu.memory_space<vmem>>, vector<1x1x8x16xf32>,
    return
  }
  func.func @transform_0(%arg0: i32, %arg1: i32) -> (i32, i32, i32, i32) {
    %c0_i32 = arith.constant 0 : i32
    %c0_i32_0 = arith.constant 0 : i32
    %c0_i32_1 = arith.constant 0 : i32
    %c0_i32_2 = arith.constant 0 : i32
    return %arg0, %c0_i32, %c0_i32_0, %c0_i32_1 : i32, i32, i32, i32
  }
  func.func @transform_1(%arg0: i32, %arg1: i32) -> i32 {
    %c0_i32 = arith.constant 0 : i32
    %c0_i32_0 = arith.constant 0 : i32
    return %c0_i32 : i32
  }
  func.func @transform_2(%arg0: i32, %arg1: i32) -> i32 {
    %c0_i32 = arith.constant 0 : i32
    %c0_i32_0 = arith.constant 0 : i32
    return %c0_i32 : i32
  }
  func.func @transform_3(%arg0: i32, %arg1: i32) -> (i32, i32, i32, i32) {
    %c0_i32 = arith.constant 0 : i32
    %c0_i32_0 = arith.constant 0 : i32
    %c0_i32_1 = arith.constant 0 : i32
    return %arg0, %c0_i32, %arg1, %c0_i32_0 : i32, i32, i32, i32
  }
}

</mosaic_0001>

<llo_original>
// kernel: tpu_custom_call.1
$region0: #{tpu_custom_call.1}
  #allocation0 [shape = 'u32[]', space=smem, size = 0x4, offset = 0x4, fixed_abs, tag = 'smem constant byte address 0x4 - core index']
  #allocation1 [shape = 'u32[144,128]{1,0:T(1,128)}', space=vmem, size = 0x12000, scoped, tag = 'internal scratch']
  %s0 = inlined_call_operand.vmem [shape: f32[2,4,18,18], index: 0, kind: input, shape index: {}]
  %s1 = inlined_call_operand.vmem [shape: f32[288], index: 1, kind: input, shape index: {}]
  %s2 = inlined_call_operand.vmem [shape: f32[8], index: 2, kind: input, shape index: {}]
  %s3 = inlined_call_operand.hbm [shape: f32[2,8,16,16], index: 3, kind: output, shape index: {}]
  %s4 = sld [smem:[#allocation0]]
  $region53: #{tpu_custom_call.1} parent=0
    _
  %s6 = ssub.s32 1, %s4
  %s7 = scalar_select 0, %s6, %s4
  $region1: #{tpu_custom_call.1} parent=0
    #allocation2 [shape = 'u8[1536]{0}', space=smem, size = 0x600, scoped, tag = 'input window, operand 1, single buffered']
    #allocation3 [shape = 's32[2]{0}', space=sflag, size = 0x8, scoped, tag = 'scoped memory for tpu_custom_call.1']
    #allocation4 [shape = 's32[2]{0}', space=sflag, size = 0x8, scoped, tag = 'scoped memory for tpu_custom_call.1']
    #allocation5 [shape = 'u8[512]{0}', space=smem, size = 0x200, scoped, tag = 'input window, operand 2, single buffered']
    #allocation6 [shape = 's32[1]{0}', space=sflag, size = 0x4, scoped, tag = 'scoped memory for tpu_custom_call.1']
    #allocation7 [shape = 'u8[65536]{0}', space=vmem, size = 0x10000, scoped, tag = 'output window, operand 0']
    %8 = vsyncpa [#allocation4], 0
    %9 = vsyncpa [#allocation6], 0
    %10 = vsyncpa [#allocation3], 0
    %s11 = scalar_lea.sflag [#allocation3], 1
    %12 = vsyncpa %s11, 0
    loop: start=0, step=1, limit=6
    $region2: #{tpu_custom_call.1} parent=1 // loop_pre_header
      _
    $region3: #{tpu_custom_call.1} parent=1 // loop_header
      %s14 = sphi 0, %s18
      %p15 = scmp.ge.s32.totalorder %s14, 6
      %s21 = sphi 0, %s33
      %s22 = sphi 0, %s29
      %s23 = sphi 0, %s21
      %s24 = sphi 0, %s22
      %s25 = sphi 0, %s23
      %s26 = sphi 0, %s24
      %s36 = sphi 0, %s38
      %s39 = sphi 0, %s36
      %s40 = sphi 0, %s39
      %s56 = sphi 0, %s40
      %s60 = sphi 0, %s60
      %s62 = sphi 0, %s60
      %s63 = sphi 0, %s62
      %s77 = sphi 0, %s63
      %s81 = sphi 0, %s81
      %s83 = sphi 0, %s81
      %s84 = sphi 0, %s83
      %s98 = sphi 0, %s84
      %s106 = sphi 0, %s108
      %s109 = sphi 0, %s106
      %s110 = sphi 0, %s109
      %s126 = sphi 0, %s110
    $region4: #{tpu_custom_call.1} parent=1 // loop_header_branch
      %17 = sbr.rel (%p15) target = $region8
    $region5: #{tpu_custom_call.1} parent=1 // loop_body
      %s19 = ssub.s32 %s14, 1
      %s20 = ssub.s32 %s14, 2
      %s27 = sadd.s32 1, %s22
      %p28 = scmp.ge.s32.totalorder %s27, 2
      %s29 = scalar_select %p28, 0, %s27
      %s30 = sadd.s32 1, %s21
      %s31 = scalar_select %p28, %s30, %s21
      %p32 = scmp.ge.s32.totalorder %s31, 2
      %s33 = scalar_select %p32, 0, %s31
      %s34 = ssub.s32 %s21, %s33
      %p35 = scmp.eq.s32.totalorder %s34, 0
      %s37 = sadd.s32 %s36, 1
      %s38 = scalar_select %p35, %s36, %s37
      %p41 = pneg %p35
      %p42 = scmp.eq.s32.totalorder %s14, 3
      %p43 = por %p41, %p42
      %p44 = scmp.ne.s32.totalorder %s36, %s39
      %p45 = scmp.eq.s32.totalorder %s14, 0
      %p46 = por %p44, %p45
      %p47 = scmp.ne.s32.totalorder %s36, %s39
      %p48 = scmp.eq.s32.totalorder %s19, 3
      %p49 = por %p47, %p48
      %p50 = scmp.ne.s32.totalorder %s39, %s40
      %p51 = scmp.eq.s32.totalorder %s19, 0
      %p52 = por %p50, %p51
      %p53 = scmp.ne.s32.totalorder %s39, %s40
      %p54 = scmp.eq.s32.totalorder %s20, 3
      %p55 = por %p53, %p54
      %p57 = scmp.ne.s32.totalorder %s40, %s56
      %p58 = scmp.eq.s32.totalorder %s20, 0
      %p59 = por %p57, %p58
      %s61 = sadd.s32 %s60, 1
      %p64 = scmp.eq.s32.totalorder %s14, 3
      %p65 = scmp.ne.s32.totalorder %s60, %s62
      %p66 = scmp.eq.s32.totalorder %s14, 0
      %p67 = por %p65, %p66
      %p68 = scmp.ne.s32.totalorder %s60, %s62
      %p69 = scmp.eq.s32.totalorder %s19, 3
      %p70 = por %p68, %p69
      %p71 = scmp.ne.s32.totalorder %s62, %s63
      %p72 = scmp.eq.s32.totalorder %s19, 0
      %p73 = por %p71, %p72
      %p74 = scmp.ne.s32.totalorder %s62, %s63
      %p75 = scmp.eq.s32.totalorder %s20, 3
      %p76 = por %p74, %p75
      %p78 = scmp.ne.s32.totalorder %s63, %s77
      %p79 = scmp.eq.s32.totalorder %s20, 0
      %p80 = por %p78, %p79
      %s82 = sadd.s32 %s81, 1
      %p85 = scmp.eq.s32.totalorder %s14, 3
      %p86 = scmp.ne.s32.totalorder %s81, %s83
      %p87 = scmp.eq.s32.totalorder %s14, 0
      %p88 = por %p86, %p87
      %p89 = scmp.ne.s32.totalorder %s81, %s83
      %p90 = scmp.eq.s32.totalorder %s19, 3
      %p91 = por %p89, %p90
      %p92 = scmp.ne.s32.totalorder %s83, %s84
      %p93 = scmp.eq.s32.totalorder %s19, 0
      %p94 = por %p92, %p93
      %p95 = scmp.ne.s32.totalorder %s83, %s84
      %p96 = scmp.eq.s32.totalorder %s20, 3
      %p97 = por %p95, %p96
      %p99 = scmp.ne.s32.totalorder %s84, %s98
      %p100 = scmp.eq.s32.totalorder %s20, 0
      %p101 = por %p99, %p100
      %s102 = ssub.s32 %s21, %s33
      %s103 = ssub.s32 %s22, %s29
      %s104 = sor.u32 %s102, %s103
      %p105 = scmp.eq.s32.totalorder %s104, 0
      %s107 = sadd.s32 %s106, 1
      %s108 = scalar_select %p105, %s106, %s107
      %p111 = pneg %p105
      %p112 = scmp.eq.s32.totalorder %s14, 3
      %p113 = por %p111, %p112
      %p114 = scmp.ne.s32.totalorder %s106, %s109
      %p115 = scmp.eq.s32.totalorder %s14, 0
      %p116 = por %p114, %p115
      %p117 = scmp.ne.s32.totalorder %s106, %s109
      %p118 = scmp.eq.s32.totalorder %s19, 3
      %p119 = por %p117, %p118
      %p120 = scmp.ne.s32.totalorder %s109, %s110
      %p121 = scmp.eq.s32.totalorder %s19, 0
      %p122 = por %p120, %p121
      %p123 = scmp.ne.s32.totalorder %s109, %s110
      %p124 = scmp.eq.s32.totalorder %s20, 3
      %p125 = por %p123, %p124
      %p127 = scmp.ne.s32.totalorder %s110, %s126
      %p128 = scmp.eq.s32.totalorder %s20, 0
      %p129 = por %p127, %p128
      %p130 = scmp.le.s32.totalorder 1, %s14
      %p131 = scmp.lt.s32.totalorder %s14, 5
      %p132 = pnand %p130, %p131
      %p133 = pneg %p132
      // Predicated region
      $region9: #{tpu_custom_call.1} parent=5 // pred_check
        _
      $region10: #{tpu_custom_call.1} parent=5 // pred_check_branch
        %135 = sbr.rel (%p132) target = $region12
      $region11: #{tpu_custom_call.1} parent=5 // pred_region
        %s136 = ssub.s32 %s14, 1
        // Predicated region
        $region13: #{tpu_custom_call.1} parent=11 // pred_check
          %p137 = pneg %p73
        $region14: #{tpu_custom_call.1} parent=11 // pred_check_branch
          %139 = sbr.rel (%p137) target = $region16
        $region15: #{tpu_custom_call.1} parent=11 // pred_region
          %s141 = ssub.s32 48, 48
          %142 = vsyncadd [#allocation4], %s141
          %s144 = sshll.u32 %s1, 4
          %s145 = int_to_ptr.vmem [resolvable:$true] %s144
          %147 = dma.vmem_to_smem %s145, 48, [#allocation2], [#allocation4]
        $region16: #{tpu_custom_call.1} parent=11 // pred_fallthru
          _
        // Predicated region
        $region17: #{tpu_custom_call.1} parent=11 // pred_check
          %p148 = pneg %p94
        $region18: #{tpu_custom_call.1} parent=11 // pred_check_branch
          %150 = sbr.rel (%p148) target = $region20
        $region19: #{tpu_custom_call.1} parent=11 // pred_region
          %s152 = ssub.s32 16, 16
          %153 = vsyncadd [#allocation6], %s152
          %s155 = sshll.u32 %s2, 4
          %s156 = int_to_ptr.vmem [resolvable:$true] %s155
          %158 = dma.vmem_to_smem %s156, 16, [#allocation5], [#allocation6]
        $region20: #{tpu_custom_call.1} parent=11 // pred_fallthru
          _
      $region12: #{tpu_custom_call.1} parent=5 // pred_fallthru
        _
      %p159 = scmp.lt.s32.totalorder %s14, 4
      // Predicated region
      $region21: #{tpu_custom_call.1} parent=5 // pred_check
        %p160 = pneg %p159
      $region22: #{tpu_custom_call.1} parent=5 // pred_check_branch
        %162 = sbr.rel (%p160) target = $region24
      $region23: #{tpu_custom_call.1} parent=5 // pred_region
        // Predicated region
        $region25: #{tpu_custom_call.1} parent=23 // pred_check
          %p163 = pneg %p46
        $region26: #{tpu_custom_call.1} parent=23 // pred_check_branch
          %165 = sbr.rel (%p163) target = $region28
        $region27: #{tpu_custom_call.1} parent=23 // pred_region
          %p166 = scmp.lt.s32.totalorder %s21, 1
          %s167 = scalar_select %p166, %s21, 1
          %s168 = smul.addr %s167, 12
          %s169 = smul.addr %s168, 8
          %s170 = scalar_lea.vmem %s0, %s169
        $region28: #{tpu_custom_call.1} parent=23 // pred_fallthru
          _
      $region24: #{tpu_custom_call.1} parent=5 // pred_fallthru
        _
      %p171 = scmp.le.s32.totalorder 1, %s14
      %p172 = scmp.lt.s32.totalorder %s14, 5
      %p173 = pnand %p171, %p172
      %p174 = pneg %p173
      // Predicated region
      $region29: #{tpu_custom_call.1} parent=5 // pred_check
        _
      $region30: #{tpu_custom_call.1} parent=5 // pred_check_branch
        %176 = sbr.rel (%p173) target = $region32
      $region31: #{tpu_custom_call.1} parent=5 // pred_region
        %s177 = ssub.s32 %s14, 1
        // Predicated region
        $region33: #{tpu_custom_call.1} parent=31 // pred_check
          %p178 = pneg %p73
        $region34: #{tpu_custom_call.1} parent=31 // pred_check_branch
          %180 = sbr.rel (%p178) target = $region36
        $region35: #{tpu_custom_call.1} parent=31 // pred_region
          %181 = dma.done [#allocation4], 48
        $region36: #{tpu_custom_call.1} parent=31 // pred_fallthru
          _
        // Predicated region
        $region37: #{tpu_custom_call.1} parent=31 // pred_check
          %p182 = pneg %p94
        $region38: #{tpu_custom_call.1} parent=31 // pred_check_branch
          %184 = sbr.rel (%p182) target = $region40
        $region39: #{tpu_custom_call.1} parent=31 // pred_region
          %185 = dma.done [#allocation6], 16
        $region40: #{tpu_custom_call.1} parent=31 // pred_fallthru
          _
        %186 = sfence
        %p187 = scmp.lt.s32.totalorder %s23, 1
        %s188 = scalar_select %p187, %s23, 1
        %s189 = smul.addr %s188, 12
        %s190 = smul.addr %s189, 8
        %s191 = scalar_lea.vmem %s0, %s190
        %p192 = pneg %p52
        %p193 = pneg %p49
        %p194 = pneg %p73
        %p195 = pneg %p70
        %p196 = pneg %p94
        %p197 = pneg %p91
        %p198 = pneg %p122
        %p199 = pneg %p119
        %s200 = sand.u32 %s109, 1
        %s201 = scalar_lea.sflag [#allocation3], %s200
        %s202 = sand.u32 %s109, 1
        %s203 = smul.addr %s202, 64
        %s204 = scalar_lea.vmem [#allocation7], %s203
        %p205 = scmp.lt.s32.totalorder %s23, 1
        %s206 = scalar_select %p205, %s23, 1
        %s207 = smul.addr %s206, 12
        %s208 = smul.addr %s207, 8
        %s209 = scalar_lea.vmem %s0, %s208
        %s210 = smul.u32 %s24, 8
        %s211 = scalar_lea.vmem %s209, %s210
        %v212 = vld [vmem:[%s211] sm:$0xff]
        %v213 = vld [vmem:[%s211 + $0x8] sm:$0x3]
        %v214 = vld [vmem:[%s211 + $0x18] sm:$0xff]
        %v215 = vld [vmem:[%s211 + $0x20] sm:$0x3]
        %v216 = vld [vmem:[%s211 + $0x30] sm:$0xff]
        %v217 = vld [vmem:[%s211 + $0x38] sm:$0x3]
        %v218 = vld [vmem:[%s211 + $0x48] sm:$0xff]
        %v219 = vld [vmem:[%s211 + $0x50] sm:$0x3]
        %s220 = sld [smem:[#allocation2]]
        %v221 = vstv %s220
        %v222 = vmul.f32 %v221, %v212
        %v223 = vadd.f32 %v222, 0.0
        %s224 = sld [smem:[#allocation2 + $0x1]]
        %v225 = vstv %s224
        %v226 = vmul.f32 %v225, %v212
        %228 = vrot.lane.b32.xlu0 %v226, 127
        %v229 = vpop.permute.xlu0 %228
        %v231 = vadd.f32 %v223, %v229
        %s232 = sld [smem:[#allocation2 + $0x2]]
        %v233 = vstv %s232
        %v234 = vmul.f32 %v233, %v212
        %236 = vrot.lane.b32.xlu0 %v234, 126
        %v237 = vpop.permute.xlu0 %236
        %v239 = vadd.f32 %v231, %v237
        %s240 = sld [smem:[#allocation2 + $0x3]]
        %v241 = vstv %s240
        %v242 = vmul.f32 %v241, %v212
        %v243 = vmul.f32 %v241, %v213
        %vm246 = vcmask 1046528
        %v247 = vrot.slane %v242, 1
        %v248 = vrot.slane %v243, 1
        %v249 = vsel %vm246, %v247, %v248
        %v251 = vadd.f32 %v239, %v249
        %s252 = sld [smem:[#allocation2 + $0x4]]
        %v253 = vstv %s252
        %v254 = vmul.f32 %v253, %v212
        %v255 = vmul.f32 %v253, %v213
        %v258 = vrot.slane %v254, 1
        %v259 = vrot.slane %v255, 1
        %v260 = vsel %vm246, %v258, %v259
        %261 = vrot.lane.b32.xlu0 %v260, 127
        %v262 = vpop.permute.xlu0 %261
        %v264 = vadd.f32 %v251, %v262
        %s265 = sld [smem:[#allocation2 + $0x5]]
        %v266 = vstv %s265
        %v267 = vmul.f32 %v266, %v212
        %v268 = vmul.f32 %v266, %v213
        %v271 = vrot.slane %v267, 1
        %v272 = vrot.slane %v268, 1
        %v273 = vsel %vm246, %v271, %v272
        %274 = vrot.lane.b32.xlu0 %v273, 126
        %v275 = vpop.permute.xlu0 %274
        %v277 = vadd.f32 %v264, %v275
        %s278 = sld [smem:[#allocation2 + $0x6]]
        %v279 = vstv %s278
        %v280 = vmul.f32 %v279, %v212
        %v281 = vmul.f32 %v279, %v213
        %vm284 = vcmask 1045504
        %v285 = vrot.slane %v280, 2
        %v286 = vrot.slane %v281, 2
        %v287 = vsel %vm284, %v285, %v286
        %v289 = vadd.f32 %v277, %v287
        %s290 = sld [smem:[#allocation2 + $0x7]]
        %v291 = vstv %s290
        %v292 = vmul.f32 %v291, %v212
        %v293 = vmul.f32 %v291, %v213
        %v296 = vrot.slane %v292, 2
        %v297 = vrot.slane %v293, 2
        %v298 = vsel %vm284, %v296, %v297
        %299 = vrot.lane.b32.xlu0 %v298, 127
        %v300 = vpop.permute.xlu0 %299
        %v302 = vadd.f32 %v289, %v300
        %s303 = sld [smem:[#allocation2 + $0x8]]
        %v304 = vstv %s303
        %v305 = vmul.f32 %v304, %v212
        %v306 = vmul.f32 %v304, %v213
        %v309 = vrot.slane %v305, 2
        %v310 = vrot.slane %v306, 2
        %v311 = vsel %vm284, %v309, %v310
        %312 = vrot.lane.b32.xlu0 %v311, 126
        %v313 = vpop.permute.xlu0 %312
        %v315 = vadd.f32 %v302, %v313
        %s316 = sld [smem:[#allocation2 + $0x9]]
        %v317 = vstv %s316
        %v318 = vmul.f32 %v317, %v214
        %v319 = vadd.f32 %v315, %v318
        %s320 = sld [smem:[#allocation2 + $0xa]]
        %v321 = vstv %s320
        %v322 = vmul.f32 %v321, %v214
        %324 = vrot.lane.b32.xlu0 %v322, 127
        %v325 = vpop.permute.xlu0 %324
        %v327 = vadd.f32 %v319, %v325
        %s328 = sld [smem:[#allocation2 + $0xb]]
        %v329 = vstv %s328
        %v330 = vmul.f32 %v329, %v214
        %332 = vrot.lane.b32.xlu0 %v330, 126
        %v333 = vpop.permute.xlu0 %332
        %v335 = vadd.f32 %v327, %v333
        %s336 = sld [smem:[#allocation2 + $0xc]]
        %v337 = vstv %s336
        %v338 = vmul.f32 %v337, %v214
        %v339 = vmul.f32 %v337, %v215
        %v342 = vrot.slane %v338, 1
        %v343 = vrot.slane %v339, 1
        %v344 = vsel %vm246, %v342, %v343
        %v346 = vadd.f32 %v335, %v344
        %s347 = sld [smem:[#allocation2 + $0xd]]
        %v348 = vstv %s347
        %v349 = vmul.f32 %v348, %v214
        %v350 = vmul.f32 %v348, %v215
        %v353 = vrot.slane %v349, 1
        %v354 = vrot.slane %v350, 1
        %v355 = vsel %vm246, %v353, %v354
        %356 = vrot.lane.b32.xlu0 %v355, 127
        %v357 = vpop.permute.xlu0 %356
        %v359 = vadd.f32 %v346, %v357
        %s360 = sld [smem:[#allocation2 + $0xe]]
        %v361 = vstv %s360
        %v362 = vmul.f32 %v361, %v214
        %v363 = vmul.f32 %v361, %v215
        %v366 = vrot.slane %v362, 1
        %v367 = vrot.slane %v363, 1
        %v368 = vsel %vm246, %v366, %v367
        %369 = vrot.lane.b32.xlu0 %v368, 126
        %v370 = vpop.permute.xlu0 %369
        %v372 = vadd.f32 %v359, %v370
        %s373 = sld [smem:[#allocation2 + $0xf]]
        %v374 = vstv %s373
        %v375 = vmul.f32 %v374, %v214
        %v376 = vmul.f32 %v374, %v215
        %v379 = vrot.slane %v375, 2
        %v380 = vrot.slane %v376, 2
        %v381 = vsel %vm284, %v379, %v380
        %v383 = vadd.f32 %v372, %v381
        %s384 = sld [smem:[#allocation2 + $0x10]]
        %v385 = vstv %s384
        %v386 = vmul.f32 %v385, %v214
        %v387 = vmul.f32 %v385, %v215
        %v390 = vrot.slane %v386, 2
        %v391 = vrot.slane %v387, 2
        %v392 = vsel %vm284, %v390, %v391
        %393 = vrot.lane.b32.xlu0 %v392, 127
        %v394 = vpop.permute.xlu0 %393
        %v396 = vadd.f32 %v383, %v394
        %s397 = sld [smem:[#allocation2 + $0x11]]
        %v398 = vstv %s397
        %v399 = vmul.f32 %v398, %v214
        %v400 = vmul.f32 %v398, %v215
        %v403 = vrot.slane %v399, 2
        %v404 = vrot.slane %v400, 2
        %v405 = vsel %vm284, %v403, %v404
        %406 = vrot.lane.b32.xlu0 %v405, 126
        %v407 = vpop.permute.xlu0 %406
        %v409 = vadd.f32 %v396, %v407
        %s410 = sld [smem:[#allocation2 + $0x12]]
        %v411 = vstv %s410
        %v412 = vmul.f32 %v411, %v216
        %v413 = vadd.f32 %v409, %v412
        %s414 = sld [smem:[#allocation2 + $0x13]]
        %v415 = vstv %s414
        %v416 = vmul.f32 %v415, %v216
        %418 = vrot.lane.b32.xlu0 %v416, 127
        %v419 = vpop.permute.xlu0 %418
        %v421 = vadd.f32 %v413, %v419
        %s422 = sld [smem:[#allocation2 + $0x14]]
        %v423 = vstv %s422
        %v424 = vmul.f32 %v423, %v216
        %426 = vrot.lane.b32.xlu0 %v424, 126
        %v427 = vpop.permute.xlu0 %426
        %v429 = vadd.f32 %v421, %v427
        %s430 = sld [smem:[#allocation2 + $0x15]]
        %v431 = vstv %s430
        %v432 = vmul.f32 %v431, %v216
        %v433 = vmul.f32 %v431, %v217
        %v436 = vrot.slane %v432, 1
        %v437 = vrot.slane %v433, 1
        %v438 = vsel %vm246, %v436, %v437
        %v440 = vadd.f32 %v429, %v438
        %s441 = sld [smem:[#allocation2 + $0x16]]
        %v442 = vstv %s441
        %v443 = vmul.f32 %v442, %v216
        %v444 = vmul.f32 %v442, %v217
        %v447 = vrot.slane %v443, 1
        %v448 = vrot.slane %v444, 1
        %v449 = vsel %vm246, %v447, %v448
        %450 = vrot.lane.b32.xlu0 %v449, 127
        %v451 = vpop.permute.xlu0 %450
        %v453 = vadd.f32 %v440, %v451
        %s454 = sld [smem:[#allocation2 + $0x17]]
        %v455 = vstv %s454
        %v456 = vmul.f32 %v455, %v216
        %v457 = vmul.f32 %v455, %v217
        %v460 = vrot.slane %v456, 1
        %v461 = vrot.slane %v457, 1
        %v462 = vsel %vm246, %v460, %v461
        %463 = vrot.lane.b32.xlu0 %v462, 126
        %v464 = vpop.permute.xlu0 %463
        %v466 = vadd.f32 %v453, %v464
        %s467 = sld [smem:[#allocation2 + $0x18]]
        %v468 = vstv %s467
        %v469 = vmul.f32 %v468, %v216
        %v470 = vmul.f32 %v468, %v217
        %v473 = vrot.slane %v469, 2
        %v474 = vrot.slane %v470, 2
        %v475 = vsel %vm284, %v473, %v474
        %v477 = vadd.f32 %v466, %v475
        %s478 = sld [smem:[#allocation2 + $0x19]]
        %v479 = vstv %s478
        %v480 = vmul.f32 %v479, %v216
        %v481 = vmul.f32 %v479, %v217
        %v484 = vrot.slane %v480, 2
        %v485 = vrot.slane %v481, 2
        %v486 = vsel %vm284, %v484, %v485
        %487 = vrot.lane.b32.xlu0 %v486, 127
        %v488 = vpop.permute.xlu0 %487
        %v490 = vadd.f32 %v477, %v488
        %s491 = sld [smem:[#allocation2 + $0x1a]]
        %v492 = vstv %s491
        %v493 = vmul.f32 %v492, %v216
        %v494 = vmul.f32 %v492, %v217
        %v497 = vrot.slane %v493, 2
        %v498 = vrot.slane %v494, 2
        %v499 = vsel %vm284, %v497, %v498
        %500 = vrot.lane.b32.xlu0 %v499, 126
        %v501 = vpop.permute.xlu0 %500
        %v503 = vadd.f32 %v490, %v501
        %s504 = sld [smem:[#allocation2 + $0x1b]]
        %v505 = vstv %s504
        %v506 = vmul.f32 %v505, %v218
        %v507 = vadd.f32 %v503, %v506
        %s508 = sld [smem:[#allocation2 + $0x1c]]
        %v509 = vstv %s508
        %v510 = vmul.f32 %v509, %v218
        %512 = vrot.lane.b32.xlu0 %v510, 127
        %v513 = vpop.permute.xlu0 %512
        %v515 = vadd.f32 %v507, %v513
        %s516 = sld [smem:[#allocation2 + $0x1d]]
        %v517 = vstv %s516
        %v518 = vmul.f32 %v517, %v218
        %520 = vrot.lane.b32.xlu0 %v518, 126
        %v521 = vpop.permute.xlu0 %520
        %v523 = vadd.f32 %v515, %v521
        %s524 = sld [smem:[#allocation2 + $0x1e]]
        %v525 = vstv %s524
        %v526 = vmul.f32 %v525, %v218
        %v527 = vmul.f32 %v525, %v219
        %v530 = vrot.slane %v526, 1
        %v531 = vrot.slane %v527, 1
        %v532 = vsel %vm246, %v530, %v531
        %v534 = vadd.f32 %v523, %v532
        %s535 = sld [smem:[#allocation2 + $0x1f]]
        %v536 = vstv %s535
        %v537 = vmul.f32 %v536, %v218
        %v538 = vmul.f32 %v536, %v219
        %v541 = vrot.slane %v537, 1
        %v542 = vrot.slane %v538, 1
        %v543 = vsel %vm246, %v541, %v542
        %544 = vrot.lane.b32.xlu0 %v543, 127
        %v545 = vpop.permute.xlu0 %544
        %v547 = vadd.f32 %v534, %v545
        %s548 = sld [smem:[#allocation2 + $0x20]]
        %v549 = vstv %s548
        %v550 = vmul.f32 %v549, %v218
        %v551 = vmul.f32 %v549, %v219
        %v554 = vrot.slane %v550, 1
        %v555 = vrot.slane %v551, 1
        %v556 = vsel %vm246, %v554, %v555
        %557 = vrot.lane.b32.xlu0 %v556, 126
        %v558 = vpop.permute.xlu0 %557
        %v560 = vadd.f32 %v547, %v558
        %s561 = sld [smem:[#allocation2 + $0x21]]
        %v562 = vstv %s561
        %v563 = vmul.f32 %v562, %v218
        %v564 = vmul.f32 %v562, %v219
        %v567 = vrot.slane %v563, 2
        %v568 = vrot.slane %v564, 2
        %v569 = vsel %vm284, %v567, %v568
        %v571 = vadd.f32 %v560, %v569
        %s572 = sld [smem:[#allocation2 + $0x22]]
        %v573 = vstv %s572
        %v574 = vmul.f32 %v573, %v218
        %v575 = vmul.f32 %v573, %v219
        %v578 = vrot.slane %v574, 2
        %v579 = vrot.slane %v575, 2
        %v580 = vsel %vm284, %v578, %v579
        %581 = vrot.lane.b32.xlu0 %v580, 127
        %v582 = vpop.permute.xlu0 %581
        %v584 = vadd.f32 %v571, %v582
        %s585 = sld [smem:[#allocation2 + $0x23]]
        %v586 = vstv %s585
        %v587 = vmul.f32 %v586, %v218
        %v588 = vmul.f32 %v586, %v219
        %v591 = vrot.slane %v587, 2
        %v592 = vrot.slane %v588, 2
        %v593 = vsel %vm284, %v591, %v592
        %594 = vrot.lane.b32.xlu0 %v593, 126
        %v595 = vpop.permute.xlu0 %594
        %v597 = vadd.f32 %v584, %v595
        %s598 = sld [smem:[#allocation5]]
        %v599 = vstv %s598
        %v600 = vadd.f32 %v597, %v599
        %v601 = vsub.f32 0.0, %v600
        %v602 = vmul.f32 %v601, 1.442695
        %v603 = vpow.pop %v602
        %v604 = vadd.f32 %v603, 1.0
        %v605 = vrcp.pop %v604
        %v606 = vmul.f32 1.0, %v605
        %v607 = vmul.f32 %v600, %v606
        %vm608 = vcmask 130048
        %609 = vst.msk [vmem:[%s204] sm:$0xff] %vm608, %v607
        %s610 = sld [smem:[#allocation2 + $0x24]]
        %v611 = vstv %s610
        %v612 = vmul.f32 %v611, %v212
        %v613 = vadd.f32 %v612, 0.0
        %s614 = sld [smem:[#allocation2 + $0x25]]
        %v615 = vstv %s614
        %v616 = vmul.f32 %v615, %v212
        %618 = vrot.lane.b32.xlu0 %v616, 127
        %v619 = vpop.permute.xlu0 %618
        %v621 = vadd.f32 %v613, %v619
        %s622 = sld [smem:[#allocation2 + $0x26]]
        %v623 = vstv %s622
        %v624 = vmul.f32 %v623, %v212
        %626 = vrot.lane.b32.xlu0 %v624, 126
        %v627 = vpop.permute.xlu0 %626
        %v629 = vadd.f32 %v621, %v627
        %s630 = sld [smem:[#allocation2 + $0x27]]
        %v631 = vstv %s630
        %v632 = vmul.f32 %v631, %v212
        %v633 = vmul.f32 %v631, %v213
        %v636 = vrot.slane %v632, 1
        %v637 = vrot.slane %v633, 1
        %v638 = vsel %vm246, %v636, %v637
        %v640 = vadd.f32 %v629, %v638
        %s641 = sld [smem:[#allocation2 + $0x28]]
        %v642 = vstv %s641
        %v643 = vmul.f32 %v642, %v212
        %v644 = vmul.f32 %v642, %v213
        %v647 = vrot.slane %v643, 1
        %v648 = vrot.slane %v644, 1
        %v649 = vsel %vm246, %v647, %v648
        %650 = vrot.lane.b32.xlu0 %v649, 127
        %v651 = vpop.permute.xlu0 %650
        %v653 = vadd.f32 %v640, %v651
        %s654 = sld [smem:[#allocation2 + $0x29]]
        %v655 = vstv %s654
        %v656 = vmul.f32 %v655, %v212
        %v657 = vmul.f32 %v655, %v213
        %v660 = vrot.slane %v656, 1
        %v661 = vrot.slane %v657, 1
        %v662 = vsel %vm246, %v660, %v661
        %663 = vrot.lane.b32.xlu0 %v662, 126
        %v664 = vpop.permute.xlu0 %663
        %v666 = vadd.f32 %v653, %v664
        %s667 = sld [smem:[#allocation2 + $0x2a]]
        %v668 = vstv %s667
        %v669 = vmul.f32 %v668, %v212
        %v670 = vmul.f32 %v668, %v213
        %v673 = vrot.slane %v669, 2
        %v674 = vrot.slane %v670, 2
        %v675 = vsel %vm284, %v673, %v674
        %v677 = vadd.f32 %v666, %v675
        %s678 = sld [smem:[#allocation2 + $0x2b]]
        %v679 = vstv %s678
        %v680 = vmul.f32 %v679, %v212
        %v681 = vmul.f32 %v679, %v213
        %v684 = vrot.slane %v680, 2
        %v685 = vrot.slane %v681, 2
        %v686 = vsel %vm284, %v684, %v685
        %687 = vrot.lane.b32.xlu0 %v686, 127
        %v688 = vpop.permute.xlu0 %687
        %v690 = vadd.f32 %v677, %v688
        %s691 = sld [smem:[#allocation2 + $0x2c]]
        %v692 = vstv %s691
        %v693 = vmul.f32 %v692, %v212
        %v694 = vmul.f32 %v692, %v213
        %v697 = vrot.slane %v693, 2
        %v698 = vrot.slane %v694, 2
        %v699 = vsel %vm284, %v697, %v698
        %700 = vrot.lane.b32.xlu0 %v699, 126
        %v701 = vpop.permute.xlu0 %700
        %v703 = vadd.f32 %v690, %v701
        %s704 = sld [smem:[#allocation2 + $0x2d]]
        %v705 = vstv %s704
        %v706 = vmul.f32 %v705, %v214
        %v707 = vadd.f32 %v703, %v706
        %s708 = sld [smem:[#allocation2 + $0x2e]]
        %v709 = vstv %s708
        %v710 = vmul.f32 %v709, %v214
        %712 = vrot.lane.b32.xlu0 %v710, 127
        %v713 = vpop.permute.xlu0 %712
        %v715 = vadd.f32 %v707, %v713
        %s716 = sld [smem:[#allocation2 + $0x2f]]
        %v717 = vstv %s716
        %v718 = vmul.f32 %v717, %v214
        %720 = vrot.lane.b32.xlu0 %v718, 126
        %v721 = vpop.permute.xlu0 %720
        %v723 = vadd.f32 %v715, %v721
        %s724 = sld [smem:[#allocation2 + $0x30]]
        %v725 = vstv %s724
        %v726 = vmul.f32 %v725, %v214
        %v727 = vmul.f32 %v725, %v215
        %v730 = vrot.slane %v726, 1
        %v731 = vrot.slane %v727, 1
        %v732 = vsel %vm246, %v730, %v731
        %v734 = vadd.f32 %v723, %v732
        %s735 = sld [smem:[#allocation2 + $0x31]]
        %v736 = vstv %s735
        %v737 = vmul.f32 %v736, %v214
        %v738 = vmul.f32 %v736, %v215
        %v741 = vrot.slane %v737, 1
        %v742 = vrot.slane %v738, 1
        %v743 = vsel %vm246, %v741, %v742
        %744 = vrot.lane.b32.xlu0 %v743, 127
        %v745 = vpop.permute.xlu0 %744
        %v747 = vadd.f32 %v734, %v745
        %s748 = sld [smem:[#allocation2 + $0x32]]
        %v749 = vstv %s748
        %v750 = vmul.f32 %v749, %v214
        %v751 = vmul.f32 %v749, %v215
        %v754 = vrot.slane %v750, 1
        %v755 = vrot.slane %v751, 1
        %v756 = vsel %vm246, %v754, %v755
        %757 = vrot.lane.b32.xlu0 %v756, 126
        %v758 = vpop.permute.xlu0 %757
        %v760 = vadd.f32 %v747, %v758
        %s761 = sld [smem:[#allocation2 + $0x33]]
        %v762 = vstv %s761
        %v763 = vmul.f32 %v762, %v214
        %v764 = vmul.f32 %v762, %v215
        %v767 = vrot.slane %v763, 2
        %v768 = vrot.slane %v764, 2
        %v769 = vsel %vm284, %v767, %v768
        %v771 = vadd.f32 %v760, %v769
        %s772 = sld [smem:[#allocation2 + $0x34]]
        %v773 = vstv %s772
        %v774 = vmul.f32 %v773, %v214
        %v775 = vmul.f32 %v773, %v215
        %v778 = vrot.slane %v774, 2
        %v779 = vrot.slane %v775, 2
        %v780 = vsel %vm284, %v778, %v779
        %781 = vrot.lane.b32.xlu0 %v780, 127
        %v782 = vpop.permute.xlu0 %781
        %v784 = vadd.f32 %v771, %v782
        %s785 = sld [smem:[#allocation2 + $0x35]]
        %v786 = vstv %s785
        %v787 = vmul.f32 %v786, %v214
        %v788 = vmul.f32 %v786, %v215
        %v791 = vrot.slane %v787, 2
        %v792 = vrot.slane %v788, 2
        %v793 = vsel %vm284, %v791, %v792
        %794 = vrot.lane.b32.xlu0 %v793, 126
        %v795 = vpop.permute.xlu0 %794
        %v797 = vadd.f32 %v784, %v795
        %s798 = sld [smem:[#allocation2 + $0x36]]
        %v799 = vstv %s798
        %v800 = vmul.f32 %v799, %v216
        %v801 = vadd.f32 %v797, %v800
        %s802 = sld [smem:[#allocation2 + $0x37]]
        %v803 = vstv %s802
        %v804 = vmul.f32 %v803, %v216
        %806 = vrot.lane.b32.xlu0 %v804, 127
        %v807 = vpop.permute.xlu0 %806
        %v809 = vadd.f32 %v801, %v807
        %s810 = sld [smem:[#allocation2 + $0x38]]
        %v811 = vstv %s810
        %v812 = vmul.f32 %v811, %v216
        %814 = vrot.lane.b32.xlu0 %v812, 126
        %v815 = vpop.permute.xlu0 %814
        %v817 = vadd.f32 %v809, %v815
        %s818 = sld [smem:[#allocation2 + $0x39]]
        %v819 = vstv %s818
        %v820 = vmul.f32 %v819, %v216
        %v821 = vmul.f32 %v819, %v217
        %v824 = vrot.slane %v820, 1
        %v825 = vrot.slane %v821, 1
        %v826 = vsel %vm246, %v824, %v825
        %v828 = vadd.f32 %v817, %v826
        %s829 = sld [smem:[#allocation2 + $0x3a]]
        %v830 = vstv %s829
        %v831 = vmul.f32 %v830, %v216
        %v832 = vmul.f32 %v830, %v217
        %v835 = vrot.slane %v831, 1
        %v836 = vrot.slane %v832, 1
        %v837 = vsel %vm246, %v835, %v836
        %838 = vrot.lane.b32.xlu0 %v837, 127
        %v839 = vpop.permute.xlu0 %838
        %v841 = vadd.f32 %v828, %v839
        %s842 = sld [smem:[#allocation2 + $0x3b]]
        %v843 = vstv %s842
        %v844 = vmul.f32 %v843, %v216
        %v845 = vmul.f32 %v843, %v217
        %v848 = vrot.slane %v844, 1
        %v849 = vrot.slane %v845, 1
        %v850 = vsel %vm246, %v848, %v849
        %851 = vrot.lane.b32.xlu0 %v850, 126
        %v852 = vpop.permute.xlu0 %851
        %v854 = vadd.f32 %v841, %v852
        %s855 = sld [smem:[#allocation2 + $0x3c]]
        %v856 = vstv %s855
        %v857 = vmul.f32 %v856, %v216
        %v858 = vmul.f32 %v856, %v217
        %v861 = vrot.slane %v857, 2
        %v862 = vrot.slane %v858, 2
        %v863 = vsel %vm284, %v861, %v862
        %v865 = vadd.f32 %v854, %v863
        %s866 = sld [smem:[#allocation2 + $0x3d]]
        %v867 = vstv %s866
        %v868 = vmul.f32 %v867, %v216
        %v869 = vmul.f32 %v867, %v217
        %v872 = vrot.slane %v868, 2
        %v873 = vrot.slane %v869, 2
        %v874 = vsel %vm284, %v872, %v873
        %875 = vrot.lane.b32.xlu0 %v874, 127
        %v876 = vpop.permute.xlu0 %875
        %v878 = vadd.f32 %v865, %v876
        %s879 = sld [smem:[#allocation2 + $0x3e]]
        %v880 = vstv %s879
        %v881 = vmul.f32 %v880, %v216
        %v882 = vmul.f32 %v880, %v217
        %v885 = vrot.slane %v881, 2
        %v886 = vrot.slane %v882, 2
        %v887 = vsel %vm284, %v885, %v886
        %888 = vrot.lane.b32.xlu0 %v887, 126
        %v889 = vpop.permute.xlu0 %888
        %v891 = vadd.f32 %v878, %v889
        %s892 = sld [smem:[#allocation2 + $0x3f]]
        %v893 = vstv %s892
        %v894 = vmul.f32 %v893, %v218
        %v895 = vadd.f32 %v891, %v894
        %s896 = sld [smem:[#allocation2 + $0x40]]
        %v897 = vstv %s896
        %v898 = vmul.f32 %v897, %v218
        %900 = vrot.lane.b32.xlu0 %v898, 127
        %v901 = vpop.permute.xlu0 %900
        %v903 = vadd.f32 %v895, %v901
        %s904 = sld [smem:[#allocation2 + $0x41]]
        %v905 = vstv %s904
        %v906 = vmul.f32 %v905, %v218
        %908 = vrot.lane.b32.xlu0 %v906, 126
        %v909 = vpop.permute.xlu0 %908
        %v911 = vadd.f32 %v903, %v909
        %s912 = sld [smem:[#allocation2 + $0x42]]
        %v913 = vstv %s912
        %v914 = vmul.f32 %v913, %v218
        %v915 = vmul.f32 %v913, %v219
        %v918 = vrot.slane %v914, 1
        %v919 = vrot.slane %v915, 1
        %v920 = vsel %vm246, %v918, %v919
        %v922 = vadd.f32 %v911, %v920
        %s923 = sld [smem:[#allocation2 + $0x43]]
        %v924 = vstv %s923
        %v925 = vmul.f32 %v924, %v218
        %v926 = vmul.f32 %v924, %v219
        %v929 = vrot.slane %v925, 1
        %v930 = vrot.slane %v926, 1
        %v931 = vsel %vm246, %v929, %v930
        %932 = vrot.lane.b32.xlu0 %v931, 127
        %v933 = vpop.permute.xlu0 %932
        %v935 = vadd.f32 %v922, %v933
        %s936 = sld [smem:[#allocation2 + $0x44]]
        %v937 = vstv %s936
        %v938 = vmul.f32 %v937, %v218
        %v939 = vmul.f32 %v937, %v219
        %v942 = vrot.slane %v938, 1
        %v943 = vrot.slane %v939, 1
        %v944 = vsel %vm246, %v942, %v943
        %945 = vrot.lane.b32.xlu0 %v944, 126
        %v946 = vpop.permute.xlu0 %945
        %v948 = vadd.f32 %v935, %v946
        %s949 = sld [smem:[#allocation2 + $0x45]]
        %v950 = vstv %s949
        %v951 = vmul.f32 %v950, %v218
        %v952 = vmul.f32 %v950, %v219
        %v955 = vrot.slane %v951, 2
        %v956 = vrot.slane %v952, 2
        %v957 = vsel %vm284, %v955, %v956
        %v959 = vadd.f32 %v948, %v957
        %s960 = sld [smem:[#allocation2 + $0x46]]
        %v961 = vstv %s960
        %v962 = vmul.f32 %v961, %v218
        %v963 = vmul.f32 %v961, %v219
        %v966 = vrot.slane %v962, 2
        %v967 = vrot.slane %v963, 2
        %v968 = vsel %vm284, %v966, %v967
        %969 = vrot.lane.b32.xlu0 %v968, 127
        %v970 = vpop.permute.xlu0 %969
        %v972 = vadd.f32 %v959, %v970
        %s973 = sld [smem:[#allocation2 + $0x47]]
        %v974 = vstv %s973
        %v975 = vmul.f32 %v974, %v218
        %v976 = vmul.f32 %v974, %v219
        %v979 = vrot.slane %v975, 2
        %v980 = vrot.slane %v976, 2
        %v981 = vsel %vm284, %v979, %v980
        %982 = vrot.lane.b32.xlu0 %v981, 126
        %v983 = vpop.permute.xlu0 %982
        %v985 = vadd.f32 %v972, %v983
        %s986 = sld [smem:[#allocation5 + $0x1]]
        %v987 = vstv %s986
        %v988 = vadd.f32 %v985, %v987
        %v989 = vsub.f32 0.0, %v988
        %v990 = vmul.f32 %v989, 1.442695
        %v991 = vpow.pop %v990
        %v992 = vadd.f32 %v991, 1.0
        %v993 = vrcp.pop %v992
        %v994 = vmul.f32 1.0, %v993
        %v995 = vmul.f32 %v988, %v994
        %s996 = scalar_lea.vmem %s204, 8 [#allocation7]
        %997 = vst.msk [vmem:[%s996] sm:$0xff] %vm608, %v995
        %s998 = sld [smem:[#allocation2 + $0x48]]
        %v999 = vstv %s998
        %v1000 = vmul.f32 %v999, %v212
        %v1001 = vadd.f32 %v1000, 0.0
        %s1002 = sld [smem:[#allocation2 + $0x49]]
        %v1003 = vstv %s1002
        %v1004 = vmul.f32 %v1003, %v212
        %1006 = vrot.lane.b32.xlu0 %v1004, 127
        %v1007 = vpop.permute.xlu0 %1006
        %v1009 = vadd.f32 %v1001, %v1007
        %s1010 = sld [smem:[#allocation2 + $0x4a]]
        %v1011 = vstv %s1010
        %v1012 = vmul.f32 %v1011, %v212
        %1014 = vrot.lane.b32.xlu0 %v1012, 126
        %v1015 = vpop.permute.xlu0 %1014
        %v1017 = vadd.f32 %v1009, %v1015
        %s1018 = sld [smem:[#allocation2 + $0x4b]]
        %v1019 = vstv %s1018
        %v1020 = vmul.f32 %v1019, %v212
        %v1021 = vmul.f32 %v1019, %v213
        %v1024 = vrot.slane %v1020, 1
        %v1025 = vrot.slane %v1021, 1
        %v1026 = vsel %vm246, %v1024, %v1025
        %v1028 = vadd.f32 %v1017, %v1026
        %s1029 = sld [smem:[#allocation2 + $0x4c]]
        %v1030 = vstv %s1029
        %v1031 = vmul.f32 %v1030, %v212
        %v1032 = vmul.f32 %v1030, %v213
        %v1035 = vrot.slane %v1031, 1
        %v1036 = vrot.slane %v1032, 1
        %v1037 = vsel %vm246, %v1035, %v1036
        %1038 = vrot.lane.b32.xlu0 %v1037, 127
        %v1039 = vpop.permute.xlu0 %1038
        %v1041 = vadd.f32 %v1028, %v1039
        %s1042 = sld [smem:[#allocation2 + $0x4d]]
        %v1043 = vstv %s1042
        %v1044 = vmul.f32 %v1043, %v212
        %v1045 = vmul.f32 %v1043, %v213
        %v1048 = vrot.slane %v1044, 1
        %v1049 = vrot.slane %v1045, 1
        %v1050 = vsel %vm246, %v1048, %v1049
        %1051 = vrot.lane.b32.xlu0 %v1050, 126
        %v1052 = vpop.permute.xlu0 %1051
        %v1054 = vadd.f32 %v1041, %v1052
        %s1055 = sld [smem:[#allocation2 + $0x4e]]
        %v1056 = vstv %s1055
        %v1057 = vmul.f32 %v1056, %v212
        %v1058 = vmul.f32 %v1056, %v213
        %v1061 = vrot.slane %v1057, 2
        %v1062 = vrot.slane %v1058, 2
        %v1063 = vsel %vm284, %v1061, %v1062
        %v1065 = vadd.f32 %v1054, %v1063
        %s1066 = sld [smem:[#allocation2 + $0x4f]]
        %v1067 = vstv %s1066
        %v1068 = vmul.f32 %v1067, %v212
        %v1069 = vmul.f32 %v1067, %v213
        %v1072 = vrot.slane %v1068, 2
        %v1073 = vrot.slane %v1069, 2
        %v1074 = vsel %vm284, %v1072, %v1073
        %1075 = vrot.lane.b32.xlu0 %v1074, 127
        %v1076 = vpop.permute.xlu0 %1075
        %v1078 = vadd.f32 %v1065, %v1076
        %s1079 = sld [smem:[#allocation2 + $0x50]]
        %v1080 = vstv %s1079
        %v1081 = vmul.f32 %v1080, %v212
        %v1082 = vmul.f32 %v1080, %v213
        %v1085 = vrot.slane %v1081, 2
        %v1086 = vrot.slane %v1082, 2
        %v1087 = vsel %vm284, %v1085, %v1086
        %1088 = vrot.lane.b32.xlu0 %v1087, 126
        %v1089 = vpop.permute.xlu0 %1088
        %v1091 = vadd.f32 %v1078, %v1089
        %s1092 = sld [smem:[#allocation2 + $0x51]]
        %v1093 = vstv %s1092
        %v1094 = vmul.f32 %v1093, %v214
        %v1095 = vadd.f32 %v1091, %v1094
        %s1096 = sld [smem:[#allocation2 + $0x52]]
        %v1097 = vstv %s1096
        %v1098 = vmul.f32 %v1097, %v214
        %1100 = vrot.lane.b32.xlu0 %v1098, 127
        %v1101 = vpop.permute.xlu0 %1100
        %v1103 = vadd.f32 %v1095, %v1101
        %s1104 = sld [smem:[#allocation2 + $0x53]]
        %v1105 = vstv %s1104
        %v1106 = vmul.f32 %v1105, %v214
        %1108 = vrot.lane.b32.xlu0 %v1106, 126
        %v1109 = vpop.permute.xlu0 %1108
        %v1111 = vadd.f32 %v1103, %v1109
        %s1112 = sld [smem:[#allocation2 + $0x54]]
        %v1113 = vstv %s1112
        %v1114 = vmul.f32 %v1113, %v214
        %v1115 = vmul.f32 %v1113, %v215
        %v1118 = vrot.slane %v1114, 1
        %v1119 = vrot.slane %v1115, 1
        %v1120 = vsel %vm246, %v1118, %v1119
        %v1122 = vadd.f32 %v1111, %v1120
        %s1123 = sld [smem:[#allocation2 + $0x55]]
        %v1124 = vstv %s1123
        %v1125 = vmul.f32 %v1124, %v214
        %v1126 = vmul.f32 %v1124, %v215
        %v1129 = vrot.slane %v1125, 1
        %v1130 = vrot.slane %v1126, 1
        %v1131 = vsel %vm246, %v1129, %v1130
        %1132 = vrot.lane.b32.xlu0 %v1131, 127
        %v1133 = vpop.permute.xlu0 %1132
        %v1135 = vadd.f32 %v1122, %v1133
        %s1136 = sld [smem:[#allocation2 + $0x56]]
        %v1137 = vstv %s1136
        %v1138 = vmul.f32 %v1137, %v214
        %v1139 = vmul.f32 %v1137, %v215
        %v1142 = vrot.slane %v1138, 1
        %v1143 = vrot.slane %v1139, 1
        %v1144 = vsel %vm246, %v1142, %v1143
        %1145 = vrot.lane.b32.xlu0 %v1144, 126
        %v1146 = vpop.permute.xlu0 %1145
        %v1148 = vadd.f32 %v1135, %v1146
        %s1149 = sld [smem:[#allocation2 + $0x57]]
        %v1150 = vstv %s1149
        %v1151 = vmul.f32 %v1150, %v214
        %v1152 = vmul.f32 %v1150, %v215
        %v1155 = vrot.slane %v1151, 2
        %v1156 = vrot.slane %v1152, 2
        %v1157 = vsel %vm284, %v1155, %v1156
        %v1159 = vadd.f32 %v1148, %v1157
        %s1160 = sld [smem:[#allocation2 + $0x58]]
        %v1161 = vstv %s1160
        %v1162 = vmul.f32 %v1161, %v214
        %v1163 = vmul.f32 %v1161, %v215
        %v1166 = vrot.slane %v1162, 2
        %v1167 = vrot.slane %v1163, 2
        %v1168 = vsel %vm284, %v1166, %v1167
        %1169 = vrot.lane.b32.xlu0 %v1168, 127
        %v1170 = vpop.permute.xlu0 %1169
        %v1172 = vadd.f32 %v1159, %v1170
        %s1173 = sld [smem:[#allocation2 + $0x59]]
        %v1174 = vstv %s1173
        %v1175 = vmul.f32 %v1174, %v214
        %v1176 = vmul.f32 %v1174, %v215
        %v1179 = vrot.slane %v1175, 2
        %v1180 = vrot.slane %v1176, 2
        %v1181 = vsel %vm284, %v1179, %v1180
        %1182 = vrot.lane.b32.xlu0 %v1181, 126
        %v1183 = vpop.permute.xlu0 %1182
        %v1185 = vadd.f32 %v1172, %v1183
        %s1186 = sld [smem:[#allocation2 + $0x5a]]
        %v1187 = vstv %s1186
        %v1188 = vmul.f32 %v1187, %v216
        %v1189 = vadd.f32 %v1185, %v1188
        %s1190 = sld [smem:[#allocation2 + $0x5b]]
        %v1191 = vstv %s1190
        %v1192 = vmul.f32 %v1191, %v216
        %1194 = vrot.lane.b32.xlu0 %v1192, 127
        %v1195 = vpop.permute.xlu0 %1194
        %v1197 = vadd.f32 %v1189, %v1195
        %s1198 = sld [smem:[#allocation2 + $0x5c]]
        %v1199 = vstv %s1198
        %v1200 = vmul.f32 %v1199, %v216
        %1202 = vrot.lane.b32.xlu0 %v1200, 126
        %v1203 = vpop.permute.xlu0 %1202
        %v1205 = vadd.f32 %v1197, %v1203
        %s1206 = sld [smem:[#allocation2 + $0x5d]]
        %v1207 = vstv %s1206
        %v1208 = vmul.f32 %v1207, %v216
        %v1209 = vmul.f32 %v1207, %v217
        %v1212 = vrot.slane %v1208, 1
        %v1213 = vrot.slane %v1209, 1
        %v1214 = vsel %vm246, %v1212, %v1213
        %v1216 = vadd.f32 %v1205, %v1214
        %s1217 = sld [smem:[#allocation2 + $0x5e]]
        %v1218 = vstv %s1217
        %v1219 = vmul.f32 %v1218, %v216
        %v1220 = vmul.f32 %v1218, %v217
        %v1223 = vrot.slane %v1219, 1
        %v1224 = vrot.slane %v1220, 1
        %v1225 = vsel %vm246, %v1223, %v1224
        %1226 = vrot.lane.b32.xlu0 %v1225, 127
        %v1227 = vpop.permute.xlu0 %1226
        %v1229 = vadd.f32 %v1216, %v1227
        %s1230 = sld [smem:[#allocation2 + $0x5f]]
        %v1231 = vstv %s1230
        %v1232 = vmul.f32 %v1231, %v216
        %v1233 = vmul.f32 %v1231, %v217
        %v1236 = vrot.slane %v1232, 1
        %v1237 = vrot.slane %v1233, 1
        %v1238 = vsel %vm246, %v1236, %v1237
        %1239 = vrot.lane.b32.xlu0 %v1238, 126
        %v1240 = vpop.permute.xlu0 %1239
        %v1242 = vadd.f32 %v1229, %v1240
        %s1243 = sld [smem:[#allocation2 + $0x60]]
        %v1244 = vstv %s1243
        %v1245 = vmul.f32 %v1244, %v216
        %v1246 = vmul.f32 %v1244, %v217
        %v1249 = vrot.slane %v1245, 2
        %v1250 = vrot.slane %v1246, 2
        %v1251 = vsel %vm284, %v1249, %v1250
        %v1253 = vadd.f32 %v1242, %v1251
        %s1254 = sld [smem:[#allocation2 + $0x61]]
        %v1255 = vstv %s1254
        %v1256 = vmul.f32 %v1255, %v216
        %v1257 = vmul.f32 %v1255, %v217
        %v1260 = vrot.slane %v1256, 2
        %v1261 = vrot.slane %v1257, 2
        %v1262 = vsel %vm284, %v1260, %v1261
        %1263 = vrot.lane.b32.xlu0 %v1262, 127
        %v1264 = vpop.permute.xlu0 %1263
        %v1266 = vadd.f32 %v1253, %v1264
        %s1267 = sld [smem:[#allocation2 + $0x62]]
        %v1268 = vstv %s1267
        %v1269 = vmul.f32 %v1268, %v216
        %v1270 = vmul.f32 %v1268, %v217
        %v1273 = vrot.slane %v1269, 2
        %v1274 = vrot.slane %v1270, 2
        %v1275 = vsel %vm284, %v1273, %v1274
        %1276 = vrot.lane.b32.xlu0 %v1275, 126
        %v1277 = vpop.permute.xlu0 %1276
        %v1279 = vadd.f32 %v1266, %v1277
        %s1280 = sld [smem:[#allocation2 + $0x63]]
        %v1281 = vstv %s1280
        %v1282 = vmul.f32 %v1281, %v218
        %v1283 = vadd.f32 %v1279, %v1282
        %s1284 = sld [smem:[#allocation2 + $0x64]]
        %v1285 = vstv %s1284
        %v1286 = vmul.f32 %v1285, %v218
        %1288 = vrot.lane.b32.xlu0 %v1286, 127
        %v1289 = vpop.permute.xlu0 %1288
        %v1291 = vadd.f32 %v1283, %v1289
        %s1292 = sld [smem:[#allocation2 + $0x65]]
        %v1293 = vstv %s1292
        %v1294 = vmul.f32 %v1293, %v218
        %1296 = vrot.lane.b32.xlu0 %v1294, 126
        %v1297 = vpop.permute.xlu0 %1296
        %v1299 = vadd.f32 %v1291, %v1297
        %s1300 = sld [smem:[#allocation2 + $0x66]]
        %v1301 = vstv %s1300
        %v1302 = vmul.f32 %v1301, %v218
        %v1303 = vmul.f32 %v1301, %v219
        %v1306 = vrot.slane %v1302, 1
        %v1307 = vrot.slane %v1303, 1
        %v1308 = vsel %vm246, %v1306, %v1307
        %v1310 = vadd.f32 %v1299, %v1308
        %s1311 = sld [smem:[#allocation2 + $0x67]]
        %v1312 = vstv %s1311
        %v1313 = vmul.f32 %v1312, %v218
        %v1314 = vmul.f32 %v1312, %v219
        %v1317 = vrot.slane %v1313, 1
        %v1318 = vrot.slane %v1314, 1
        %v1319 = vsel %vm246, %v1317, %v1318
        %1320 = vrot.lane.b32.xlu0 %v1319, 127
        %v1321 = vpop.permute.xlu0 %1320
        %v1323 = vadd.f32 %v1310, %v1321
        %s1324 = sld [smem:[#allocation2 + $0x68]]
        %v1325 = vstv %s1324
        %v1326 = vmul.f32 %v1325, %v218
        %v1327 = vmul.f32 %v1325, %v219
        %v1330 = vrot.slane %v1326, 1
        %v1331 = vrot.slane %v1327, 1
        %v1332 = vsel %vm246, %v1330, %v1331
        %1333 = vrot.lane.b32.xlu0 %v1332, 126
        %v1334 = vpop.permute.xlu0 %1333
        %v1336 = vadd.f32 %v1323, %v1334
        %s1337 = sld [smem:[#allocation2 + $0x69]]
        %v1338 = vstv %s1337
        %v1339 = vmul.f32 %v1338, %v218
        %v1340 = vmul.f32 %v1338, %v219
        %v1343 = vrot.slane %v1339, 2
        %v1344 = vrot.slane %v1340, 2
        %v1345 = vsel %vm284, %v1343, %v1344
        %v1347 = vadd.f32 %v1336, %v1345
        %s1348 = sld [smem:[#allocation2 + $0x6a]]
        %v1349 = vstv %s1348
        %v1350 = vmul.f32 %v1349, %v218
        %v1351 = vmul.f32 %v1349, %v219
        %v1354 = vrot.slane %v1350, 2
        %v1355 = vrot.slane %v1351, 2
        %v1356 = vsel %vm284, %v1354, %v1355
        %1357 = vrot.lane.b32.xlu0 %v1356, 127
        %v1358 = vpop.permute.xlu0 %1357
        %v1360 = vadd.f32 %v1347, %v1358
        %s1361 = sld [smem:[#allocation2 + $0x6b]]
        %v1362 = vstv %s1361
        %v1363 = vmul.f32 %v1362, %v218
        %v1364 = vmul.f32 %v1362, %v219
        %v1367 = vrot.slane %v1363, 2
        %v1368 = vrot.slane %v1364, 2
        %v1369 = vsel %vm284, %v1367, %v1368
        %1370 = vrot.lane.b32.xlu0 %v1369, 126
        %v1371 = vpop.permute.xlu0 %1370
        %v1373 = vadd.f32 %v1360, %v1371
        %s1374 = sld [smem:[#allocation5 + $0x2]]
        %v1375 = vstv %s1374
        %v1376 = vadd.f32 %v1373, %v1375
        %v1377 = vsub.f32 0.0, %v1376
        %v1378 = vmul.f32 %v1377, 1.442695
        %v1379 = vpow.pop %v1378
        %v1380 = vadd.f32 %v1379, 1.0
        %v1381 = vrcp.pop %v1380
        %v1382 = vmul.f32 1.0, %v1381
        %v1383 = vmul.f32 %v1376, %v1382
        %s1384 = scalar_lea.vmem %s204, 16 [#allocation7]
        %1385 = vst.msk [vmem:[%s1384] sm:$0xff] %vm608, %v1383
        %s1386 = sld [smem:[#allocation2 + $0x6c]]
        %v1387 = vstv %s1386
        %v1388 = vmul.f32 %v1387, %v212
        %v1389 = vadd.f32 %v1388, 0.0
        %s1390 = sld [smem:[#allocation2 + $0x6d]]
        %v1391 = vstv %s1390
        %v1392 = vmul.f32 %v1391, %v212
        %1394 = vrot.lane.b32.xlu0 %v1392, 127
        %v1395 = vpop.permute.xlu0 %1394
        %v1397 = vadd.f32 %v1389, %v1395
        %s1398 = sld [smem:[#allocation2 + $0x6e]]
        %v1399 = vstv %s1398
        %v1400 = vmul.f32 %v1399, %v212
        %1402 = vrot.lane.b32.xlu0 %v1400, 126
        %v1403 = vpop.permute.xlu0 %1402
        %v1405 = vadd.f32 %v1397, %v1403
        %s1406 = sld [smem:[#allocation2 + $0x6f]]
        %v1407 = vstv %s1406
        %v1408 = vmul.f32 %v1407, %v212
        %v1409 = vmul.f32 %v1407, %v213
        %v1412 = vrot.slane %v1408, 1
        %v1413 = vrot.slane %v1409, 1
        %v1414 = vsel %vm246, %v1412, %v1413
        %v1416 = vadd.f32 %v1405, %v1414
        %s1417 = sld [smem:[#allocation2 + $0x70]]
        %v1418 = vstv %s1417
        %v1419 = vmul.f32 %v1418, %v212
        %v1420 = vmul.f32 %v1418, %v213
        %v1423 = vrot.slane %v1419, 1
        %v1424 = vrot.slane %v1420, 1
        %v1425 = vsel %vm246, %v1423, %v1424
        %1426 = vrot.lane.b32.xlu0 %v1425, 127
        %v1427 = vpop.permute.xlu0 %1426
        %v1429 = vadd.f32 %v1416, %v1427
        %s1430 = sld [smem:[#allocation2 + $0x71]]
        %v1431 = vstv %s1430
        %v1432 = vmul.f32 %v1431, %v212
        %v1433 = vmul.f32 %v1431, %v213
        %v1436 = vrot.slane %v1432, 1
        %v1437 = vrot.slane %v1433, 1
        %v1438 = vsel %vm246, %v1436, %v1437
        %1439 = vrot.lane.b32.xlu0 %v1438, 126
        %v1440 = vpop.permute.xlu0 %1439
        %v1442 = vadd.f32 %v1429, %v1440
        %s1443 = sld [smem:[#allocation2 + $0x72]]
        %v1444 = vstv %s1443
        %v1445 = vmul.f32 %v1444, %v212
        %v1446 = vmul.f32 %v1444, %v213
        %v1449 = vrot.slane %v1445, 2
        %v1450 = vrot.slane %v1446, 2
        %v1451 = vsel %vm284, %v1449, %v1450
        %v1453 = vadd.f32 %v1442, %v1451
        %s1454 = sld [smem:[#allocation2 + $0x73]]
        %v1455 = vstv %s1454
        %v1456 = vmul.f32 %v1455, %v212
        %v1457 = vmul.f32 %v1455, %v213
        %v1460 = vrot.slane %v1456, 2
        %v1461 = vrot.slane %v1457, 2
        %v1462 = vsel %vm284, %v1460, %v1461
        %1463 = vrot.lane.b32.xlu0 %v1462, 127
        %v1464 = vpop.permute.xlu0 %1463
        %v1466 = vadd.f32 %v1453, %v1464
        %s1467 = sld [smem:[#allocation2 + $0x74]]
        %v1468 = vstv %s1467
        %v1469 = vmul.f32 %v1468, %v212
        %v1470 = vmul.f32 %v1468, %v213
        %v1473 = vrot.slane %v1469, 2
        %v1474 = vrot.slane %v1470, 2
        %v1475 = vsel %vm284, %v1473, %v1474
        %1476 = vrot.lane.b32.xlu0 %v1475, 126
        %v1477 = vpop.permute.xlu0 %1476
        %v1479 = vadd.f32 %v1466, %v1477
        %s1480 = sld [smem:[#allocation2 + $0x75]]
        %v1481 = vstv %s1480
        %v1482 = vmul.f32 %v1481, %v214
        %v1483 = vadd.f32 %v1479, %v1482
        %s1484 = sld [smem:[#allocation2 + $0x76]]
        %v1485 = vstv %s1484
        %v1486 = vmul.f32 %v1485, %v214
        %1488 = vrot.lane.b32.xlu0 %v1486, 127
        %v1489 = vpop.permute.xlu0 %1488
        %v1491 = vadd.f32 %v1483, %v1489
        %s1492 = sld [smem:[#allocation2 + $0x77]]
        %v1493 = vstv %s1492
        %v1494 = vmul.f32 %v1493, %v214
        %1496 = vrot.lane.b32.xlu0 %v1494, 126
        %v1497 = vpop.permute.xlu0 %1496
        %v1499 = vadd.f32 %v1491, %v1497
        %s1500 = sld [smem:[#allocation2 + $0x78]]
        %v1501 = vstv %s1500
        %v1502 = vmul.f32 %v1501, %v214
        %v1503 = vmul.f32 %v1501, %v215
        %v1506 = vrot.slane %v1502, 1
        %v1507 = vrot.slane %v1503, 1
        %v1508 = vsel %vm246, %v1506, %v1507
        %v1510 = vadd.f32 %v1499, %v1508
        %s1511 = sld [smem:[#allocation2 + $0x79]]
        %v1512 = vstv %s1511
        %v1513 = vmul.f32 %v1512, %v214
        %v1514 = vmul.f32 %v1512, %v215
        %v1517 = vrot.slane %v1513, 1
        %v1518 = vrot.slane %v1514, 1
        %v1519 = vsel %vm246, %v1517, %v1518
        %1520 = vrot.lane.b32.xlu0 %v1519, 127
        %v1521 = vpop.permute.xlu0 %1520
        %v1523 = vadd.f32 %v1510, %v1521
        %s1524 = sld [smem:[#allocation2 + $0x7a]]
        %v1525 = vstv %s1524
        %v1526 = vmul.f32 %v1525, %v214
        %v1527 = vmul.f32 %v1525, %v215
        %v1530 = vrot.slane %v1526, 1
        %v1531 = vrot.slane %v1527, 1
        %v1532 = vsel %vm246, %v1530, %v1531
        %1533 = vrot.lane.b32.xlu0 %v1532, 126
        %v1534 = vpop.permute.xlu0 %1533
        %v1536 = vadd.f32 %v1523, %v1534
        %s1537 = sld [smem:[#allocation2 + $0x7b]]
        %v1538 = vstv %s1537
        %v1539 = vmul.f32 %v1538, %v214
        %v1540 = vmul.f32 %v1538, %v215
        %v1543 = vrot.slane %v1539, 2
        %v1544 = vrot.slane %v1540, 2
        %v1545 = vsel %vm284, %v1543, %v1544
        %v1547 = vadd.f32 %v1536, %v1545
        %s1548 = sld [smem:[#allocation2 + $0x7c]]
        %v1549 = vstv %s1548
        %v1550 = vmul.f32 %v1549, %v214
        %v1551 = vmul.f32 %v1549, %v215
        %v1554 = vrot.slane %v1550, 2
        %v1555 = vrot.slane %v1551, 2
        %v1556 = vsel %vm284, %v1554, %v1555
        %1557 = vrot.lane.b32.xlu0 %v1556, 127
        %v1558 = vpop.permute.xlu0 %1557
        %v1560 = vadd.f32 %v1547, %v1558
        %s1561 = sld [smem:[#allocation2 + $0x7d]]
        %v1562 = vstv %s1561
        %v1563 = vmul.f32 %v1562, %v214
        %v1564 = vmul.f32 %v1562, %v215
        %v1567 = vrot.slane %v1563, 2
        %v1568 = vrot.slane %v1564, 2
        %v1569 = vsel %vm284, %v1567, %v1568
        %1570 = vrot.lane.b32.xlu0 %v1569, 126
        %v1571 = vpop.permute.xlu0 %1570
        %v1573 = vadd.f32 %v1560, %v1571
        %s1574 = sld [smem:[#allocation2 + $0x7e]]
        %v1575 = vstv %s1574
        %v1576 = vmul.f32 %v1575, %v216
        %v1577 = vadd.f32 %v1573, %v1576
        %s1578 = sld [smem:[#allocation2 + $0x7f]]
        %v1579 = vstv %s1578
        %v1580 = vmul.f32 %v1579, %v216
        %1582 = vrot.lane.b32.xlu0 %v1580, 127
        %v1583 = vpop.permute.xlu0 %1582
        %v1585 = vadd.f32 %v1577, %v1583
        %s1586 = sld [smem:[#allocation2 + $0x80]]
        %v1587 = vstv %s1586
        %v1588 = vmul.f32 %v1587, %v216
        %1590 = vrot.lane.b32.xlu0 %v1588, 126
        %v1591 = vpop.permute.xlu0 %1590
        %v1593 = vadd.f32 %v1585, %v1591
        %s1594 = sld [smem:[#allocation2 + $0x81]]
        %v1595 = vstv %s1594
        %v1596 = vmul.f32 %v1595, %v216
        %v1597 = vmul.f32 %v1595, %v217
        %v1600 = vrot.slane %v1596, 1
        %v1601 = vrot.slane %v1597, 1
        %v1602 = vsel %vm246, %v1600, %v1601
        %v1604 = vadd.f32 %v1593, %v1602
        %s1605 = sld [smem:[#allocation2 + $0x82]]
        %v1606 = vstv %s1605
        %v1607 = vmul.f32 %v1606, %v216
        %v1608 = vmul.f32 %v1606, %v217
        %v1611 = vrot.slane %v1607, 1
        %v1612 = vrot.slane %v1608, 1
        %v1613 = vsel %vm246, %v1611, %v1612
        %1614 = vrot.lane.b32.xlu0 %v1613, 127
        %v1615 = vpop.permute.xlu0 %1614
        %v1617 = vadd.f32 %v1604, %v1615
        %s1618 = sld [smem:[#allocation2 + $0x83]]
        %v1619 = vstv %s1618
        %v1620 = vmul.f32 %v1619, %v216
        %v1621 = vmul.f32 %v1619, %v217
        %v1624 = vrot.slane %v1620, 1
        %v1625 = vrot.slane %v1621, 1
        %v1626 = vsel %vm246, %v1624, %v1625
        %1627 = vrot.lane.b32.xlu0 %v1626, 126
        %v1628 = vpop.permute.xlu0 %1627
        %v1630 = vadd.f32 %v1617, %v1628
        %s1631 = sld [smem:[#allocation2 + $0x84]]
        %v1632 = vstv %s1631
        %v1633 = vmul.f32 %v1632, %v216
        %v1634 = vmul.f32 %v1632, %v217
        %v1637 = vrot.slane %v1633, 2
        %v1638 = vrot.slane %v1634, 2
        %v1639 = vsel %vm284, %v1637, %v1638
        %v1641 = vadd.f32 %v1630, %v1639
        %s1642 = sld [smem:[#allocation2 + $0x85]]
        %v1643 = vstv %s1642
        %v1644 = vmul.f32 %v1643, %v216
        %v1645 = vmul.f32 %v1643, %v217
        %v1648 = vrot.slane %v1644, 2
        %v1649 = vrot.slane %v1645, 2
        %v1650 = vsel %vm284, %v1648, %v1649
        %1651 = vrot.lane.b32.xlu0 %v1650, 127
        %v1652 = vpop.permute.xlu0 %1651
        %v1654 = vadd.f32 %v1641, %v1652
        %s1655 = sld [smem:[#allocation2 + $0x86]]
        %v1656 = vstv %s1655
        %v1657 = vmul.f32 %v1656, %v216
        %v1658 = vmul.f32 %v1656, %v217
        %v1661 = vrot.slane %v1657, 2
        %v1662 = vrot.slane %v1658, 2
        %v1663 = vsel %vm284, %v1661, %v1662
        %1664 = vrot.lane.b32.xlu0 %v1663, 126
        %v1665 = vpop.permute.xlu0 %1664
        %v1667 = vadd.f32 %v1654, %v1665
        %s1668 = sld [smem:[#allocation2 + $0x87]]
        %v1669 = vstv %s1668
        %v1670 = vmul.f32 %v1669, %v218
        %v1671 = vadd.f32 %v1667, %v1670
        %s1672 = sld [smem:[#allocation2 + $0x88]]
        %v1673 = vstv %s1672
        %v1674 = vmul.f32 %v1673, %v218
        %1676 = vrot.lane.b32.xlu0 %v1674, 127
        %v1677 = vpop.permute.xlu0 %1676
        %v1679 = vadd.f32 %v1671, %v1677
        %s1680 = sld [smem:[#allocation2 + $0x89]]
        %v1681 = vstv %s1680
        %v1682 = vmul.f32 %v1681, %v218
        %1684 = vrot.lane.b32.xlu0 %v1682, 126
        %v1685 = vpop.permute.xlu0 %1684
        %v1687 = vadd.f32 %v1679, %v1685
        %s1688 = sld [smem:[#allocation2 + $0x8a]]
        %v1689 = vstv %s1688
        %v1690 = vmul.f32 %v1689, %v218
        %v1691 = vmul.f32 %v1689, %v219
        %v1694 = vrot.slane %v1690, 1
        %v1695 = vrot.slane %v1691, 1
        %v1696 = vsel %vm246, %v1694, %v1695
        %v1698 = vadd.f32 %v1687, %v1696
        %s1699 = sld [smem:[#allocation2 + $0x8b]]
        %v1700 = vstv %s1699
        %v1701 = vmul.f32 %v1700, %v218
        %v1702 = vmul.f32 %v1700, %v219
        %v1705 = vrot.slane %v1701, 1
        %v1706 = vrot.slane %v1702, 1
        %v1707 = vsel %vm246, %v1705, %v1706
        %1708 = vrot.lane.b32.xlu0 %v1707, 127
        %v1709 = vpop.permute.xlu0 %1708
        %v1711 = vadd.f32 %v1698, %v1709
        %s1712 = sld [smem:[#allocation2 + $0x8c]]
        %v1713 = vstv %s1712
        %v1714 = vmul.f32 %v1713, %v218
        %v1715 = vmul.f32 %v1713, %v219
        %v1718 = vrot.slane %v1714, 1
        %v1719 = vrot.slane %v1715, 1
        %v1720 = vsel %vm246, %v1718, %v1719
        %1721 = vrot.lane.b32.xlu0 %v1720, 126
        %v1722 = vpop.permute.xlu0 %1721
        %v1724 = vadd.f32 %v1711, %v1722
        %s1725 = sld [smem:[#allocation2 + $0x8d]]
        %v1726 = vstv %s1725
        %v1727 = vmul.f32 %v1726, %v218
        %v1728 = vmul.f32 %v1726, %v219
        %v1731 = vrot.slane %v1727, 2
        %v1732 = vrot.slane %v1728, 2
        %v1733 = vsel %vm284, %v1731, %v1732
        %v1735 = vadd.f32 %v1724, %v1733
        %s1736 = sld [smem:[#allocation2 + $0x8e]]
        %v1737 = vstv %s1736
        %v1738 = vmul.f32 %v1737, %v218
        %v1739 = vmul.f32 %v1737, %v219
        %v1742 = vrot.slane %v1738, 2
        %v1743 = vrot.slane %v1739, 2
        %v1744 = vsel %vm284, %v1742, %v1743
        %1745 = vrot.lane.b32.xlu0 %v1744, 127
        %v1746 = vpop.permute.xlu0 %1745
        %v1748 = vadd.f32 %v1735, %v1746
        %s1749 = sld [smem:[#allocation2 + $0x8f]]
        %v1750 = vstv %s1749
        %v1751 = vmul.f32 %v1750, %v218
        %v1752 = vmul.f32 %v1750, %v219
        %v1755 = vrot.slane %v1751, 2
        %v1756 = vrot.slane %v1752, 2
        %v1757 = vsel %vm284, %v1755, %v1756
        %1758 = vrot.lane.b32.xlu0 %v1757, 126
        %v1759 = vpop.permute.xlu0 %1758
        %v1761 = vadd.f32 %v1748, %v1759
        %s1762 = sld [smem:[#allocation5 + $0x3]]
        %v1763 = vstv %s1762
        %v1764 = vadd.f32 %v1761, %v1763
        %v1765 = vsub.f32 0.0, %v1764
        %v1766 = vmul.f32 %v1765, 1.442695
        %v1767 = vpow.pop %v1766
        %v1768 = vadd.f32 %v1767, 1.0
        %v1769 = vrcp.pop %v1768
        %v1770 = vmul.f32 1.0, %v1769
        %v1771 = vmul.f32 %v1764, %v1770
        %s1772 = scalar_lea.vmem %s204, 24 [#allocation7]
        %1773 = vst.msk [vmem:[%s1772] sm:$0xff] %vm608, %v1771
        %s1774 = sld [smem:[#allocation2 + $0x90]]
        %v1775 = vstv %s1774
        %v1776 = vmul.f32 %v1775, %v212
        %v1777 = vadd.f32 %v1776, 0.0
        %s1778 = sld [smem:[#allocation2 + $0x91]]
        %v1779 = vstv %s1778
        %v1780 = vmul.f32 %v1779, %v212
        %1782 = vrot.lane.b32.xlu0 %v1780, 127
        %v1783 = vpop.permute.xlu0 %1782
        %v1785 = vadd.f32 %v1777, %v1783
        %s1786 = sld [smem:[#allocation2 + $0x92]]
        %v1787 = vstv %s1786
        %v1788 = vmul.f32 %v1787, %v212
        %1790 = vrot.lane.b32.xlu0 %v1788, 126
        %v1791 = vpop.permute.xlu0 %1790
        %v1793 = vadd.f32 %v1785, %v1791
        %s1794 = sld [smem:[#allocation2 + $0x93]]
        %v1795 = vstv %s1794
        %v1796 = vmul.f32 %v1795, %v212
        %v1797 = vmul.f32 %v1795, %v213
        %v1800 = vrot.slane %v1796, 1
        %v1801 = vrot.slane %v1797, 1
        %v1802 = vsel %vm246, %v1800, %v1801
        %v1804 = vadd.f32 %v1793, %v1802
        %s1805 = sld [smem:[#allocation2 + $0x94]]
        %v1806 = vstv %s1805
        %v1807 = vmul.f32 %v1806, %v212
        %v1808 = vmul.f32 %v1806, %v213
        %v1811 = vrot.slane %v1807, 1
        %v1812 = vrot.slane %v1808, 1
        %v1813 = vsel %vm246, %v1811, %v1812
        %1814 = vrot.lane.b32.xlu0 %v1813, 127
        %v1815 = vpop.permute.xlu0 %1814
        %v1817 = vadd.f32 %v1804, %v1815
        %s1818 = sld [smem:[#allocation2 + $0x95]]
        %v1819 = vstv %s1818
        %v1820 = vmul.f32 %v1819, %v212
        %v1821 = vmul.f32 %v1819, %v213
        %v1824 = vrot.slane %v1820, 1
        %v1825 = vrot.slane %v1821, 1
        %v1826 = vsel %vm246, %v1824, %v1825
        %1827 = vrot.lane.b32.xlu0 %v1826, 126
        %v1828 = vpop.permute.xlu0 %1827
        %v1830 = vadd.f32 %v1817, %v1828
        %s1831 = sld [smem:[#allocation2 + $0x96]]
        %v1832 = vstv %s1831
        %v1833 = vmul.f32 %v1832, %v212
        %v1834 = vmul.f32 %v1832, %v213
        %v1837 = vrot.slane %v1833, 2
        %v1838 = vrot.slane %v1834, 2
        %v1839 = vsel %vm284, %v1837, %v1838
        %v1841 = vadd.f32 %v1830, %v1839
        %s1842 = sld [smem:[#allocation2 + $0x97]]
        %v1843 = vstv %s1842
        %v1844 = vmul.f32 %v1843, %v212
        %v1845 = vmul.f32 %v1843, %v213
        %v1848 = vrot.slane %v1844, 2
        %v1849 = vrot.slane %v1845, 2
        %v1850 = vsel %vm284, %v1848, %v1849
        %1851 = vrot.lane.b32.xlu0 %v1850, 127
        %v1852 = vpop.permute.xlu0 %1851
        %v1854 = vadd.f32 %v1841, %v1852
        %s1855 = sld [smem:[#allocation2 + $0x98]]
        %v1856 = vstv %s1855
        %v1857 = vmul.f32 %v1856, %v212
        %v1858 = vmul.f32 %v1856, %v213
        %v1861 = vrot.slane %v1857, 2
        %v1862 = vrot.slane %v1858, 2
        %v1863 = vsel %vm284, %v1861, %v1862
        %1864 = vrot.lane.b32.xlu0 %v1863, 126
        %v1865 = vpop.permute.xlu0 %1864
        %v1867 = vadd.f32 %v1854, %v1865
        %s1868 = sld [smem:[#allocation2 + $0x99]]
        %v1869 = vstv %s1868
        %v1870 = vmul.f32 %v1869, %v214
        %v1871 = vadd.f32 %v1867, %v1870
        %s1872 = sld [smem:[#allocation2 + $0x9a]]
        %v1873 = vstv %s1872
        %v1874 = vmul.f32 %v1873, %v214
        %1876 = vrot.lane.b32.xlu0 %v1874, 127
        %v1877 = vpop.permute.xlu0 %1876
        %v1879 = vadd.f32 %v1871, %v1877
        %s1880 = sld [smem:[#allocation2 + $0x9b]]
        %v1881 = vstv %s1880
        %v1882 = vmul.f32 %v1881, %v214
        %1884 = vrot.lane.b32.xlu0 %v1882, 126
        %v1885 = vpop.permute.xlu0 %1884
        %v1887 = vadd.f32 %v1879, %v1885
        %s1888 = sld [smem:[#allocation2 + $0x9c]]
        %v1889 = vstv %s1888
        %v1890 = vmul.f32 %v1889, %v214
        %v1891 = vmul.f32 %v1889, %v215
        %v1894 = vrot.slane %v1890, 1
        %v1895 = vrot.slane %v1891, 1
        %v1896 = vsel %vm246, %v1894, %v1895
        %v1898 = vadd.f32 %v1887, %v1896
        %s1899 = sld [smem:[#allocation2 + $0x9d]]
        %v1900 = vstv %s1899
        %v1901 = vmul.f32 %v1900, %v214
        %v1902 = vmul.f32 %v1900, %v215
        %v1905 = vrot.slane %v1901, 1
        %v1906 = vrot.slane %v1902, 1
        %v1907 = vsel %vm246, %v1905, %v1906
        %1908 = vrot.lane.b32.xlu0 %v1907, 127
        %v1909 = vpop.permute.xlu0 %1908
        %v1911 = vadd.f32 %v1898, %v1909
        %s1912 = sld [smem:[#allocation2 + $0x9e]]
        %v1913 = vstv %s1912
        %v1914 = vmul.f32 %v1913, %v214
        %v1915 = vmul.f32 %v1913, %v215
        %v1918 = vrot.slane %v1914, 1
        %v1919 = vrot.slane %v1915, 1
        %v1920 = vsel %vm246, %v1918, %v1919
        %1921 = vrot.lane.b32.xlu0 %v1920, 126
        %v1922 = vpop.permute.xlu0 %1921
        %v1924 = vadd.f32 %v1911, %v1922
        %s1925 = sld [smem:[#allocation2 + $0x9f]]
        %v1926 = vstv %s1925
        %v1927 = vmul.f32 %v1926, %v214
        %v1928 = vmul.f32 %v1926, %v215
        %v1931 = vrot.slane %v1927, 2
        %v1932 = vrot.slane %v1928, 2
        %v1933 = vsel %vm284, %v1931, %v1932
        %v1935 = vadd.f32 %v1924, %v1933
        %s1936 = sld [smem:[#allocation2 + $0xa0]]
        %v1937 = vstv %s1936
        %v1938 = vmul.f32 %v1937, %v214
        %v1939 = vmul.f32 %v1937, %v215
        %v1942 = vrot.slane %v1938, 2
        %v1943 = vrot.slane %v1939, 2
        %v1944 = vsel %vm284, %v1942, %v1943
        %1945 = vrot.lane.b32.xlu0 %v1944, 127
        %v1946 = vpop.permute.xlu0 %1945
        %v1948 = vadd.f32 %v1935, %v1946
        %s1949 = sld [smem:[#allocation2 + $0xa1]]
        %v1950 = vstv %s1949
        %v1951 = vmul.f32 %v1950, %v214
        %v1952 = vmul.f32 %v1950, %v215
        %v1955 = vrot.slane %v1951, 2
        %v1956 = vrot.slane %v1952, 2
        %v1957 = vsel %vm284, %v1955, %v1956
        %1958 = vrot.lane.b32.xlu0 %v1957, 126
        %v1959 = vpop.permute.xlu0 %1958
        %v1961 = vadd.f32 %v1948, %v1959
        %s1962 = sld [smem:[#allocation2 + $0xa2]]
        %v1963 = vstv %s1962
        %v1964 = vmul.f32 %v1963, %v216
        %v1965 = vadd.f32 %v1961, %v1964
        %s1966 = sld [smem:[#allocation2 + $0xa3]]
        %v1967 = vstv %s1966
        %v1968 = vmul.f32 %v1967, %v216
        %1970 = vrot.lane.b32.xlu0 %v1968, 127
        %v1971 = vpop.permute.xlu0 %1970
        %v1973 = vadd.f32 %v1965, %v1971
        %s1974 = sld [smem:[#allocation2 + $0xa4]]
        %v1975 = vstv %s1974
        %v1976 = vmul.f32 %v1975, %v216
        %1978 = vrot.lane.b32.xlu0 %v1976, 126
        %v1979 = vpop.permute.xlu0 %1978
        %v1981 = vadd.f32 %v1973, %v1979
        %s1982 = sld [smem:[#allocation2 + $0xa5]]
        %v1983 = vstv %s1982
        %v1984 = vmul.f32 %v1983, %v216
        %v1985 = vmul.f32 %v1983, %v217
        %v1988 = vrot.slane %v1984, 1
        %v1989 = vrot.slane %v1985, 1
        %v1990 = vsel %vm246, %v1988, %v1989
        %v1992 = vadd.f32 %v1981, %v1990
        %s1993 = sld [smem:[#allocation2 + $0xa6]]
        %v1994 = vstv %s1993
        %v1995 = vmul.f32 %v1994, %v216
        %v1996 = vmul.f32 %v1994, %v217
        %v1999 = vrot.slane %v1995, 1
        %v2000 = vrot.slane %v1996, 1
        %v2001 = vsel %vm246, %v1999, %v2000
        %2002 = vrot.lane.b32.xlu0 %v2001, 127
        %v2003 = vpop.permute.xlu0 %2002
        %v2005 = vadd.f32 %v1992, %v2003
        %s2006 = sld [smem:[#allocation2 + $0xa7]]
        %v2007 = vstv %s2006
        %v2008 = vmul.f32 %v2007, %v216
        %v2009 = vmul.f32 %v2007, %v217
        %v2012 = vrot.slane %v2008, 1
        %v2013 = vrot.slane %v2009, 1
        %v2014 = vsel %vm246, %v2012, %v2013
        %2015 = vrot.lane.b32.xlu0 %v2014, 126
        %v2016 = vpop.permute.xlu0 %2015
        %v2018 = vadd.f32 %v2005, %v2016
        %s2019 = sld [smem:[#allocation2 + $0xa8]]
        %v2020 = vstv %s2019
        %v2021 = vmul.f32 %v2020, %v216
        %v2022 = vmul.f32 %v2020, %v217
        %v2025 = vrot.slane %v2021, 2
        %v2026 = vrot.slane %v2022, 2
        %v2027 = vsel %vm284, %v2025, %v2026
        %v2029 = vadd.f32 %v2018, %v2027
        %s2030 = sld [smem:[#allocation2 + $0xa9]]
        %v2031 = vstv %s2030
        %v2032 = vmul.f32 %v2031, %v216
        %v2033 = vmul.f32 %v2031, %v217
        %v2036 = vrot.slane %v2032, 2
        %v2037 = vrot.slane %v2033, 2
        %v2038 = vsel %vm284, %v2036, %v2037
        %2039 = vrot.lane.b32.xlu0 %v2038, 127
        %v2040 = vpop.permute.xlu0 %2039
        %v2042 = vadd.f32 %v2029, %v2040
        %s2043 = sld [smem:[#allocation2 + $0xaa]]
        %v2044 = vstv %s2043
        %v2045 = vmul.f32 %v2044, %v216
        %v2046 = vmul.f32 %v2044, %v217
        %v2049 = vrot.slane %v2045, 2
        %v2050 = vrot.slane %v2046, 2
        %v2051 = vsel %vm284, %v2049, %v2050
        %2052 = vrot.lane.b32.xlu0 %v2051, 126
        %v2053 = vpop.permute.xlu0 %2052
        %v2055 = vadd.f32 %v2042, %v2053
        %s2056 = sld [smem:[#allocation2 + $0xab]]
        %v2057 = vstv %s2056
        %v2058 = vmul.f32 %v2057, %v218
        %v2059 = vadd.f32 %v2055, %v2058
        %s2060 = sld [smem:[#allocation2 + $0xac]]
        %v2061 = vstv %s2060
        %v2062 = vmul.f32 %v2061, %v218
        %2064 = vrot.lane.b32.xlu0 %v2062, 127
        %v2065 = vpop.permute.xlu0 %2064
        %v2067 = vadd.f32 %v2059, %v2065
        %s2068 = sld [smem:[#allocation2 + $0xad]]
        %v2069 = vstv %s2068
        %v2070 = vmul.f32 %v2069, %v218
        %2072 = vrot.lane.b32.xlu0 %v2070, 126
        %v2073 = vpop.permute.xlu0 %2072
        %v2075 = vadd.f32 %v2067, %v2073
        %s2076 = sld [smem:[#allocation2 + $0xae]]
        %v2077 = vstv %s2076
        %v2078 = vmul.f32 %v2077, %v218
        %v2079 = vmul.f32 %v2077, %v219
        %v2082 = vrot.slane %v2078, 1
        %v2083 = vrot.slane %v2079, 1
        %v2084 = vsel %vm246, %v2082, %v2083
        %v2086 = vadd.f32 %v2075, %v2084
        %s2087 = sld [smem:[#allocation2 + $0xaf]]
        %v2088 = vstv %s2087
        %v2089 = vmul.f32 %v2088, %v218
        %v2090 = vmul.f32 %v2088, %v219
        %v2093 = vrot.slane %v2089, 1
        %v2094 = vrot.slane %v2090, 1
        %v2095 = vsel %vm246, %v2093, %v2094
        %2096 = vrot.lane.b32.xlu0 %v2095, 127
        %v2097 = vpop.permute.xlu0 %2096
        %v2099 = vadd.f32 %v2086, %v2097
        %s2100 = sld [smem:[#allocation2 + $0xb0]]
        %v2101 = vstv %s2100
        %v2102 = vmul.f32 %v2101, %v218
        %v2103 = vmul.f32 %v2101, %v219
        %v2106 = vrot.slane %v2102, 1
        %v2107 = vrot.slane %v2103, 1
        %v2108 = vsel %vm246, %v2106, %v2107
        %2109 = vrot.lane.b32.xlu0 %v2108, 126
        %v2110 = vpop.permute.xlu0 %2109
        %v2112 = vadd.f32 %v2099, %v2110
        %s2113 = sld [smem:[#allocation2 + $0xb1]]
        %v2114 = vstv %s2113
        %v2115 = vmul.f32 %v2114, %v218
        %v2116 = vmul.f32 %v2114, %v219
        %v2119 = vrot.slane %v2115, 2
        %v2120 = vrot.slane %v2116, 2
        %v2121 = vsel %vm284, %v2119, %v2120
        %v2123 = vadd.f32 %v2112, %v2121
        %s2124 = sld [smem:[#allocation2 + $0xb2]]
        %v2125 = vstv %s2124
        %v2126 = vmul.f32 %v2125, %v218
        %v2127 = vmul.f32 %v2125, %v219
        %v2130 = vrot.slane %v2126, 2
        %v2131 = vrot.slane %v2127, 2
        %v2132 = vsel %vm284, %v2130, %v2131
        %2133 = vrot.lane.b32.xlu0 %v2132, 127
        %v2134 = vpop.permute.xlu0 %2133
        %v2136 = vadd.f32 %v2123, %v2134
        %s2137 = sld [smem:[#allocation2 + $0xb3]]
        %v2138 = vstv %s2137
        %v2139 = vmul.f32 %v2138, %v218
        %v2140 = vmul.f32 %v2138, %v219
        %v2143 = vrot.slane %v2139, 2
        %v2144 = vrot.slane %v2140, 2
        %v2145 = vsel %vm284, %v2143, %v2144
        %2146 = vrot.lane.b32.xlu0 %v2145, 126
        %v2147 = vpop.permute.xlu0 %2146
        %v2149 = vadd.f32 %v2136, %v2147
        %s2150 = sld [smem:[#allocation5 + $0x4]]
        %v2151 = vstv %s2150
        %v2152 = vadd.f32 %v2149, %v2151
        %v2153 = vsub.f32 0.0, %v2152
        %v2154 = vmul.f32 %v2153, 1.442695
        %v2155 = vpow.pop %v2154
        %v2156 = vadd.f32 %v2155, 1.0
        %v2157 = vrcp.pop %v2156
        %v2158 = vmul.f32 1.0, %v2157
        %v2159 = vmul.f32 %v2152, %v2158
        %s2160 = scalar_lea.vmem %s204, 32 [#allocation7]
        %2161 = vst.msk [vmem:[%s2160] sm:$0xff] %vm608, %v2159
        %s2162 = sld [smem:[#allocation2 + $0xb4]]
        %v2163 = vstv %s2162
        %v2164 = vmul.f32 %v2163, %v212
        %v2165 = vadd.f32 %v2164, 0.0
        %s2166 = sld [smem:[#allocation2 + $0xb5]]
        %v2167 = vstv %s2166
        %v2168 = vmul.f32 %v2167, %v212
        %2170 = vrot.lane.b32.xlu0 %v2168, 127
        %v2171 = vpop.permute.xlu0 %2170
        %v2173 = vadd.f32 %v2165, %v2171
        %s2174 = sld [smem:[#allocation2 + $0xb6]]
        %v2175 = vstv %s2174
        %v2176 = vmul.f32 %v2175, %v212
        %2178 = vrot.lane.b32.xlu0 %v2176, 126
        %v2179 = vpop.permute.xlu0 %2178
        %v2181 = vadd.f32 %v2173, %v2179
        %s2182 = sld [smem:[#allocation2 + $0xb7]]
        %v2183 = vstv %s2182
        %v2184 = vmul.f32 %v2183, %v212
        %v2185 = vmul.f32 %v2183, %v213
        %v2188 = vrot.slane %v2184, 1
        %v2189 = vrot.slane %v2185, 1
        %v2190 = vsel %vm246, %v2188, %v2189
        %v2192 = vadd.f32 %v2181, %v2190
        %s2193 = sld [smem:[#allocation2 + $0xb8]]
        %v2194 = vstv %s2193
        %v2195 = vmul.f32 %v2194, %v212
        %v2196 = vmul.f32 %v2194, %v213
        %v2199 = vrot.slane %v2195, 1
        %v2200 = vrot.slane %v2196, 1
        %v2201 = vsel %vm246, %v2199, %v2200
        %2202 = vrot.lane.b32.xlu0 %v2201, 127
        %v2203 = vpop.permute.xlu0 %2202
        %v2205 = vadd.f32 %v2192, %v2203
        %s2206 = sld [smem:[#allocation2 + $0xb9]]
        %v2207 = vstv %s2206
        %v2208 = vmul.f32 %v2207, %v212
        %v2209 = vmul.f32 %v2207, %v213
        %v2212 = vrot.slane %v2208, 1
        %v2213 = vrot.slane %v2209, 1
        %v2214 = vsel %vm246, %v2212, %v2213
        %2215 = vrot.lane.b32.xlu0 %v2214, 126
        %v2216 = vpop.permute.xlu0 %2215
        %v2218 = vadd.f32 %v2205, %v2216
        %s2219 = sld [smem:[#allocation2 + $0xba]]
        %v2220 = vstv %s2219
        %v2221 = vmul.f32 %v2220, %v212
        %v2222 = vmul.f32 %v2220, %v213
        %v2225 = vrot.slane %v2221, 2
        %v2226 = vrot.slane %v2222, 2
        %v2227 = vsel %vm284, %v2225, %v2226
        %v2229 = vadd.f32 %v2218, %v2227
        %s2230 = sld [smem:[#allocation2 + $0xbb]]
        %v2231 = vstv %s2230
        %v2232 = vmul.f32 %v2231, %v212
        %v2233 = vmul.f32 %v2231, %v213
        %v2236 = vrot.slane %v2232, 2
        %v2237 = vrot.slane %v2233, 2
        %v2238 = vsel %vm284, %v2236, %v2237
        %2239 = vrot.lane.b32.xlu0 %v2238, 127
        %v2240 = vpop.permute.xlu0 %2239
        %v2242 = vadd.f32 %v2229, %v2240
        %s2243 = sld [smem:[#allocation2 + $0xbc]]
        %v2244 = vstv %s2243
        %v2245 = vmul.f32 %v2244, %v212
        %v2246 = vmul.f32 %v2244, %v213
        %v2249 = vrot.slane %v2245, 2
        %v2250 = vrot.slane %v2246, 2
        %v2251 = vsel %vm284, %v2249, %v2250
        %2252 = vrot.lane.b32.xlu0 %v2251, 126
        %v2253 = vpop.permute.xlu0 %2252
        %v2255 = vadd.f32 %v2242, %v2253
        %s2256 = sld [smem:[#allocation2 + $0xbd]]
        %v2257 = vstv %s2256
        %v2258 = vmul.f32 %v2257, %v214
        %v2259 = vadd.f32 %v2255, %v2258
        %s2260 = sld [smem:[#allocation2 + $0xbe]]
        %v2261 = vstv %s2260
        %v2262 = vmul.f32 %v2261, %v214
        %2264 = vrot.lane.b32.xlu0 %v2262, 127
        %v2265 = vpop.permute.xlu0 %2264
        %v2267 = vadd.f32 %v2259, %v2265
        %s2268 = sld [smem:[#allocation2 + $0xbf]]
        %v2269 = vstv %s2268
        %v2270 = vmul.f32 %v2269, %v214
        %2272 = vrot.lane.b32.xlu0 %v2270, 126
        %v2273 = vpop.permute.xlu0 %2272
        %v2275 = vadd.f32 %v2267, %v2273
        %s2276 = sld [smem:[#allocation2 + $0xc0]]
        %v2277 = vstv %s2276
        %v2278 = vmul.f32 %v2277, %v214
        %v2279 = vmul.f32 %v2277, %v215
        %v2282 = vrot.slane %v2278, 1
        %v2283 = vrot.slane %v2279, 1
        %v2284 = vsel %vm246, %v2282, %v2283
        %v2286 = vadd.f32 %v2275, %v2284
        %s2287 = sld [smem:[#allocation2 + $0xc1]]
        %v2288 = vstv %s2287
        %v2289 = vmul.f32 %v2288, %v214
        %v2290 = vmul.f32 %v2288, %v215
        %v2293 = vrot.slane %v2289, 1
        %v2294 = vrot.slane %v2290, 1
        %v2295 = vsel %vm246, %v2293, %v2294
        %2296 = vrot.lane.b32.xlu0 %v2295, 127
        %v2297 = vpop.permute.xlu0 %2296
        %v2299 = vadd.f32 %v2286, %v2297
        %s2300 = sld [smem:[#allocation2 + $0xc2]]
        %v2301 = vstv %s2300
        %v2302 = vmul.f32 %v2301, %v214
        %v2303 = vmul.f32 %v2301, %v215
        %v2306 = vrot.slane %v2302, 1
        %v2307 = vrot.slane %v2303, 1
        %v2308 = vsel %vm246, %v2306, %v2307
        %2309 = vrot.lane.b32.xlu0 %v2308, 126
        %v2310 = vpop.permute.xlu0 %2309
        %v2312 = vadd.f32 %v2299, %v2310
        %s2313 = sld [smem:[#allocation2 + $0xc3]]
        %v2314 = vstv %s2313
        %v2315 = vmul.f32 %v2314, %v214
        %v2316 = vmul.f32 %v2314, %v215
        %v2319 = vrot.slane %v2315, 2
        %v2320 = vrot.slane %v2316, 2
        %v2321 = vsel %vm284, %v2319, %v2320
        %v2323 = vadd.f32 %v2312, %v2321
        %s2324 = sld [smem:[#allocation2 + $0xc4]]
        %v2325 = vstv %s2324
        %v2326 = vmul.f32 %v2325, %v214
        %v2327 = vmul.f32 %v2325, %v215
        %v2330 = vrot.slane %v2326, 2
        %v2331 = vrot.slane %v2327, 2
        %v2332 = vsel %vm284, %v2330, %v2331
        %2333 = vrot.lane.b32.xlu0 %v2332, 127
        %v2334 = vpop.permute.xlu0 %2333
        %v2336 = vadd.f32 %v2323, %v2334
        %s2337 = sld [smem:[#allocation2 + $0xc5]]
        %v2338 = vstv %s2337
        %v2339 = vmul.f32 %v2338, %v214
        %v2340 = vmul.f32 %v2338, %v215
        %v2343 = vrot.slane %v2339, 2
        %v2344 = vrot.slane %v2340, 2
        %v2345 = vsel %vm284, %v2343, %v2344
        %2346 = vrot.lane.b32.xlu0 %v2345, 126
        %v2347 = vpop.permute.xlu0 %2346
        %v2349 = vadd.f32 %v2336, %v2347
        %s2350 = sld [smem:[#allocation2 + $0xc6]]
        %v2351 = vstv %s2350
        %v2352 = vmul.f32 %v2351, %v216
        %v2353 = vadd.f32 %v2349, %v2352
        %s2354 = sld [smem:[#allocation2 + $0xc7]]
        %v2355 = vstv %s2354
        %v2356 = vmul.f32 %v2355, %v216
        %2358 = vrot.lane.b32.xlu0 %v2356, 127
        %v2359 = vpop.permute.xlu0 %2358
        %v2361 = vadd.f32 %v2353, %v2359
        %s2362 = sld [smem:[#allocation2 + $0xc8]]
        %v2363 = vstv %s2362
        %v2364 = vmul.f32 %v2363, %v216
        %2366 = vrot.lane.b32.xlu0 %v2364, 126
        %v2367 = vpop.permute.xlu0 %2366
        %v2369 = vadd.f32 %v2361, %v2367
        %s2370 = sld [smem:[#allocation2 + $0xc9]]
        %v2371 = vstv %s2370
        %v2372 = vmul.f32 %v2371, %v216
        %v2373 = vmul.f32 %v2371, %v217
        %v2376 = vrot.slane %v2372, 1
        %v2377 = vrot.slane %v2373, 1
        %v2378 = vsel %vm246, %v2376, %v2377
        %v2380 = vadd.f32 %v2369, %v2378
        %s2381 = sld [smem:[#allocation2 + $0xca]]
        %v2382 = vstv %s2381
        %v2383 = vmul.f32 %v2382, %v216
        %v2384 = vmul.f32 %v2382, %v217
        %v2387 = vrot.slane %v2383, 1
        %v2388 = vrot.slane %v2384, 1
        %v2389 = vsel %vm246, %v2387, %v2388
        %2390 = vrot.lane.b32.xlu0 %v2389, 127
        %v2391 = vpop.permute.xlu0 %2390
        %v2393 = vadd.f32 %v2380, %v2391
        %s2394 = sld [smem:[#allocation2 + $0xcb]]
        %v2395 = vstv %s2394
        %v2396 = vmul.f32 %v2395, %v216
        %v2397 = vmul.f32 %v2395, %v217
        %v2400 = vrot.slane %v2396, 1
        %v2401 = vrot.slane %v2397, 1
        %v2402 = vsel %vm246, %v2400, %v2401
        %2403 = vrot.lane.b32.xlu0 %v2402, 126
        %v2404 = vpop.permute.xlu0 %2403
        %v2406 = vadd.f32 %v2393, %v2404
        %s2407 = sld [smem:[#allocation2 + $0xcc]]
        %v2408 = vstv %s2407
        %v2409 = vmul.f32 %v2408, %v216
        %v2410 = vmul.f32 %v2408, %v217
        %v2413 = vrot.slane %v2409, 2
        %v2414 = vrot.slane %v2410, 2
        %v2415 = vsel %vm284, %v2413, %v2414
        %v2417 = vadd.f32 %v2406, %v2415
        %s2418 = sld [smem:[#allocation2 + $0xcd]]
        %v2419 = vstv %s2418
        %v2420 = vmul.f32 %v2419, %v216
        %v2421 = vmul.f32 %v2419, %v217
        %v2424 = vrot.slane %v2420, 2
        %v2425 = vrot.slane %v2421, 2
        %v2426 = vsel %vm284, %v2424, %v2425
        %2427 = vrot.lane.b32.xlu0 %v2426, 127
        %v2428 = vpop.permute.xlu0 %2427
        %v2430 = vadd.f32 %v2417, %v2428
        %s2431 = sld [smem:[#allocation2 + $0xce]]
        %v2432 = vstv %s2431
        %v2433 = vmul.f32 %v2432, %v216
        %v2434 = vmul.f32 %v2432, %v217
        %v2437 = vrot.slane %v2433, 2
        %v2438 = vrot.slane %v2434, 2
        %v2439 = vsel %vm284, %v2437, %v2438
        %2440 = vrot.lane.b32.xlu0 %v2439, 126
        %v2441 = vpop.permute.xlu0 %2440
        %v2443 = vadd.f32 %v2430, %v2441
        %s2444 = sld [smem:[#allocation2 + $0xcf]]
        %v2445 = vstv %s2444
        %v2446 = vmul.f32 %v2445, %v218
        %v2447 = vadd.f32 %v2443, %v2446
        %s2448 = sld [smem:[#allocation2 + $0xd0]]
        %v2449 = vstv %s2448
        %v2450 = vmul.f32 %v2449, %v218
        %2452 = vrot.lane.b32.xlu0 %v2450, 127
        %v2453 = vpop.permute.xlu0 %2452
        %v2455 = vadd.f32 %v2447, %v2453
        %s2456 = sld [smem:[#allocation2 + $0xd1]]
        %v2457 = vstv %s2456
        %v2458 = vmul.f32 %v2457, %v218
        %2460 = vrot.lane.b32.xlu0 %v2458, 126
        %v2461 = vpop.permute.xlu0 %2460
        %v2463 = vadd.f32 %v2455, %v2461
        %s2464 = sld [smem:[#allocation2 + $0xd2]]
        %v2465 = vstv %s2464
        %v2466 = vmul.f32 %v2465, %v218
        %v2467 = vmul.f32 %v2465, %v219
        %v2470 = vrot.slane %v2466, 1
        %v2471 = vrot.slane %v2467, 1
        %v2472 = vsel %vm246, %v2470, %v2471
        %v2474 = vadd.f32 %v2463, %v2472
        %s2475 = sld [smem:[#allocation2 + $0xd3]]
        %v2476 = vstv %s2475
        %v2477 = vmul.f32 %v2476, %v218
        %v2478 = vmul.f32 %v2476, %v219
        %v2481 = vrot.slane %v2477, 1
        %v2482 = vrot.slane %v2478, 1
        %v2483 = vsel %vm246, %v2481, %v2482
        %2484 = vrot.lane.b32.xlu0 %v2483, 127
        %v2485 = vpop.permute.xlu0 %2484
        %v2487 = vadd.f32 %v2474, %v2485
        %s2488 = sld [smem:[#allocation2 + $0xd4]]
        %v2489 = vstv %s2488
        %v2490 = vmul.f32 %v2489, %v218
        %v2491 = vmul.f32 %v2489, %v219
        %v2494 = vrot.slane %v2490, 1
        %v2495 = vrot.slane %v2491, 1
        %v2496 = vsel %vm246, %v2494, %v2495
        %2497 = vrot.lane.b32.xlu0 %v2496, 126
        %v2498 = vpop.permute.xlu0 %2497
        %v2500 = vadd.f32 %v2487, %v2498
        %s2501 = sld [smem:[#allocation2 + $0xd5]]
        %v2502 = vstv %s2501
        %v2503 = vmul.f32 %v2502, %v218
        %v2504 = vmul.f32 %v2502, %v219
        %v2507 = vrot.slane %v2503, 2
        %v2508 = vrot.slane %v2504, 2
        %v2509 = vsel %vm284, %v2507, %v2508
        %v2511 = vadd.f32 %v2500, %v2509
        %s2512 = sld [smem:[#allocation2 + $0xd6]]
        %v2513 = vstv %s2512
        %v2514 = vmul.f32 %v2513, %v218
        %v2515 = vmul.f32 %v2513, %v219
        %v2518 = vrot.slane %v2514, 2
        %v2519 = vrot.slane %v2515, 2
        %v2520 = vsel %vm284, %v2518, %v2519
        %2521 = vrot.lane.b32.xlu0 %v2520, 127
        %v2522 = vpop.permute.xlu0 %2521
        %v2524 = vadd.f32 %v2511, %v2522
        %s2525 = sld [smem:[#allocation2 + $0xd7]]
        %v2526 = vstv %s2525
        %v2527 = vmul.f32 %v2526, %v218
        %v2528 = vmul.f32 %v2526, %v219
        %v2531 = vrot.slane %v2527, 2
        %v2532 = vrot.slane %v2528, 2
        %v2533 = vsel %vm284, %v2531, %v2532
        %2534 = vrot.lane.b32.xlu0 %v2533, 126
        %v2535 = vpop.permute.xlu0 %2534
        %v2537 = vadd.f32 %v2524, %v2535
        %s2538 = sld [smem:[#allocation5 + $0x5]]
        %v2539 = vstv %s2538
        %v2540 = vadd.f32 %v2537, %v2539
        %v2541 = vsub.f32 0.0, %v2540
        %v2542 = vmul.f32 %v2541, 1.442695
        %v2543 = vpow.pop %v2542
        %v2544 = vadd.f32 %v2543, 1.0
        %v2545 = vrcp.pop %v2544
        %v2546 = vmul.f32 1.0, %v2545
        %v2547 = vmul.f32 %v2540, %v2546
        %s2548 = scalar_lea.vmem %s204, 40 [#allocation7]
        %2549 = vst.msk [vmem:[%s2548] sm:$0xff] %vm608, %v2547
        %s2550 = sld [smem:[#allocation2 + $0xd8]]
        %v2551 = vstv %s2550
        %v2552 = vmul.f32 %v2551, %v212
        %v2553 = vadd.f32 %v2552, 0.0
        %s2554 = sld [smem:[#allocation2 + $0xd9]]
        %v2555 = vstv %s2554
        %v2556 = vmul.f32 %v2555, %v212
        %2558 = vrot.lane.b32.xlu0 %v2556, 127
        %v2559 = vpop.permute.xlu0 %2558
        %v2561 = vadd.f32 %v2553, %v2559
        %s2562 = sld [smem:[#allocation2 + $0xda]]
        %v2563 = vstv %s2562
        %v2564 = vmul.f32 %v2563, %v212
        %2566 = vrot.lane.b32.xlu0 %v2564, 126
        %v2567 = vpop.permute.xlu0 %2566
        %v2569 = vadd.f32 %v2561, %v2567
        %s2570 = sld [smem:[#allocation2 + $0xdb]]
        %v2571 = vstv %s2570
        %v2572 = vmul.f32 %v2571, %v212
        %v2573 = vmul.f32 %v2571, %v213
        %v2576 = vrot.slane %v2572, 1
        %v2577 = vrot.slane %v2573, 1
        %v2578 = vsel %vm246, %v2576, %v2577
        %v2580 = vadd.f32 %v2569, %v2578
        %s2581 = sld [smem:[#allocation2 + $0xdc]]
        %v2582 = vstv %s2581
        %v2583 = vmul.f32 %v2582, %v212
        %v2584 = vmul.f32 %v2582, %v213
        %v2587 = vrot.slane %v2583, 1
        %v2588 = vrot.slane %v2584, 1
        %v2589 = vsel %vm246, %v2587, %v2588
        %2590 = vrot.lane.b32.xlu0 %v2589, 127
        %v2591 = vpop.permute.xlu0 %2590
        %v2593 = vadd.f32 %v2580, %v2591
        %s2594 = sld [smem:[#allocation2 + $0xdd]]
        %v2595 = vstv %s2594
        %v2596 = vmul.f32 %v2595, %v212
        %v2597 = vmul.f32 %v2595, %v213
        %v2600 = vrot.slane %v2596, 1
        %v2601 = vrot.slane %v2597, 1
        %v2602 = vsel %vm246, %v2600, %v2601
        %2603 = vrot.lane.b32.xlu0 %v2602, 126
        %v2604 = vpop.permute.xlu0 %2603
        %v2606 = vadd.f32 %v2593, %v2604
        %s2607 = sld [smem:[#allocation2 + $0xde]]
        %v2608 = vstv %s2607
        %v2609 = vmul.f32 %v2608, %v212
        %v2610 = vmul.f32 %v2608, %v213
        %v2613 = vrot.slane %v2609, 2
        %v2614 = vrot.slane %v2610, 2
        %v2615 = vsel %vm284, %v2613, %v2614
        %v2617 = vadd.f32 %v2606, %v2615
        %s2618 = sld [smem:[#allocation2 + $0xdf]]
        %v2619 = vstv %s2618
        %v2620 = vmul.f32 %v2619, %v212
        %v2621 = vmul.f32 %v2619, %v213
        %v2624 = vrot.slane %v2620, 2
        %v2625 = vrot.slane %v2621, 2
        %v2626 = vsel %vm284, %v2624, %v2625
        %2627 = vrot.lane.b32.xlu0 %v2626, 127
        %v2628 = vpop.permute.xlu0 %2627
        %v2630 = vadd.f32 %v2617, %v2628
        %s2631 = sld [smem:[#allocation2 + $0xe0]]
        %v2632 = vstv %s2631
        %v2633 = vmul.f32 %v2632, %v212
        %v2634 = vmul.f32 %v2632, %v213
        %v2637 = vrot.slane %v2633, 2
        %v2638 = vrot.slane %v2634, 2
        %v2639 = vsel %vm284, %v2637, %v2638
        %2640 = vrot.lane.b32.xlu0 %v2639, 126
        %v2641 = vpop.permute.xlu0 %2640
        %v2643 = vadd.f32 %v2630, %v2641
        %s2644 = sld [smem:[#allocation2 + $0xe1]]
        %v2645 = vstv %s2644
        %v2646 = vmul.f32 %v2645, %v214
        %v2647 = vadd.f32 %v2643, %v2646
        %s2648 = sld [smem:[#allocation2 + $0xe2]]
        %v2649 = vstv %s2648
        %v2650 = vmul.f32 %v2649, %v214
        %2652 = vrot.lane.b32.xlu0 %v2650, 127
        %v2653 = vpop.permute.xlu0 %2652
        %v2655 = vadd.f32 %v2647, %v2653
        %s2656 = sld [smem:[#allocation2 + $0xe3]]
        %v2657 = vstv %s2656
        %v2658 = vmul.f32 %v2657, %v214
        %2660 = vrot.lane.b32.xlu0 %v2658, 126
        %v2661 = vpop.permute.xlu0 %2660
        %v2663 = vadd.f32 %v2655, %v2661
        %s2664 = sld [smem:[#allocation2 + $0xe4]]
        %v2665 = vstv %s2664
        %v2666 = vmul.f32 %v2665, %v214
        %v2667 = vmul.f32 %v2665, %v215
        %v2670 = vrot.slane %v2666, 1
        %v2671 = vrot.slane %v2667, 1
        %v2672 = vsel %vm246, %v2670, %v2671
        %v2674 = vadd.f32 %v2663, %v2672
        %s2675 = sld [smem:[#allocation2 + $0xe5]]
        %v2676 = vstv %s2675
        %v2677 = vmul.f32 %v2676, %v214
        %v2678 = vmul.f32 %v2676, %v215
        %v2681 = vrot.slane %v2677, 1
        %v2682 = vrot.slane %v2678, 1
        %v2683 = vsel %vm246, %v2681, %v2682
        %2684 = vrot.lane.b32.xlu0 %v2683, 127
        %v2685 = vpop.permute.xlu0 %2684
        %v2687 = vadd.f32 %v2674, %v2685
        %s2688 = sld [smem:[#allocation2 + $0xe6]]
        %v2689 = vstv %s2688
        %v2690 = vmul.f32 %v2689, %v214
        %v2691 = vmul.f32 %v2689, %v215
        %v2694 = vrot.slane %v2690, 1
        %v2695 = vrot.slane %v2691, 1
        %v2696 = vsel %vm246, %v2694, %v2695
        %2697 = vrot.lane.b32.xlu0 %v2696, 126
        %v2698 = vpop.permute.xlu0 %2697
        %v2700 = vadd.f32 %v2687, %v2698
        %s2701 = sld [smem:[#allocation2 + $0xe7]]
        %v2702 = vstv %s2701
        %v2703 = vmul.f32 %v2702, %v214
        %v2704 = vmul.f32 %v2702, %v215
        %v2707 = vrot.slane %v2703, 2
        %v2708 = vrot.slane %v2704, 2
        %v2709 = vsel %vm284, %v2707, %v2708
        %v2711 = vadd.f32 %v2700, %v2709
        %s2712 = sld [smem:[#allocation2 + $0xe8]]
        %v2713 = vstv %s2712
        %v2714 = vmul.f32 %v2713, %v214
        %v2715 = vmul.f32 %v2713, %v215
        %v2718 = vrot.slane %v2714, 2
        %v2719 = vrot.slane %v2715, 2
        %v2720 = vsel %vm284, %v2718, %v2719
        %2721 = vrot.lane.b32.xlu0 %v2720, 127
        %v2722 = vpop.permute.xlu0 %2721
        %v2724 = vadd.f32 %v2711, %v2722
        %s2725 = sld [smem:[#allocation2 + $0xe9]]
        %v2726 = vstv %s2725
        %v2727 = vmul.f32 %v2726, %v214
        %v2728 = vmul.f32 %v2726, %v215
        %v2731 = vrot.slane %v2727, 2
        %v2732 = vrot.slane %v2728, 2
        %v2733 = vsel %vm284, %v2731, %v2732
        %2734 = vrot.lane.b32.xlu0 %v2733, 126
        %v2735 = vpop.permute.xlu0 %2734
        %v2737 = vadd.f32 %v2724, %v2735
        %s2738 = sld [smem:[#allocation2 + $0xea]]
        %v2739 = vstv %s2738
        %v2740 = vmul.f32 %v2739, %v216
        %v2741 = vadd.f32 %v2737, %v2740
        %s2742 = sld [smem:[#allocation2 + $0xeb]]
        %v2743 = vstv %s2742
        %v2744 = vmul.f32 %v2743, %v216
        %2746 = vrot.lane.b32.xlu0 %v2744, 127
        %v2747 = vpop.permute.xlu0 %2746
        %v2749 = vadd.f32 %v2741, %v2747
        %s2750 = sld [smem:[#allocation2 + $0xec]]
        %v2751 = vstv %s2750
        %v2752 = vmul.f32 %v2751, %v216
        %2754 = vrot.lane.b32.xlu0 %v2752, 126
        %v2755 = vpop.permute.xlu0 %2754
        %v2757 = vadd.f32 %v2749, %v2755
        %s2758 = sld [smem:[#allocation2 + $0xed]]
        %v2759 = vstv %s2758
        %v2760 = vmul.f32 %v2759, %v216
        %v2761 = vmul.f32 %v2759, %v217
        %v2764 = vrot.slane %v2760, 1
        %v2765 = vrot.slane %v2761, 1
        %v2766 = vsel %vm246, %v2764, %v2765
        %v2768 = vadd.f32 %v2757, %v2766
        %s2769 = sld [smem:[#allocation2 + $0xee]]
        %v2770 = vstv %s2769
        %v2771 = vmul.f32 %v2770, %v216
        %v2772 = vmul.f32 %v2770, %v217
        %v2775 = vrot.slane %v2771, 1
        %v2776 = vrot.slane %v2772, 1
        %v2777 = vsel %vm246, %v2775, %v2776
        %2778 = vrot.lane.b32.xlu0 %v2777, 127
        %v2779 = vpop.permute.xlu0 %2778
        %v2781 = vadd.f32 %v2768, %v2779
        %s2782 = sld [smem:[#allocation2 + $0xef]]
        %v2783 = vstv %s2782
        %v2784 = vmul.f32 %v2783, %v216
        %v2785 = vmul.f32 %v2783, %v217
        %v2788 = vrot.slane %v2784, 1
        %v2789 = vrot.slane %v2785, 1
        %v2790 = vsel %vm246, %v2788, %v2789
        %2791 = vrot.lane.b32.xlu0 %v2790, 126
        %v2792 = vpop.permute.xlu0 %2791
        %v2794 = vadd.f32 %v2781, %v2792
        %s2795 = sld [smem:[#allocation2 + $0xf0]]
        %v2796 = vstv %s2795
        %v2797 = vmul.f32 %v2796, %v216
        %v2798 = vmul.f32 %v2796, %v217
        %v2801 = vrot.slane %v2797, 2
        %v2802 = vrot.slane %v2798, 2
        %v2803 = vsel %vm284, %v2801, %v2802
        %v2805 = vadd.f32 %v2794, %v2803
        %s2806 = sld [smem:[#allocation2 + $0xf1]]
        %v2807 = vstv %s2806
        %v2808 = vmul.f32 %v2807, %v216
        %v2809 = vmul.f32 %v2807, %v217
        %v2812 = vrot.slane %v2808, 2
        %v2813 = vrot.slane %v2809, 2
        %v2814 = vsel %vm284, %v2812, %v2813
        %2815 = vrot.lane.b32.xlu0 %v2814, 127
        %v2816 = vpop.permute.xlu0 %2815
        %v2818 = vadd.f32 %v2805, %v2816
        %s2819 = sld [smem:[#allocation2 + $0xf2]]
        %v2820 = vstv %s2819
        %v2821 = vmul.f32 %v2820, %v216
        %v2822 = vmul.f32 %v2820, %v217
        %v2825 = vrot.slane %v2821, 2
        %v2826 = vrot.slane %v2822, 2
        %v2827 = vsel %vm284, %v2825, %v2826
        %2828 = vrot.lane.b32.xlu0 %v2827, 126
        %v2829 = vpop.permute.xlu0 %2828
        %v2831 = vadd.f32 %v2818, %v2829
        %s2832 = sld [smem:[#allocation2 + $0xf3]]
        %v2833 = vstv %s2832
        %v2834 = vmul.f32 %v2833, %v218
        %v2835 = vadd.f32 %v2831, %v2834
        %s2836 = sld [smem:[#allocation2 + $0xf4]]
        %v2837 = vstv %s2836
        %v2838 = vmul.f32 %v2837, %v218
        %2840 = vrot.lane.b32.xlu0 %v2838, 127
        %v2841 = vpop.permute.xlu0 %2840
        %v2843 = vadd.f32 %v2835, %v2841
        %s2844 = sld [smem:[#allocation2 + $0xf5]]
        %v2845 = vstv %s2844
        %v2846 = vmul.f32 %v2845, %v218
        %2848 = vrot.lane.b32.xlu0 %v2846, 126
        %v2849 = vpop.permute.xlu0 %2848
        %v2851 = vadd.f32 %v2843, %v2849
        %s2852 = sld [smem:[#allocation2 + $0xf6]]
        %v2853 = vstv %s2852
        %v2854 = vmul.f32 %v2853, %v218
        %v2855 = vmul.f32 %v2853, %v219
        %v2858 = vrot.slane %v2854, 1
        %v2859 = vrot.slane %v2855, 1
        %v2860 = vsel %vm246, %v2858, %v2859
        %v2862 = vadd.f32 %v2851, %v2860
        %s2863 = sld [smem:[#allocation2 + $0xf7]]
        %v2864 = vstv %s2863
        %v2865 = vmul.f32 %v2864, %v218
        %v2866 = vmul.f32 %v2864, %v219
        %v2869 = vrot.slane %v2865, 1
        %v2870 = vrot.slane %v2866, 1
        %v2871 = vsel %vm246, %v2869, %v2870
        %2872 = vrot.lane.b32.xlu0 %v2871, 127
        %v2873 = vpop.permute.xlu0 %2872
        %v2875 = vadd.f32 %v2862, %v2873
        %s2876 = sld [smem:[#allocation2 + $0xf8]]
        %v2877 = vstv %s2876
        %v2878 = vmul.f32 %v2877, %v218
        %v2879 = vmul.f32 %v2877, %v219
        %v2882 = vrot.slane %v2878, 1
        %v2883 = vrot.slane %v2879, 1
        %v2884 = vsel %vm246, %v2882, %v2883
        %2885 = vrot.lane.b32.xlu0 %v2884, 126
        %v2886 = vpop.permute.xlu0 %2885
        %v2888 = vadd.f32 %v2875, %v2886
        %s2889 = sld [smem:[#allocation2 + $0xf9]]
        %v2890 = vstv %s2889
        %v2891 = vmul.f32 %v2890, %v218
        %v2892 = vmul.f32 %v2890, %v219
        %v2895 = vrot.slane %v2891, 2
        %v2896 = vrot.slane %v2892, 2
        %v2897 = vsel %vm284, %v2895, %v2896
        %v2899 = vadd.f32 %v2888, %v2897
        %s2900 = sld [smem:[#allocation2 + $0xfa]]
        %v2901 = vstv %s2900
        %v2902 = vmul.f32 %v2901, %v218
        %v2903 = vmul.f32 %v2901, %v219
        %v2906 = vrot.slane %v2902, 2
        %v2907 = vrot.slane %v2903, 2
        %v2908 = vsel %vm284, %v2906, %v2907
        %2909 = vrot.lane.b32.xlu0 %v2908, 127
        %v2910 = vpop.permute.xlu0 %2909
        %v2912 = vadd.f32 %v2899, %v2910
        %s2913 = sld [smem:[#allocation2 + $0xfb]]
        %v2914 = vstv %s2913
        %v2915 = vmul.f32 %v2914, %v218
        %v2916 = vmul.f32 %v2914, %v219
        %v2919 = vrot.slane %v2915, 2
        %v2920 = vrot.slane %v2916, 2
        %v2921 = vsel %vm284, %v2919, %v2920
        %2922 = vrot.lane.b32.xlu0 %v2921, 126
        %v2923 = vpop.permute.xlu0 %2922
        %v2925 = vadd.f32 %v2912, %v2923
        %s2926 = sld [smem:[#allocation5 + $0x6]]
        %v2927 = vstv %s2926
        %v2928 = vadd.f32 %v2925, %v2927
        %v2929 = vsub.f32 0.0, %v2928
        %v2930 = vmul.f32 %v2929, 1.442695
        %v2931 = vpow.pop %v2930
        %v2932 = vadd.f32 %v2931, 1.0
        %v2933 = vrcp.pop %v2932
        %v2934 = vmul.f32 1.0, %v2933
        %v2935 = vmul.f32 %v2928, %v2934
        %s2936 = scalar_lea.vmem %s204, 48 [#allocation7]
        %2937 = vst.msk [vmem:[%s2936] sm:$0xff] %vm608, %v2935
        %s2938 = sld [smem:[#allocation2 + $0xfc]]
        %v2939 = vstv %s2938
        %v2940 = vmul.f32 %v2939, %v212
        %v2941 = vadd.f32 %v2940, 0.0
        %s2942 = sld [smem:[#allocation2 + $0xfd]]
        %v2943 = vstv %s2942
        %v2944 = vmul.f32 %v2943, %v212
        %2946 = vrot.lane.b32.xlu0 %v2944, 127
        %v2947 = vpop.permute.xlu0 %2946
        %v2949 = vadd.f32 %v2941, %v2947
        %s2950 = sld [smem:[#allocation2 + $0xfe]]
        %v2951 = vstv %s2950
        %v2952 = vmul.f32 %v2951, %v212
        %2954 = vrot.lane.b32.xlu0 %v2952, 126
        %v2955 = vpop.permute.xlu0 %2954
        %v2957 = vadd.f32 %v2949, %v2955
        %s2958 = sld [smem:[#allocation2 + $0xff]]
        %v2959 = vstv %s2958
        %v2960 = vmul.f32 %v2959, %v212
        %v2961 = vmul.f32 %v2959, %v213
        %v2964 = vrot.slane %v2960, 1
        %v2965 = vrot.slane %v2961, 1
        %v2966 = vsel %vm246, %v2964, %v2965
        %v2968 = vadd.f32 %v2957, %v2966
        %s2969 = sld [smem:[#allocation2 + $0x100]]
        %v2970 = vstv %s2969
        %v2971 = vmul.f32 %v2970, %v212
        %v2972 = vmul.f32 %v2970, %v213
        %v2975 = vrot.slane %v2971, 1
        %v2976 = vrot.slane %v2972, 1
        %v2977 = vsel %vm246, %v2975, %v2976
        %2978 = vrot.lane.b32.xlu0 %v2977, 127
        %v2979 = vpop.permute.xlu0 %2978
        %v2981 = vadd.f32 %v2968, %v2979
        %s2982 = sld [smem:[#allocation2 + $0x101]]
        %v2983 = vstv %s2982
        %v2984 = vmul.f32 %v2983, %v212
        %v2985 = vmul.f32 %v2983, %v213
        %v2988 = vrot.slane %v2984, 1
        %v2989 = vrot.slane %v2985, 1
        %v2990 = vsel %vm246, %v2988, %v2989
        %2991 = vrot.lane.b32.xlu0 %v2990, 126
        %v2992 = vpop.permute.xlu0 %2991
        %v2994 = vadd.f32 %v2981, %v2992
        %s2995 = sld [smem:[#allocation2 + $0x102]]
        %v2996 = vstv %s2995
        %v2997 = vmul.f32 %v2996, %v212
        %v2998 = vmul.f32 %v2996, %v213
        %v3001 = vrot.slane %v2997, 2
        %v3002 = vrot.slane %v2998, 2
        %v3003 = vsel %vm284, %v3001, %v3002
        %v3005 = vadd.f32 %v2994, %v3003
        %s3006 = sld [smem:[#allocation2 + $0x103]]
        %v3007 = vstv %s3006
        %v3008 = vmul.f32 %v3007, %v212
        %v3009 = vmul.f32 %v3007, %v213
        %v3012 = vrot.slane %v3008, 2
        %v3013 = vrot.slane %v3009, 2
        %v3014 = vsel %vm284, %v3012, %v3013
        %3015 = vrot.lane.b32.xlu0 %v3014, 127
        %v3016 = vpop.permute.xlu0 %3015
        %v3018 = vadd.f32 %v3005, %v3016
        %s3019 = sld [smem:[#allocation2 + $0x104]]
        %v3020 = vstv %s3019
        %v3021 = vmul.f32 %v3020, %v212
        %v3022 = vmul.f32 %v3020, %v213
        %v3025 = vrot.slane %v3021, 2
        %v3026 = vrot.slane %v3022, 2
        %v3027 = vsel %vm284, %v3025, %v3026
        %3028 = vrot.lane.b32.xlu0 %v3027, 126
        %v3029 = vpop.permute.xlu0 %3028
        %v3031 = vadd.f32 %v3018, %v3029
        %s3032 = sld [smem:[#allocation2 + $0x105]]
        %v3033 = vstv %s3032
        %v3034 = vmul.f32 %v3033, %v214
        %v3035 = vadd.f32 %v3031, %v3034
        %s3036 = sld [smem:[#allocation2 + $0x106]]
        %v3037 = vstv %s3036
        %v3038 = vmul.f32 %v3037, %v214
        %3040 = vrot.lane.b32.xlu0 %v3038, 127
        %v3041 = vpop.permute.xlu0 %3040
        %v3043 = vadd.f32 %v3035, %v3041
        %s3044 = sld [smem:[#allocation2 + $0x107]]
        %v3045 = vstv %s3044
        %v3046 = vmul.f32 %v3045, %v214
        %3048 = vrot.lane.b32.xlu0 %v3046, 126
        %v3049 = vpop.permute.xlu0 %3048
        %v3051 = vadd.f32 %v3043, %v3049
        %s3052 = sld [smem:[#allocation2 + $0x108]]
        %v3053 = vstv %s3052
        %v3054 = vmul.f32 %v3053, %v214
        %v3055 = vmul.f32 %v3053, %v215
        %v3058 = vrot.slane %v3054, 1
        %v3059 = vrot.slane %v3055, 1
        %v3060 = vsel %vm246, %v3058, %v3059
        %v3062 = vadd.f32 %v3051, %v3060
        %s3063 = sld [smem:[#allocation2 + $0x109]]
        %v3064 = vstv %s3063
        %v3065 = vmul.f32 %v3064, %v214
        %v3066 = vmul.f32 %v3064, %v215
        %v3069 = vrot.slane %v3065, 1
        %v3070 = vrot.slane %v3066, 1
        %v3071 = vsel %vm246, %v3069, %v3070
        %3072 = vrot.lane.b32.xlu0 %v3071, 127
        %v3073 = vpop.permute.xlu0 %3072
        %v3075 = vadd.f32 %v3062, %v3073
        %s3076 = sld [smem:[#allocation2 + $0x10a]]
        %v3077 = vstv %s3076
        %v3078 = vmul.f32 %v3077, %v214
        %v3079 = vmul.f32 %v3077, %v215
        %v3082 = vrot.slane %v3078, 1
        %v3083 = vrot.slane %v3079, 1
        %v3084 = vsel %vm246, %v3082, %v3083
        %3085 = vrot.lane.b32.xlu0 %v3084, 126
        %v3086 = vpop.permute.xlu0 %3085
        %v3088 = vadd.f32 %v3075, %v3086
        %s3089 = sld [smem:[#allocation2 + $0x10b]]
        %v3090 = vstv %s3089
        %v3091 = vmul.f32 %v3090, %v214
        %v3092 = vmul.f32 %v3090, %v215
        %v3095 = vrot.slane %v3091, 2
        %v3096 = vrot.slane %v3092, 2
        %v3097 = vsel %vm284, %v3095, %v3096
        %v3099 = vadd.f32 %v3088, %v3097
        %s3100 = sld [smem:[#allocation2 + $0x10c]]
        %v3101 = vstv %s3100
        %v3102 = vmul.f32 %v3101, %v214
        %v3103 = vmul.f32 %v3101, %v215
        %v3106 = vrot.slane %v3102, 2
        %v3107 = vrot.slane %v3103, 2
        %v3108 = vsel %vm284, %v3106, %v3107
        %3109 = vrot.lane.b32.xlu0 %v3108, 127
        %v3110 = vpop.permute.xlu0 %3109
        %v3112 = vadd.f32 %v3099, %v3110
        %s3113 = sld [smem:[#allocation2 + $0x10d]]
        %v3114 = vstv %s3113
        %v3115 = vmul.f32 %v3114, %v214
        %v3116 = vmul.f32 %v3114, %v215
        %v3119 = vrot.slane %v3115, 2
        %v3120 = vrot.slane %v3116, 2
        %v3121 = vsel %vm284, %v3119, %v3120
        %3122 = vrot.lane.b32.xlu0 %v3121, 126
        %v3123 = vpop.permute.xlu0 %3122
        %v3125 = vadd.f32 %v3112, %v3123
        %s3126 = sld [smem:[#allocation2 + $0x10e]]
        %v3127 = vstv %s3126
        %v3128 = vmul.f32 %v3127, %v216
        %v3129 = vadd.f32 %v3125, %v3128
        %s3130 = sld [smem:[#allocation2 + $0x10f]]
        %v3131 = vstv %s3130
        %v3132 = vmul.f32 %v3131, %v216
        %3134 = vrot.lane.b32.xlu0 %v3132, 127
        %v3135 = vpop.permute.xlu0 %3134
        %v3137 = vadd.f32 %v3129, %v3135
        %s3138 = sld [smem:[#allocation2 + $0x110]]
        %v3139 = vstv %s3138
        %v3140 = vmul.f32 %v3139, %v216
        %3142 = vrot.lane.b32.xlu0 %v3140, 126
        %v3143 = vpop.permute.xlu0 %3142
        %v3145 = vadd.f32 %v3137, %v3143
        %s3146 = sld [smem:[#allocation2 + $0x111]]
        %v3147 = vstv %s3146
        %v3148 = vmul.f32 %v3147, %v216
        %v3149 = vmul.f32 %v3147, %v217
        %v3152 = vrot.slane %v3148, 1
        %v3153 = vrot.slane %v3149, 1
        %v3154 = vsel %vm246, %v3152, %v3153
        %v3156 = vadd.f32 %v3145, %v3154
        %s3157 = sld [smem:[#allocation2 + $0x112]]
        %v3158 = vstv %s3157
        %v3159 = vmul.f32 %v3158, %v216
        %v3160 = vmul.f32 %v3158, %v217
        %v3163 = vrot.slane %v3159, 1
        %v3164 = vrot.slane %v3160, 1
        %v3165 = vsel %vm246, %v3163, %v3164
        %3166 = vrot.lane.b32.xlu0 %v3165, 127
        %v3167 = vpop.permute.xlu0 %3166
        %v3169 = vadd.f32 %v3156, %v3167
        %s3170 = sld [smem:[#allocation2 + $0x113]]
        %v3171 = vstv %s3170
        %v3172 = vmul.f32 %v3171, %v216
        %v3173 = vmul.f32 %v3171, %v217
        %v3176 = vrot.slane %v3172, 1
        %v3177 = vrot.slane %v3173, 1
        %v3178 = vsel %vm246, %v3176, %v3177
        %3179 = vrot.lane.b32.xlu0 %v3178, 126
        %v3180 = vpop.permute.xlu0 %3179
        %v3182 = vadd.f32 %v3169, %v3180
        %s3183 = sld [smem:[#allocation2 + $0x114]]
        %v3184 = vstv %s3183
        %v3185 = vmul.f32 %v3184, %v216
        %v3186 = vmul.f32 %v3184, %v217
        %v3189 = vrot.slane %v3185, 2
        %v3190 = vrot.slane %v3186, 2
        %v3191 = vsel %vm284, %v3189, %v3190
        %v3193 = vadd.f32 %v3182, %v3191
        %s3194 = sld [smem:[#allocation2 + $0x115]]
        %v3195 = vstv %s3194
        %v3196 = vmul.f32 %v3195, %v216
        %v3197 = vmul.f32 %v3195, %v217
        %v3200 = vrot.slane %v3196, 2
        %v3201 = vrot.slane %v3197, 2
        %v3202 = vsel %vm284, %v3200, %v3201
        %3203 = vrot.lane.b32.xlu0 %v3202, 127
        %v3204 = vpop.permute.xlu0 %3203
        %v3206 = vadd.f32 %v3193, %v3204
        %s3207 = sld [smem:[#allocation2 + $0x116]]
        %v3208 = vstv %s3207
        %v3209 = vmul.f32 %v3208, %v216
        %v3210 = vmul.f32 %v3208, %v217
        %v3213 = vrot.slane %v3209, 2
        %v3214 = vrot.slane %v3210, 2
        %v3215 = vsel %vm284, %v3213, %v3214
        %3216 = vrot.lane.b32.xlu0 %v3215, 126
        %v3217 = vpop.permute.xlu0 %3216
        %v3219 = vadd.f32 %v3206, %v3217
        %s3220 = sld [smem:[#allocation2 + $0x117]]
        %v3221 = vstv %s3220
        %v3222 = vmul.f32 %v3221, %v218
        %v3223 = vadd.f32 %v3219, %v3222
        %s3224 = sld [smem:[#allocation2 + $0x118]]
        %v3225 = vstv %s3224
        %v3226 = vmul.f32 %v3225, %v218
        %3228 = vrot.lane.b32.xlu0 %v3226, 127
        %v3229 = vpop.permute.xlu0 %3228
        %v3231 = vadd.f32 %v3223, %v3229
        %s3232 = sld [smem:[#allocation2 + $0x119]]
        %v3233 = vstv %s3232
        %v3234 = vmul.f32 %v3233, %v218
        %3236 = vrot.lane.b32.xlu0 %v3234, 126
        %v3237 = vpop.permute.xlu0 %3236
        %v3239 = vadd.f32 %v3231, %v3237
        %s3240 = sld [smem:[#allocation2 + $0x11a]]
        %v3241 = vstv %s3240
        %v3242 = vmul.f32 %v3241, %v218
        %v3243 = vmul.f32 %v3241, %v219
        %v3246 = vrot.slane %v3242, 1
        %v3247 = vrot.slane %v3243, 1
        %v3248 = vsel %vm246, %v3246, %v3247
        %v3250 = vadd.f32 %v3239, %v3248
        %s3251 = sld [smem:[#allocation2 + $0x11b]]
        %v3252 = vstv %s3251
        %v3253 = vmul.f32 %v3252, %v218
        %v3254 = vmul.f32 %v3252, %v219
        %v3257 = vrot.slane %v3253, 1
        %v3258 = vrot.slane %v3254, 1
        %v3259 = vsel %vm246, %v3257, %v3258
        %3260 = vrot.lane.b32.xlu0 %v3259, 127
        %v3261 = vpop.permute.xlu0 %3260
        %v3263 = vadd.f32 %v3250, %v3261
        %s3264 = sld [smem:[#allocation2 + $0x11c]]
        %v3265 = vstv %s3264
        %v3266 = vmul.f32 %v3265, %v218
        %v3267 = vmul.f32 %v3265, %v219
        %v3270 = vrot.slane %v3266, 1
        %v3271 = vrot.slane %v3267, 1
        %v3272 = vsel %vm246, %v3270, %v3271
        %3273 = vrot.lane.b32.xlu0 %v3272, 126
        %v3274 = vpop.permute.xlu0 %3273
        %v3276 = vadd.f32 %v3263, %v3274
        %s3277 = sld [smem:[#allocation2 + $0x11d]]
        %v3278 = vstv %s3277
        %v3279 = vmul.f32 %v3278, %v218
        %v3280 = vmul.f32 %v3278, %v219
        %v3283 = vrot.slane %v3279, 2
        %v3284 = vrot.slane %v3280, 2
        %v3285 = vsel %vm284, %v3283, %v3284
        %v3287 = vadd.f32 %v3276, %v3285
        %s3288 = sld [smem:[#allocation2 + $0x11e]]
        %v3289 = vstv %s3288
        %v3290 = vmul.f32 %v3289, %v218
        %v3291 = vmul.f32 %v3289, %v219
        %v3294 = vrot.slane %v3290, 2
        %v3295 = vrot.slane %v3291, 2
        %v3296 = vsel %vm284, %v3294, %v3295
        %3297 = vrot.lane.b32.xlu0 %v3296, 127
        %v3298 = vpop.permute.xlu0 %3297
        %v3300 = vadd.f32 %v3287, %v3298
        %s3301 = sld [smem:[#allocation2 + $0x11f]]
        %v3302 = vstv %s3301
        %v3303 = vmul.f32 %v3302, %v218
        %v3304 = vmul.f32 %v3302, %v219
        %v3307 = vrot.slane %v3303, 2
        %v3308 = vrot.slane %v3304, 2
        %v3309 = vsel %vm284, %v3307, %v3308
        %3310 = vrot.lane.b32.xlu0 %v3309, 126
        %v3311 = vpop.permute.xlu0 %3310
        %v3313 = vadd.f32 %v3300, %v3311
        %s3314 = sld [smem:[#allocation5 + $0x7]]
        %v3315 = vstv %s3314
        %v3316 = vadd.f32 %v3313, %v3315
        %v3317 = vsub.f32 0.0, %v3316
        %v3318 = vmul.f32 %v3317, 1.442695
        %v3319 = vpow.pop %v3318
        %v3320 = vadd.f32 %v3319, 1.0
        %v3321 = vrcp.pop %v3320
        %v3322 = vmul.f32 1.0, %v3321
        %v3323 = vmul.f32 %v3316, %v3322
        %s3324 = scalar_lea.vmem %s204, 56 [#allocation7]
        %3325 = vst.msk [vmem:[%s3324] sm:$0xff] %vm608, %v3323
        %s3326 = sand.u32 %s109, 1
        %s3327 = scalar_lea.sflag [#allocation3], %s3326
        %s3328 = sand.u32 %s109, 1
        %s3329 = smul.addr %s3328, 64
        %s3330 = scalar_lea.vmem [#allocation7], %s3329
        // Predicated region
        $region41: #{tpu_custom_call.1} parent=31 // pred_check
          %p3331 = pneg %p119
        $region42: #{tpu_custom_call.1} parent=31 // pred_check_branch
          %3333 = sbr.rel (%p3331) target = $region44
        $region43: #{tpu_custom_call.1} parent=31 // pred_region
          %s3335 = ssub.s32 1024, 1024
          %3336 = vsyncadd %s3327, %s3335
          %s3337 = smul.addr %s23, 16
          %s3338 = sadd.s32 %s24, %s3337
          %s3339 = smul.addr %s3338, 128
          %s3340 = scalar_lea.hbm %s3, %s3339
          %s3341 = sshll.u32 %s3330, 4
          %s3342 = int_to_ptr.vmem [resolvable:$true] %s3341
          %3347 = dma.vmem_to_hbm [thread:$0]  %s3342, 1024, %s3340, %s3327, 128, 256, 8
        $region44: #{tpu_custom_call.1} parent=31 // pred_fallthru
          _
      $region32: #{tpu_custom_call.1} parent=5 // pred_fallthru
        _
      %p3348 = scmp.le.s32.totalorder 2, %s14
      // Predicated region
      $region45: #{tpu_custom_call.1} parent=5 // pred_check
        %p3349 = pneg %p3348
      $region46: #{tpu_custom_call.1} parent=5 // pred_check_branch
        %3351 = sbr.rel (%p3349) target = $region48
      $region47: #{tpu_custom_call.1} parent=5 // pred_region
        %s3352 = ssub.s32 %s14, 2
        // Predicated region
        $region49: #{tpu_custom_call.1} parent=47 // pred_check
          %p3353 = pneg %p125
        $region50: #{tpu_custom_call.1} parent=47 // pred_check_branch
          %3355 = sbr.rel (%p3353) target = $region52
        $region51: #{tpu_custom_call.1} parent=47 // pred_region
          %s3356 = sand.u32 %s110, 1
          %s3357 = scalar_lea.sflag [#allocation3], %s3356
          %s3358 = sand.u32 %s110, 1
          %s3359 = smul.addr %s3358, 64
          %s3360 = scalar_lea.vmem [#allocation7], %s3359
          %3361 = dma.done %s3357, 1024
        $region52: #{tpu_custom_call.1} parent=47 // pred_fallthru
          _
      $region48: #{tpu_custom_call.1} parent=5 // pred_fallthru
        _
    $region6: #{tpu_custom_call.1} parent=1 // loop_footer
      %s18 = sadd.s32 1, %s14
    $region7: #{tpu_custom_call.1} parent=1 // loop_footer_branch
      %13 = sbr.rel target = $region3
    $region8: #{tpu_custom_call.1} parent=1 // loop_exit
      _
    %3362 = vsyncpa [#allocation3], 1
    %s3363 = scalar_lea.sflag [#allocation3], 1
    %3364 = vsyncpa %s3363, 1
    %3365 = vsyncpa [#allocation4], 1
    %s3366 = scalar_lea.sflag [#allocation4], 1
    %3367 = vsyncpa %s3366, 1
    %3368 = vsyncpa [#allocation6], 1

</llo_original>
